<compile_context>
chip_gen: v7x
topology: tpu7x:2x2x1
jax: 0.10.0
libtpu: 0.0.40
codegen_flags: <defaults>
</compile_context>

<pallas_src>
import numpy as np

import jax
import jax.numpy as jnp
from jax.experimental import pallas as pl
from jax.experimental.pallas import tpu as pltpu

# ---------------- static configuration (small shapes consistent w/ module) ----
LMAX = 2                              # lmax_list = [2], mmax_list = [2]
K_COEFFS = (LMAX + 1) ** 2            # 9 SH coefficients
C = 32                                # sphere_channels
HIDDEN = 32                           # hidden_channels (edge scalar width)
EDGE_ATTR_DIM = 16                    # distance_expansion basis size
MAX_NUM_ELEMENTS = 10
RES_BETA, RES_ALPHA = 8, 16
G = RES_BETA * RES_ALPHA              # 128 grid points (lane friendly)
EPS = 1e-5
CUTOFF = 5.0

N_NODES = 8                           # nodes per example (static for kernel)
E_EDGES = 16                          # edges per example
NC = N_NODES * C                      # 256 lanes (lane-stacked layout B)
KPAD = 16                             # K_COEFFS padded to a sublane multiple
NKP = N_NODES * KPAD                  # 128 rows (node-stacked layout A)
EKP = E_EDGES * KPAD                  # 256 rows (edge-stacked)


# =============================== fused Pallas kernel ==========================
def _fused_layer_kernel(x_ref,          # (NKP, C)  f32 node features, layout A
                        wkc_ref,        # (NKP, C)  f32 norm weight per (k, c), tiled per node
                        mavg_ref,       # (NKP,NKP) f32 per-node per-degree averaging (incl 1/((2l+1)C))
                        wss_ref, wst_ref,     # (C, C) f32 SO2 channel-mix weights
                        rsrc_ref, rtgt_ref,   # (EKP, NKP) bf16 gather+rotate operators
                        scls_ref, sclt_ref,   # (EKP, C)  f32 edge scales (repeated over KPAD rows)
                        bback_ref,            # (NKP, EKP) bf16 rotate-back + scatter-sum operator
                        w1a_ref, w1b_ref,     # (C, C) f32 fc1 halves (compact)
                        tg_ref,               # (G, KPAD)  bf16 to_grid (K padded)
                        fgt_ref,              # (KPAD, G)  bf16 from_grid^T (K padded)
                        fc2_ref, fc3_ref,     # (C, C) f32 compact fc2 / fc3
                        xres_ref,             # (KPAD, NC) f32 residual, layout B
                        out_ref,              # (KPAD, NC) f32 output, layout B
                        preb_s,               # scratch (KPAD, NC) f32
                        w2bd_s, w3bd_s):      # scratch (NC, NC)  f32 block-diag fc2 / fc3
    f32 = jnp.float32
    bf16 = jnp.bfloat16

    # ---- block-diagonal fc2 / fc3 built in VMEM from compact weights ---------
    w2bd_s[...] = jnp.zeros_like(w2bd_s)
    w3bd_s[...] = jnp.zeros_like(w3bd_s)
    fc2 = fc2_ref[...]
    fc3 = fc3_ref[...]
    for n in range(N_NODES):
        lo = n * C
        w2bd_s[lo:lo + C, lo:lo + C] = fc2
        w3bd_s[lo:lo + C, lo:lo + C] = fc3

    # ---- 1) per-(node, degree) RMS norm: one matmul + lane reduction ---------
    x = x_ref[...]
    s = jnp.dot(mavg_ref[...], x * x, preferred_element_type=f32)       # (NKP, C)
    inv = jax.lax.rsqrt(jnp.sum(s, axis=-1, keepdims=True) + EPS)       # (NKP, 1)
    xn = x * inv * wkc_ref[...]                                         # (NKP, C)

    # ---- 2) edge messages, fully batched --------------------------------------
    #   channel mix first (commutes with rotation), then gather+rotate (one
    #   matmul each), edge scaling, then rotate-back + scatter-sum (one matmul).
    xs = jnp.dot(xn, wss_ref[...], preferred_element_type=f32).astype(bf16)
    xt = jnp.dot(xn, wst_ref[...], preferred_element_type=f32).astype(bf16)
    rs = jnp.dot(rsrc_ref[...], xs, preferred_element_type=f32)          # (EKP, C)
    rt = jnp.dot(rtgt_ref[...], xt, preferred_element_type=f32)          # (EKP, C)
    h = (rs * scls_ref[...] + rt * sclt_ref[...]).astype(bf16)
    msg = jnp.dot(bback_ref[...], h, preferred_element_type=f32)         # (NKP, C)

    # ---- 3) fc1 halves with compact (C, C) weights (commutes with to_grid) ---
    pre_a = (jnp.dot(xn, w1a_ref[...], preferred_element_type=f32)
             + jnp.dot(msg, w1b_ref[...], preferred_element_type=f32))   # (NKP, C)

    # ---- 4) relayout (N*KPAD, C) -> (KPAD, N*C): 8 static block copies -------
    for n in range(N_NODES):
        preb_s[:, n * C:(n + 1) * C] = pre_a[n * KPAD:(n + 1) * KPAD, :]

    # ---- 5) grid MLP on 256 dense lanes, bf16 MXU with f32 accumulation ------
    pre_b = preb_s[...].astype(bf16)                                      # (KPAD, NC)
    g = jax.nn.silu(jnp.dot(tg_ref[...], pre_b, preferred_element_type=f32))    # (G, NC)
    hh = jax.nn.silu(jnp.dot(g.astype(bf16), w2bd_s[...].astype(bf16),
                             preferred_element_type=f32))                        # (G, NC)
    cc = jnp.dot(fgt_ref[...], hh.astype(bf16), preferred_element_type=f32)      # (KPAD, NC)
    out_ref[...] = (jnp.dot(cc.astype(bf16), w3bd_s[...].astype(bf16),
                            preferred_element_type=f32)
                    + xres_ref[...])


# ============================== host-side helpers =============================
def _full_spec(shape):
    nd = len(shape)
    return pl.BlockSpec(shape, lambda i, nd=nd: (0,) * nd)


def prepare_static_weights(params):
    """Layout-specialised static weights.  Call ONCE outside jit."""
    l_of_k = np.repeat(np.arange(LMAX + 1), 2 * np.arange(LMAX + 1) + 1)   # (K,)
    same_l = (l_of_k[:, None] == l_of_k[None, :]).astype(np.float32)
    cnt = ((2 * l_of_k + 1) * C).astype(np.float32)
    m = np.zeros((KPAD, KPAD), np.float32)
    m[:K_COEFFS, :K_COEFFS] = same_l / cnt[:, None]
    mavg_bd = jnp.asarray(np.kron(np.eye(N_NODES, dtype=np.float32), m))    # (NKP, NKP)

    wkc = params["norm1_w"][l_of_k]                                         # (K, C)
    wkc_p = jnp.zeros((KPAD, C), jnp.float32).at[:K_COEFFS].set(wkc)
    wkc_a = jnp.tile(wkc_p, (N_NODES, 1))                                   # (NKP, C)

    tg_p = jnp.zeros((G, KPAD), jnp.float32).at[:, :K_COEFFS].set(
        params["to_grid"]).astype(jnp.bfloat16)
    fgt_p = jnp.zeros((KPAD, G), jnp.float32).at[:K_COEFFS, :].set(
        params["from_grid_t"]).astype(jnp.bfloat16)

    return {"mavg_bd": mavg_bd, "wkc_a": wkc_a,
            "w1a": params["fc1_w"][:C], "w1b": params["fc1_w"][C:],
            "tg_p": tg_p, "fgt_p": fgt_p}


def _gaussian_smearing(d):
    offsets = jnp.linspace(0.0, CUTOFF, EDGE_ATTR_DIM, dtype=jnp.float32)
    gamma = -0.5 / (offsets[1] - offsets[0]) ** 2
    return jnp.exp(gamma * (d[:, None] - offsets[None, :]) ** 2)


def _edge_scalars(params, atomic_numbers, edge_distance, edge_index):
    x_edge = jax.nn.silu(_gaussian_smearing(edge_distance) @ params["fc1_dist_w"]
                         + params["fc1_dist_b"])
    src_emb = params["source_embedding"][atomic_numbers[edge_index[0]]]
    tgt_emb = params["target_embedding"][atomic_numbers[edge_index[1]]]
    x_edge = jnp.concatenate([x_edge, src_emb, tgt_emb], axis=1)          # (E, 3*HIDDEN)
    scale_s = jax.nn.silu(x_edge @ params["fc_scale_s"])                  # (E, C)
    scale_t = jax.nn.silu(x_edge @ params["fc_scale_t"])                  # (E, C)
    return scale_s, scale_t


# ================================ forward (jit) ===============================
def pairnet_layer_forward(params, static_w, x_emb, atomic_numbers,
                          edge_distance, edge_index, wigner):
    f32 = jnp.float32
    bf16 = jnp.bfloat16
    n, k, c = x_emb.shape
    e = edge_index.shape[1]
    assert (n, k, c, e) == (N_NODES, K_COEFFS, C, E_EDGES)

    # tiny edge-scalar MLP (plain XLA)
    scale_s, scale_t = _edge_scalars(params, atomic_numbers, edge_distance, edge_index)
    scl_s = jnp.repeat(scale_s, KPAD, axis=0)                             # (EKP, C)
    scl_t = jnp.repeat(scale_t, KPAD, axis=0)

    # data-dependent combined operators:
    #   R_src/R_tgt : gather(src/tgt) + Wigner rotation         (EKP, NKP)
    #   B_back      : Wigner^T rotation-back + scatter-sum(tgt) (NKP, EKP)
    wig_pad = jnp.zeros((E_EDGES, KPAD, KPAD), f32).at[:, :K_COEFFS, :K_COEFFS].set(wigner)
    oh_src = (edge_index[0][:, None] == jnp.arange(N_NODES)[None, :]).astype(f32)
    oh_tgt = (edge_index[1][:, None] == jnp.arange(N_NODES)[None, :]).astype(f32)
    r_src = jnp.einsum("en,eij->einj", oh_src, wig_pad).reshape(EKP, NKP).astype(bf16)
    r_tgt = jnp.einsum("en,eij->einj", oh_tgt, wig_pad).reshape(EKP, NKP).astype(bf16)
    b_back = jnp.einsum("en,eji->niej", oh_tgt, wig_pad).reshape(NKP, EKP).astype(bf16)

    # node features in layout A (nodes on sublanes, K padded), residual in layout B
    x_a = jnp.zeros((N_NODES, KPAD, C), f32).at[:, :K_COEFFS, :].set(x_emb).reshape(NKP, C)
    xres_b = jnp.zeros((KPAD, NC), f32).at[:K_COEFFS].set(
        jnp.transpose(x_emb, (1, 0, 2)).reshape(K_COEFFS, NC))

    grid_spec = pltpu.PrefetchScalarGridSpec(
        num_scalar_prefetch=0,
        grid=(1,),
        in_specs=[
            _full_spec((NKP, C)),        # x_a
            _full_spec((NKP, C)),        # wkc_a
            _full_spec((NKP, NKP)),      # mavg_bd
            _full_spec((C, C)),          # w_so2_s
            _full_spec((C, C)),          # w_so2_t
            _full_spec((EKP, NKP)),      # r_src (bf16)
            _full_spec((EKP, NKP)),      # r_tgt (bf16)
            _full_spec((EKP, C)),        # scl_s
            _full_spec((EKP, C)),        # scl_t
            _full_spec((NKP, EKP)),      # b_back (bf16)
            _full_spec((C, C)),          # w1a
            _full_spec((C, C)),          # w1b
            _full_spec((G, KPAD)),       # to_grid (bf16)
            _full_spec((KPAD, G)),       # from_grid_t (bf16)
            _full_spec((C, C)),          # fc2
            _full_spec((C, C)),          # fc3
            _full_spec((KPAD, NC)),      # xres_b
        ],
        out_specs=_full_spec((KPAD, NC)),
        scratch_shapes=[
            pltpu.VMEM((KPAD, NC), jnp.float32),     # pre, lane-stacked
            pltpu.VMEM((NC, NC), jnp.float32),       # block-diag fc2
            pltpu.VMEM((NC, NC), jnp.float32),       # block-diag fc3
        ],
    )

    out_b = pl.pallas_call(
        _fused_layer_kernel,
        out_shape=jax.ShapeDtypeStruct((KPAD, NC), jnp.float32),
        grid_spec=grid_spec,
        compiler_params=pltpu.CompilerParams(dimension_semantics=("arbitrary",)),
    )(x_a, static_w["wkc_a"], static_w["mavg_bd"],
      params["w_so2_s"], params["w_so2_t"],
      r_src, r_tgt, scl_s, scl_t, b_back,
      static_w["w1a"], static_w["w1b"], static_w["tg_p"], static_w["fgt_p"],
      params["fc2_w"], params["fc3_w"], xres_b)

    # (KPAD, N*C) lane-stacked -> (N, K, C)
    return jnp.transpose(out_b[:K_COEFFS].reshape(K_COEFFS, N_NODES, C), (1, 0, 2))


# ============================= pure-JAX reference =============================
def _ref_forward(params, x_emb, atomic_numbers, edge_distance, edge_index, wigner):
    n = x_emb.shape[0]
    x_res = x_emb
    outs = []
    for l in range(LMAX + 1):
        f = x_res[:, l * l:(l + 1) * (l + 1), :]
        nrm = jnp.mean(f * f, axis=(1, 2), keepdims=True)
        outs.append(f * jax.lax.rsqrt(nrm + EPS) * params["norm1_w"][l][None, None, :])
    x_norm = jnp.concatenate(outs, axis=1)

    scale_s, scale_t = _edge_scalars(params, atomic_numbers, edge_distance, edge_index)
    x_src = x_norm[edge_index[0]]
    x_tgt = x_norm[edge_index[1]]
    rs = jnp.einsum("eij,ejc->eic", wigner, x_src)
    rt = jnp.einsum("eij,ejc->eic", wigner, x_tgt)
    hs = jnp.einsum("eic,cd->eid", rs, params["w_so2_s"]) * scale_s[:, None, :]
    ht = jnp.einsum("eic,cd->eid", rt, params["w_so2_t"]) * scale_t[:, None, :]
    back = jnp.einsum("eji,ejc->eic", wigner, hs + ht)
    x_message = jax.ops.segment_sum(back, edge_index[1], num_segments=n)

    g1 = jnp.einsum("gk,nkc->ngc", params["to_grid"], x_norm)
    g2 = jnp.einsum("gk,nkc->ngc", params["to_grid"], x_message)
    g = jnp.concatenate([g1, g2], axis=-1)
    h = jax.nn.silu(g @ params["fc1_w"])
    h = jax.nn.silu(h @ params["fc2_w"])
    h = h @ params["fc3_w"]
    coeffs = jnp.einsum("kg,ngc->nkc", params["from_grid_t"], h)
    return coeffs + x_res


# ================================== driver ====================================
def _init_params(key):
    ks = jax.random.split(key, 12)

    def lin(k, fan_in, fan_out):
        return (jax.random.normal(k, (fan_in, fan_out), jnp.float32)
                / jnp.sqrt(jnp.float32(fan_in)))

    return {
        "norm1_w": jnp.ones((LMAX + 1, C), jnp.float32),
        "fc1_dist_w": lin(ks[0], EDGE_ATTR_DIM, HIDDEN),
        "fc1_dist_b": jnp.zeros((HIDDEN,), jnp.float32),
        "source_embedding": 0.1 * jax.random.normal(ks[1], (MAX_NUM_ELEMENTS, HIDDEN), jnp.float32),
        "target_embedding": 0.1 * jax.random.normal(ks[2], (MAX_NUM_ELEMENTS, HIDDEN), jnp.float32),
        "fc_scale_s": lin(ks[3], 3 * HIDDEN, C),
        "fc_scale_t": lin(ks[4], 3 * HIDDEN, C),
        "w_so2_s": lin(ks[5], C, C),
        "w_so2_t": lin(ks[6], C, C),
        "to_grid": 0.2 * jax.random.normal(ks[7], (G, K_COEFFS), jnp.float32),
        "from_grid_t": 0.2 * jax.random.normal(ks[8], (K_COEFFS, G), jnp.float32) / G,
        "fc1_w": lin(ks[9], 2 * C, C),     # fc1_sphere (no bias), stored [in, out]
        "fc2_w": lin(ks[10], C, C),        # fc2_sphere
        "fc3_w": lin(ks[11], C, C),        # fc3_sphere
    }


if __name__ == "__main__":
    key = jax.random.PRNGKey(0)
    kp, kx, ka, kd, ke, kw = jax.random.split(key, 6)

    params = _init_params(kp)
    x_emb = jax.random.normal(kx, (N_NODES, K_COEFFS, C), jnp.float32)
    atomic_numbers = jax.random.randint(ka, (N_NODES,), 1, MAX_NUM_ELEMENTS)
    edge_distance = jax.random.uniform(kd, (E_EDGES,), jnp.float32, 0.5, CUTOFF)
    edge_index = jax.random.randint(ke, (2, E_EDGES), 0, N_NODES)
    wigner = 0.3 * jax.random.normal(kw, (E_EDGES, K_COEFFS, K_COEFFS), jnp.float32)

    static_w = prepare_static_weights(params)      # once, outside jit
    fwd = jax.jit(pairnet_layer_forward)
    out = fwd(params, static_w, x_emb, atomic_numbers, edge_distance, edge_index, wigner)
    out = jax.block_until_ready(out)

    ref = _ref_forward(params, x_emb, atomic_numbers, edge_distance, edge_index, wigner)
    assert out.shape == (N_NODES, K_COEFFS, C)
    assert jnp.all(jnp.isfinite(out))
    assert jnp.allclose(out, ref, rtol=2e-3, atol=2e-3)
    print("KERNEL_OK")
</pallas_src>

<mosaic_0001>
module attributes {stable_mosaic.version = 11 : i64} {
  func.func @_fused_layer_kernel(%arg0: i32, %arg1: memref<128x32xf32, #tpu.memory_space<vmem>>, %arg2: memref<128x32xf32, #tpu.memory_space<vmem>>, %arg3: memref<128x128xf32, #tpu.memory_space<vmem>>, %arg4: memref<32x32xf32, #tpu.memory_space<vmem>>, %arg5: memref<32x32xf32, #tpu.memory_space<vmem>>, %arg6: memref<256x128xbf16, #tpu.memory_space<vmem>>, %arg7: memref<256x128xbf16, #tpu.memory_space<vmem>>, %arg8: memref<256x32xf32, #tpu.memory_space<vmem>>, %arg9: memref<256x32xf32, #tpu.memory_space<vmem>>, %arg10: memref<128x256xbf16, #tpu.memory_space<vmem>>, %arg11: memref<32x32xf32, #tpu.memory_space<vmem>>, %arg12: memref<32x32xf32, #tpu.memory_space<vmem>>, %arg13: memref<128x16xbf16, #tpu.memory_space<vmem>>, %arg14: memref<16x128xbf16, #tpu.memory_space<vmem>>, %arg15: memref<32x32xf32, #tpu.memory_space<vmem>>, %arg16: memref<32x32xf32, #tpu.memory_space<vmem>>, %arg17: memref<16x256xf32, #tpu.memory_space<vmem>>, %arg18: memref<16x256xf32, #tpu.memory_space<vmem>>, %arg19: memref<16x256xf32, #tpu.memory_space<vmem>>, %arg20: memref<256x256xf32, #tpu.memory_space<vmem>>, %arg21: memref<256x256xf32, #tpu.memory_space<vmem>>) attributes {dimension_semantics = [#tpu.dimension_semantics<arbitrary>], iteration_bounds = array<i64: 1>, scalar_prefetch = 0 : i64, scratch_operands = 3 : i64, tpu.core_type = #tpu.core_type<tc>, window_params = [{pipeline_mode = #tpu.pipeline_mode<synchronous>, transform_indices = @transform_0, window_bounds = array<i64: 128, 32>}, {pipeline_mode = #tpu.pipeline_mode<synchronous>, transform_indices = @transform_1, window_bounds = array<i64: 128, 32>}, {pipeline_mode = #tpu.pipeline_mode<synchronous>, transform_indices = @transform_2, window_bounds = array<i64: 128, 128>}, {pipeline_mode = #tpu.pipeline_mode<synchronous>, transform_indices = @transform_3, window_bounds = array<i64: 32, 32>}, {pipeline_mode = #tpu.pipeline_mode<synchronous>, transform_indices = @transform_4, window_bounds = array<i64: 32, 32>}, {pipeline_mode = #tpu.pipeline_mode<synchronous>, transform_indices = @transform_5, window_bounds = array<i64: 256, 128>}, {pipeline_mode = #tpu.pipeline_mode<synchronous>, transform_indices = @transform_6, window_bounds = array<i64: 256, 128>}, {pipeline_mode = #tpu.pipeline_mode<synchronous>, transform_indices = @transform_7, window_bounds = array<i64: 256, 32>}, {pipeline_mode = #tpu.pipeline_mode<synchronous>, transform_indices = @transform_8, window_bounds = array<i64: 256, 32>}, {pipeline_mode = #tpu.pipeline_mode<synchronous>, transform_indices = @transform_9, window_bounds = array<i64: 128, 256>}, {pipeline_mode = #tpu.pipeline_mode<synchronous>, transform_indices = @transform_10, window_bounds = array<i64: 32, 32>}, {pipeline_mode = #tpu.pipeline_mode<synchronous>, transform_indices = @transform_11, window_bounds = array<i64: 32, 32>}, {pipeline_mode = #tpu.pipeline_mode<synchronous>, transform_indices = @transform_12, window_bounds = array<i64: 128, 16>}, {pipeline_mode = #tpu.pipeline_mode<synchronous>, transform_indices = @transform_13, window_bounds = array<i64: 16, 128>}, {pipeline_mode = #tpu.pipeline_mode<synchronous>, transform_indices = @transform_14, window_bounds = array<i64: 32, 32>}, {pipeline_mode = #tpu.pipeline_mode<synchronous>, transform_indices = @transform_15, window_bounds = array<i64: 32, 32>}, {pipeline_mode = #tpu.pipeline_mode<synchronous>, transform_indices = @transform_16, window_bounds = array<i64: 16, 256>}, {pipeline_mode = #tpu.pipeline_mode<synchronous>, transform_indices = @transform_17, window_bounds = array<i64: 16, 256>}]} {
    %cst = arith.constant 0.000000e+00 : f32
    %0 = vector.broadcast %cst : f32 to vector<256x256xf32>
    %c0 = arith.constant 0 : index
    %c0_0 = arith.constant 0 : index
    %1 = vector.load %arg20[%c0, %c0_0] : memref<256x256xf32, #tpu.memory_space<vmem>>, vector<256x256xf32>
    tpu.vector_store %arg20[%c0, %c0_0], %0 {strides = array<i32>} : memref<256x256xf32, #tpu.memory_space<vmem>>, vector<256x256xf32>,
    %cst_1 = arith.constant 0.000000e+00 : f32
    %2 = vector.broadcast %cst_1 : f32 to vector<256x256xf32>
    %c0_2 = arith.constant 0 : index
    %c0_3 = arith.constant 0 : index
    %3 = vector.load %arg21[%c0_2, %c0_3] : memref<256x256xf32, #tpu.memory_space<vmem>>, vector<256x256xf32>
    tpu.vector_store %arg21[%c0_2, %c0_3], %2 {strides = array<i32>} : memref<256x256xf32, #tpu.memory_space<vmem>>, vector<256x256xf32>,
    %c0_4 = arith.constant 0 : index
    %c0_5 = arith.constant 0 : index
    %4 = vector.load %arg15[%c0_4, %c0_5] : memref<32x32xf32, #tpu.memory_space<vmem>>, vector<32x32xf32>
    %c0_6 = arith.constant 0 : index
    %c0_7 = arith.constant 0 : index
    %5 = vector.load %arg16[%c0_6, %c0_7] : memref<32x32xf32, #tpu.memory_space<vmem>>, vector<32x32xf32>
    %c0_8 = arith.constant 0 : index
    %c0_9 = arith.constant 0 : index
    %6 = vector.load %arg20[%c0_8, %c0_9] : memref<256x256xf32, #tpu.memory_space<vmem>>, vector<32x32xf32>
    tpu.vector_store %arg20[%c0_8, %c0_9], %4 {strides = array<i32>} : memref<256x256xf32, #tpu.memory_space<vmem>>, vector<32x32xf32>,
    %c0_10 = arith.constant 0 : index
    %c0_11 = arith.constant 0 : index
    %7 = vector.load %arg21[%c0_10, %c0_11] : memref<256x256xf32, #tpu.memory_space<vmem>>, vector<32x32xf32>
    tpu.vector_store %arg21[%c0_10, %c0_11], %5 {strides = array<i32>} : memref<256x256xf32, #tpu.memory_space<vmem>>, vector<32x32xf32>,
    %c32 = arith.constant 32 : index
    %c32_12 = arith.constant 32 : index
    %8 = vector.load %arg20[%c32, %c32_12] : memref<256x256xf32, #tpu.memory_space<vmem>>, vector<32x32xf32>
    tpu.vector_store %arg20[%c32, %c32_12], %4 {strides = array<i32>} : memref<256x256xf32, #tpu.memory_space<vmem>>, vector<32x32xf32>,
    %c32_13 = arith.constant 32 : index
    %c32_14 = arith.constant 32 : index
    %9 = vector.load %arg21[%c32_13, %c32_14] : memref<256x256xf32, #tpu.memory_space<vmem>>, vector<32x32xf32>
    tpu.vector_store %arg21[%c32_13, %c32_14], %5 {strides = array<i32>} : memref<256x256xf32, #tpu.memory_space<vmem>>, vector<32x32xf32>,
    %c64 = arith.constant 64 : index
    %c64_15 = arith.constant 64 : index
    %10 = vector.load %arg20[%c64, %c64_15] : memref<256x256xf32, #tpu.memory_space<vmem>>, vector<32x32xf32>
    tpu.vector_store %arg20[%c64, %c64_15], %4 {strides = array<i32>} : memref<256x256xf32, #tpu.memory_space<vmem>>, vector<32x32xf32>,
    %c64_16 = arith.constant 64 : index
    %c64_17 = arith.constant 64 : index
    %11 = vector.load %arg21[%c64_16, %c64_17] : memref<256x256xf32, #tpu.memory_space<vmem>>, vector<32x32xf32>
    tpu.vector_store %arg21[%c64_16, %c64_17], %5 {strides = array<i32>} : memref<256x256xf32, #tpu.memory_space<vmem>>, vector<32x32xf32>,
    %c96 = arith.constant 96 : index
    %c96_18 = arith.constant 96 : index
    %12 = vector.load %arg20[%c96, %c96_18] : memref<256x256xf32, #tpu.memory_space<vmem>>, vector<32x32xf32>
    tpu.vector_store %arg20[%c96, %c96_18], %4 {strides = array<i32>} : memref<256x256xf32, #tpu.memory_space<vmem>>, vector<32x32xf32>,
    %c96_19 = arith.constant 96 : index
    %c96_20 = arith.constant 96 : index
    %13 = vector.load %arg21[%c96_19, %c96_20] : memref<256x256xf32, #tpu.memory_space<vmem>>, vector<32x32xf32>
    tpu.vector_store %arg21[%c96_19, %c96_20], %5 {strides = array<i32>} : memref<256x256xf32, #tpu.memory_space<vmem>>, vector<32x32xf32>,
    %c128 = arith.constant 128 : index
    %c128_21 = arith.constant 128 : index
    %14 = vector.load %arg20[%c128, %c128_21] : memref<256x256xf32, #tpu.memory_space<vmem>>, vector<32x32xf32>
    tpu.vector_store %arg20[%c128, %c128_21], %4 {strides = array<i32>} : memref<256x256xf32, #tpu.memory_space<vmem>>, vector<32x32xf32>,
    %c128_22 = arith.constant 128 : index
    %c128_23 = arith.constant 128 : index
    %15 = vector.load %arg21[%c128_22, %c128_23] : memref<256x256xf32, #tpu.memory_space<vmem>>, vector<32x32xf32>
    tpu.vector_store %arg21[%c128_22, %c128_23], %5 {strides = array<i32>} : memref<256x256xf32, #tpu.memory_space<vmem>>, vector<32x32xf32>,
    %c160 = arith.constant 160 : index
    %c160_24 = arith.constant 160 : index
    %16 = vector.load %arg20[%c160, %c160_24] : memref<256x256xf32, #tpu.memory_space<vmem>>, vector<32x32xf32>
    tpu.vector_store %arg20[%c160, %c160_24], %4 {strides = array<i32>} : memref<256x256xf32, #tpu.memory_space<vmem>>, vector<32x32xf32>,
    %c160_25 = arith.constant 160 : index
    %c160_26 = arith.constant 160 : index
    %17 = vector.load %arg21[%c160_25, %c160_26] : memref<256x256xf32, #tpu.memory_space<vmem>>, vector<32x32xf32>
    tpu.vector_store %arg21[%c160_25, %c160_26], %5 {strides = array<i32>} : memref<256x256xf32, #tpu.memory_space<vmem>>, vector<32x32xf32>,
    %c192 = arith.constant 192 : index
    %c192_27 = arith.constant 192 : index
    %18 = vector.load %arg20[%c192, %c192_27] : memref<256x256xf32, #tpu.memory_space<vmem>>, vector<32x32xf32>
    tpu.vector_store %arg20[%c192, %c192_27], %4 {strides = array<i32>} : memref<256x256xf32, #tpu.memory_space<vmem>>, vector<32x32xf32>,
    %c192_28 = arith.constant 192 : index
    %c192_29 = arith.constant 192 : index
    %19 = vector.load %arg21[%c192_28, %c192_29] : memref<256x256xf32, #tpu.memory_space<vmem>>, vector<32x32xf32>
    tpu.vector_store %arg21[%c192_28, %c192_29], %5 {strides = array<i32>} : memref<256x256xf32, #tpu.memory_space<vmem>>, vector<32x32xf32>,
    %c224 = arith.constant 224 : index
    %c224_30 = arith.constant 224 : index
    %20 = vector.load %arg20[%c224, %c224_30] : memref<256x256xf32, #tpu.memory_space<vmem>>, vector<32x32xf32>
    tpu.vector_store %arg20[%c224, %c224_30], %4 {strides = array<i32>} : memref<256x256xf32, #tpu.memory_space<vmem>>, vector<32x32xf32>,
    %c224_31 = arith.constant 224 : index
    %c224_32 = arith.constant 224 : index
    %21 = vector.load %arg21[%c224_31, %c224_32] : memref<256x256xf32, #tpu.memory_space<vmem>>, vector<32x32xf32>
    tpu.vector_store %arg21[%c224_31, %c224_32], %5 {strides = array<i32>} : memref<256x256xf32, #tpu.memory_space<vmem>>, vector<32x32xf32>,
    %c0_33 = arith.constant 0 : index
    %c0_34 = arith.constant 0 : index
    %22 = vector.load %arg1[%c0_33, %c0_34] : memref<128x32xf32, #tpu.memory_space<vmem>>, vector<128x32xf32>
    %c0_35 = arith.constant 0 : index
    %c0_36 = arith.constant 0 : index
    %23 = vector.load %arg3[%c0_35, %c0_36] : memref<128x128xf32, #tpu.memory_space<vmem>>, vector<128x128xf32>
    %24 = arith.mulf %22, %22 : vector<128x32xf32>
    %cst_37 = arith.constant dense<0.000000e+00> : vector<128x32xf32>
    %25 = tpu.matmul %23, %24, %cst_37 {dimension_numbers = #tpu.dot_dimension_numbers<[1], [0], [0], [1], [0, 0, 1, 1], [], []>} : vector<128x128xf32>, vector<128x32xf32>, vector<128x32xf32> -> vector<128x32xf32>
    %cst_38 = arith.constant dense<0.000000e+00> : vector<128xf32>
    %26 = vector.multi_reduction <add>, %25, %cst_38 [1] : vector<128x32xf32> to vector<128xf32>
    %27 = vector.shape_cast %26 : vector<128xf32> to vector<128x1xf32>
    %cst_39 = arith.constant 9.99999974E-6 : f32
    %28 = vector.broadcast %cst_39 : f32 to vector<128x1xf32>
    %29 = arith.addf %27, %28 : vector<128x1xf32>
    %30 = math.rsqrt %29 : vector<128x1xf32>
    %31 = vector.broadcast %30 : vector<128x1xf32> to vector<128x32xf32>
    %32 = arith.mulf %22, %31 : vector<128x32xf32>
    %c0_40 = arith.constant 0 : index
    %c0_41 = arith.constant 0 : index
    %33 = vector.load %arg2[%c0_40, %c0_41] : memref<128x32xf32, #tpu.memory_space<vmem>>, vector<128x32xf32>
    %34 = arith.mulf %32, %33 : vector<128x32xf32>
    %c0_42 = arith.constant 0 : index
    %c0_43 = arith.constant 0 : index
    %35 = vector.load %arg4[%c0_42, %c0_43] : memref<32x32xf32, #tpu.memory_space<vmem>>, vector<32x32xf32>
    %cst_44 = arith.constant dense<0.000000e+00> : vector<128x32xf32>
    %36 = tpu.matmul %34, %35, %cst_44 {dimension_numbers = #tpu.dot_dimension_numbers<[1], [0], [0], [1], [0, 0, 1, 1], [], []>} : vector<128x32xf32>, vector<32x32xf32>, vector<128x32xf32> -> vector<128x32xf32>
    %37 = arith.truncf %36 : vector<128x32xf32> to vector<128x32xbf16>
    %c0_45 = arith.constant 0 : index
    %c0_46 = arith.constant 0 : index
    %38 = vector.load %arg5[%c0_45, %c0_46] : memref<32x32xf32, #tpu.memory_space<vmem>>, vector<32x32xf32>
    %cst_47 = arith.constant dense<0.000000e+00> : vector<128x32xf32>
    %39 = tpu.matmul %34, %38, %cst_47 {dimension_numbers = #tpu.dot_dimension_numbers<[1], [0], [0], [1], [0, 0, 1, 1], [], []>} : vector<128x32xf32>, vector<32x32xf32>, vector<128x32xf32> -> vector<128x32xf32>
    %40 = arith.truncf %39 : vector<128x32xf32> to vector<128x32xbf16>
    %c0_48 = arith.constant 0 : index
    %c0_49 = arith.constant 0 : index
    %41 = vector.load %arg6[%c0_48, %c0_49] : memref<256x128xbf16, #tpu.memory_space<vmem>>, vector<256x128xbf16>
    %cst_50 = arith.constant dense<0.000000e+00> : vector<256x32xf32>
    %42 = tpu.matmul %41, %37, %cst_50 {dimension_numbers = #tpu.dot_dimension_numbers<[1], [0], [0], [1], [0, 0, 1, 1], [], []>} : vector<256x128xbf16>, vector<128x32xbf16>, vector<256x32xf32> -> vector<256x32xf32>
    %c0_51 = arith.constant 0 : index
    %c0_52 = arith.constant 0 : index
    %43 = vector.load %arg7[%c0_51, %c0_52] : memref<256x128xbf16, #tpu.memory_space<vmem>>, vector<256x128xbf16>
    %cst_53 = arith.constant dense<0.000000e+00> : vector<256x32xf32>
    %44 = tpu.matmul %43, %40, %cst_53 {dimension_numbers = #tpu.dot_dimension_numbers<[1], [0], [0], [1], [0, 0, 1, 1], [], []>} : vector<256x128xbf16>, vector<128x32xbf16>, vector<256x32xf32> -> vector<256x32xf32>
    %c0_54 = arith.constant 0 : index
    %c0_55 = arith.constant 0 : index
    %45 = vector.load %arg8[%c0_54, %c0_55] : memref<256x32xf32, #tpu.memory_space<vmem>>, vector<256x32xf32>
    %46 = arith.mulf %42, %45 : vector<256x32xf32>
    %c0_56 = arith.constant 0 : index
    %c0_57 = arith.constant 0 : index
    %47 = vector.load %arg9[%c0_56, %c0_57] : memref<256x32xf32, #tpu.memory_space<vmem>>, vector<256x32xf32>
    %48 = arith.mulf %44, %47 : vector<256x32xf32>
    %49 = arith.addf %46, %48 : vector<256x32xf32>
    %50 = arith.truncf %49 : vector<256x32xf32> to vector<256x32xbf16>
    %c0_58 = arith.constant 0 : index
    %c0_59 = arith.constant 0 : index
    %51 = vector.load %arg10[%c0_58, %c0_59] : memref<128x256xbf16, #tpu.memory_space<vmem>>, vector<128x256xbf16>
    %cst_60 = arith.constant dense<0.000000e+00> : vector<128x32xf32>
    %52 = tpu.matmul %51, %50, %cst_60 {dimension_numbers = #tpu.dot_dimension_numbers<[1], [0], [0], [1], [0, 0, 1, 1], [], []>} : vector<128x256xbf16>, vector<256x32xbf16>, vector<128x32xf32> -> vector<128x32xf32>
    %c0_61 = arith.constant 0 : index
    %c0_62 = arith.constant 0 : index
    %53 = vector.load %arg11[%c0_61, %c0_62] : memref<32x32xf32, #tpu.memory_space<vmem>>, vector<32x32xf32>
    %cst_63 = arith.constant dense<0.000000e+00> : vector<128x32xf32>
    %54 = tpu.matmul %34, %53, %cst_63 {dimension_numbers = #tpu.dot_dimension_numbers<[1], [0], [0], [1], [0, 0, 1, 1], [], []>} : vector<128x32xf32>, vector<32x32xf32>, vector<128x32xf32> -> vector<128x32xf32>
    %c0_64 = arith.constant 0 : index
    %c0_65 = arith.constant 0 : index
    %55 = vector.load %arg12[%c0_64, %c0_65] : memref<32x32xf32, #tpu.memory_space<vmem>>, vector<32x32xf32>
    %cst_66 = arith.constant dense<0.000000e+00> : vector<128x32xf32>
    %56 = tpu.matmul %52, %55, %cst_66 {dimension_numbers = #tpu.dot_dimension_numbers<[1], [0], [0], [1], [0, 0, 1, 1], [], []>} : vector<128x32xf32>, vector<32x32xf32>, vector<128x32xf32> -> vector<128x32xf32>
    %57 = arith.addf %54, %56 : vector<128x32xf32>
    %58 = vector.extract_strided_slice %57 {offsets = [0, 0], sizes = [16, 32], strides = [1, 1]} : vector<128x32xf32> to vector<16x32xf32>
    %c0_67 = arith.constant 0 : index
    %c0_68 = arith.constant 0 : index
    %59 = vector.load %arg19[%c0_67, %c0_68] : memref<16x256xf32, #tpu.memory_space<vmem>>, vector<16x32xf32>
    tpu.vector_store %arg19[%c0_67, %c0_68], %58 {strides = array<i32>} : memref<16x256xf32, #tpu.memory_space<vmem>>, vector<16x32xf32>,
    %60 = vector.extract_strided_slice %57 {offsets = [16, 0], sizes = [16, 32], strides = [1, 1]} : vector<128x32xf32> to vector<16x32xf32>
    %c0_69 = arith.constant 0 : index
    %c32_70 = arith.constant 32 : index
    %61 = vector.load %arg19[%c0_69, %c32_70] : memref<16x256xf32, #tpu.memory_space<vmem>>, vector<16x32xf32>
    tpu.vector_store %arg19[%c0_69, %c32_70], %60 {strides = array<i32>} : memref<16x256xf32, #tpu.memory_space<vmem>>, vector<16x32xf32>,
    %62 = vector.extract_strided_slice %57 {offsets = [32, 0], sizes = [16, 32], strides = [1, 1]} : vector<128x32xf32> to vector<16x32xf32>
    %c0_71 = arith.constant 0 : index
    %c64_72 = arith.constant 64 : index
    %63 = vector.load %arg19[%c0_71, %c64_72] : memref<16x256xf32, #tpu.memory_space<vmem>>, vector<16x32xf32>
    tpu.vector_store %arg19[%c0_71, %c64_72], %62 {strides = array<i32>} : memref<16x256xf32, #tpu.memory_space<vmem>>, vector<16x32xf32>,
    %64 = vector.extract_strided_slice %57 {offsets = [48, 0], sizes = [16, 32], strides = [1, 1]} : vector<128x32xf32> to vector<16x32xf32>
    %c0_73 = arith.constant 0 : index
    %c96_74 = arith.constant 96 : index
    %65 = vector.load %arg19[%c0_73, %c96_74] : memref<16x256xf32, #tpu.memory_space<vmem>>, vector<16x32xf32>
    tpu.vector_store %arg19[%c0_73, %c96_74], %64 {strides = array<i32>} : memref<16x256xf32, #tpu.memory_space<vmem>>, vector<16x32xf32>,
    %66 = vector.extract_strided_slice %57 {offsets = [64, 0], sizes = [16, 32], strides = [1, 1]} : vector<128x32xf32> to vector<16x32xf32>
    %c0_75 = arith.constant 0 : index
    %c128_76 = arith.constant 128 : index
    %67 = vector.load %arg19[%c0_75, %c128_76] : memref<16x256xf32, #tpu.memory_space<vmem>>, vector<16x32xf32>
    tpu.vector_store %arg19[%c0_75, %c128_76], %66 {strides = array<i32>} : memref<16x256xf32, #tpu.memory_space<vmem>>, vector<16x32xf32>,
    %68 = vector.extract_strided_slice %57 {offsets = [80, 0], sizes = [16, 32], strides = [1, 1]} : vector<128x32xf32> to vector<16x32xf32>
    %c0_77 = arith.constant 0 : index
    %c160_78 = arith.constant 160 : index
    %69 = vector.load %arg19[%c0_77, %c160_78] : memref<16x256xf32, #tpu.memory_space<vmem>>, vector<16x32xf32>
    tpu.vector_store %arg19[%c0_77, %c160_78], %68 {strides = array<i32>} : memref<16x256xf32, #tpu.memory_space<vmem>>, vector<16x32xf32>,
    %70 = vector.extract_strided_slice %57 {offsets = [96, 0], sizes = [16, 32], strides = [1, 1]} : vector<128x32xf32> to vector<16x32xf32>
    %c0_79 = arith.constant 0 : index
    %c192_80 = arith.constant 192 : index
    %71 = vector.load %arg19[%c0_79, %c192_80] : memref<16x256xf32, #tpu.memory_space<vmem>>, vector<16x32xf32>
    tpu.vector_store %arg19[%c0_79, %c192_80], %70 {strides = array<i32>} : memref<16x256xf32, #tpu.memory_space<vmem>>, vector<16x32xf32>,
    %72 = vector.extract_strided_slice %57 {offsets = [112, 0], sizes = [16, 32], strides = [1, 1]} : vector<128x32xf32> to vector<16x32xf32>
    %c0_81 = arith.constant 0 : index
    %c224_82 = arith.constant 224 : index
    %73 = vector.load %arg19[%c0_81, %c224_82] : memref<16x256xf32, #tpu.memory_space<vmem>>, vector<16x32xf32>
    tpu.vector_store %arg19[%c0_81, %c224_82], %72 {strides = array<i32>} : memref<16x256xf32, #tpu.memory_space<vmem>>, vector<16x32xf32>,
    %c0_83 = arith.constant 0 : index
    %c0_84 = arith.constant 0 : index
    %74 = vector.load %arg19[%c0_83, %c0_84] : memref<16x256xf32, #tpu.memory_space<vmem>>, vector<16x256xf32>
    %75 = arith.truncf %74 : vector<16x256xf32> to vector<16x256xbf16>
    %c0_85 = arith.constant 0 : index
    %c0_86 = arith.constant 0 : index
    %76 = vector.load %arg13[%c0_85, %c0_86] : memref<128x16xbf16, #tpu.memory_space<vmem>>, vector<128x16xbf16>
    %cst_87 = arith.constant dense<0.000000e+00> : vector<128x256xf32>
    %77 = tpu.matmul %76, %75, %cst_87 {dimension_numbers = #tpu.dot_dimension_numbers<[1], [0], [0], [1], [0, 0, 1, 1], [], []>} : vector<128x16xbf16>, vector<16x256xbf16>, vector<128x256xf32> -> vector<128x256xf32>
    %78 = arith.negf %77 : vector<128x256xf32>
    %79 = math.exp %78 : vector<128x256xf32>
    %cst_88 = arith.constant 1.000000e+00 : f32
    %80 = vector.broadcast %cst_88 : f32 to vector<128x256xf32>
    %81 = arith.addf %80, %79 : vector<128x256xf32>
    %82 = arith.divf %80, %81 : vector<128x256xf32>
    %83 = arith.mulf %77, %82 : vector<128x256xf32>
    %84 = arith.truncf %83 : vector<128x256xf32> to vector<128x256xbf16>
    %c0_89 = arith.constant 0 : index
    %c0_90 = arith.constant 0 : index
    %85 = vector.load %arg20[%c0_89, %c0_90] : memref<256x256xf32, #tpu.memory_space<vmem>>, vector<256x256xf32>
    %86 = arith.truncf %85 : vector<256x256xf32> to vector<256x256xbf16>
    %cst_91 = arith.constant dense<0.000000e+00> : vector<128x256xf32>
    %87 = tpu.matmul %84, %86, %cst_91 {dimension_numbers = #tpu.dot_dimension_numbers<[1], [0], [0], [1], [0, 0, 1, 1], [], []>} : vector<128x256xbf16>, vector<256x256xbf16>, vector<128x256xf32> -> vector<128x256xf32>
    %88 = arith.negf %87 : vector<128x256xf32>
    %89 = math.exp %88 : vector<128x256xf32>
    %cst_92 = arith.constant 1.000000e+00 : f32
    %90 = vector.broadcast %cst_92 : f32 to vector<128x256xf32>
    %91 = arith.addf %90, %89 : vector<128x256xf32>
    %92 = arith.divf %90, %91 : vector<128x256xf32>
    %93 = arith.mulf %87, %92 : vector<128x256xf32>
    %c0_93 = arith.constant 0 : index
    %c0_94 = arith.constant 0 : index
    %94 = vector.load %arg14[%c0_93, %c0_94] : memref<16x128xbf16, #tpu.memory_space<vmem>>, vector<16x128xbf16>
    %95 = arith.truncf %93 : vector<128x256xf32> to vector<128x256xbf16>
    %cst_95 = arith.constant dense<0.000000e+00> : vector<16x256xf32>
    %96 = tpu.matmul %94, %95, %cst_95 {dimension_numbers = #tpu.dot_dimension_numbers<[1], [0], [0], [1], [0, 0, 1, 1], [], []>} : vector<16x128xbf16>, vector<128x256xbf16>, vector<16x256xf32> -> vector<16x256xf32>
    %97 = arith.truncf %96 : vector<16x256xf32> to vector<16x256xbf16>
    %c0_96 = arith.constant 0 : index
    %c0_97 = arith.constant 0 : index
    %98 = vector.load %arg21[%c0_96, %c0_97] : memref<256x256xf32, #tpu.memory_space<vmem>>, vector<256x256xf32>
    %99 = arith.truncf %98 : vector<256x256xf32> to vector<256x256xbf16>
    %cst_98 = arith.constant dense<0.000000e+00> : vector<16x256xf32>
    %100 = tpu.matmul %97, %99, %cst_98 {dimension_numbers = #tpu.dot_dimension_numbers<[1], [0], [0], [1], [0, 0, 1, 1], [], []>} : vector<16x256xbf16>, vector<256x256xbf16>, vector<16x256xf32> -> vector<16x256xf32>
    %c0_99 = arith.constant 0 : index
    %c0_100 = arith.constant 0 : index
    %101 = vector.load %arg17[%c0_99, %c0_100] : memref<16x256xf32, #tpu.memory_space<vmem>>, vector<16x256xf32>
    %102 = arith.addf %100, %101 : vector<16x256xf32>
    %c0_101 = arith.constant 0 : index
    %c0_102 = arith.constant 0 : index
    %103 = vector.load %arg18[%c0_101, %c0_102] : memref<16x256xf32, #tpu.memory_space<vmem>>, vector<16x256xf32>
    tpu.vector_store %arg18[%c0_101, %c0_102], %102 {strides = array<i32>} : memref<16x256xf32, #tpu.memory_space<vmem>>, vector<16x256xf32>,
    return
  }
  func.func @transform_0(%arg0: i32) -> (i32, i32) {
    %c0_i32 = arith.constant 0 : i32
    %c0_i32_0 = arith.constant 0 : i32
    %c0_i32_1 = arith.constant 0 : i32
    return %c0_i32, %c0_i32_0 : i32, i32
  }
  func.func @transform_1(%arg0: i32) -> (i32, i32) {
    %c0_i32 = arith.constant 0 : i32
    %c0_i32_0 = arith.constant 0 : i32
    %c0_i32_1 = arith.constant 0 : i32
    return %c0_i32, %c0_i32_0 : i32, i32
  }
  func.func @transform_2(%arg0: i32) -> (i32, i32) {
    %c0_i32 = arith.constant 0 : i32
    %c0_i32_0 = arith.constant 0 : i32
    %c0_i32_1 = arith.constant 0 : i32
    return %c0_i32, %c0_i32_0 : i32, i32
  }
  func.func @transform_3(%arg0: i32) -> (i32, i32) {
    %c0_i32 = arith.constant 0 : i32
    %c0_i32_0 = arith.constant 0 : i32
    %c0_i32_1 = arith.constant 0 : i32
    return %c0_i32, %c0_i32_0 : i32, i32
  }
  func.func @transform_4(%arg0: i32) -> (i32, i32) {
    %c0_i32 = arith.constant 0 : i32
    %c0_i32_0 = arith.constant 0 : i32
    %c0_i32_1 = arith.constant 0 : i32
    return %c0_i32, %c0_i32_0 : i32, i32
  }
  func.func @transform_5(%arg0: i32) -> (i32, i32) {
    %c0_i32 = arith.constant 0 : i32
    %c0_i32_0 = arith.constant 0 : i32
    %c0_i32_1 = arith.constant 0 : i32
    return %c0_i32, %c0_i32_0 : i32, i32
  }
  func.func @transform_6(%arg0: i32) -> (i32, i32) {
    %c0_i32 = arith.constant 0 : i32
    %c0_i32_0 = arith.constant 0 : i32
    %c0_i32_1 = arith.constant 0 : i32
    return %c0_i32, %c0_i32_0 : i32, i32
  }
  func.func @transform_7(%arg0: i32) -> (i32, i32) {
    %c0_i32 = arith.constant 0 : i32
    %c0_i32_0 = arith.constant 0 : i32
    %c0_i32_1 = arith.constant 0 : i32
    return %c0_i32, %c0_i32_0 : i32, i32
  }
  func.func @transform_8(%arg0: i32) -> (i32, i32) {
    %c0_i32 = arith.constant 0 : i32
    %c0_i32_0 = arith.constant 0 : i32
    %c0_i32_1 = arith.constant 0 : i32
    return %c0_i32, %c0_i32_0 : i32, i32
  }
  func.func @transform_9(%arg0: i32) -> (i32, i32) {
    %c0_i32 = arith.constant 0 : i32
    %c0_i32_0 = arith.constant 0 : i32
    %c0_i32_1 = arith.constant 0 : i32
    return %c0_i32, %c0_i32_0 : i32, i32
  }
  func.func @transform_10(%arg0: i32) -> (i32, i32) {
    %c0_i32 = arith.constant 0 : i32
    %c0_i32_0 = arith.constant 0 : i32
    %c0_i32_1 = arith.constant 0 : i32
    return %c0_i32, %c0_i32_0 : i32, i32
  }
  func.func @transform_11(%arg0: i32) -> (i32, i32) {
    %c0_i32 = arith.constant 0 : i32
    %c0_i32_0 = arith.constant 0 : i32
    %c0_i32_1 = arith.constant 0 : i32
    return %c0_i32, %c0_i32_0 : i32, i32
  }
  func.func @transform_12(%arg0: i32) -> (i32, i32) {
    %c0_i32 = arith.constant 0 : i32
    %c0_i32_0 = arith.constant 0 : i32
    %c0_i32_1 = arith.constant 0 : i32
    return %c0_i32, %c0_i32_0 : i32, i32
  }
  func.func @transform_13(%arg0: i32) -> (i32, i32) {
    %c0_i32 = arith.constant 0 : i32
    %c0_i32_0 = arith.constant 0 : i32
    %c0_i32_1 = arith.constant 0 : i32
    return %c0_i32, %c0_i32_0 : i32, i32
  }
  func.func @transform_14(%arg0: i32) -> (i32, i32) {
    %c0_i32 = arith.constant 0 : i32
    %c0_i32_0 = arith.constant 0 : i32
    %c0_i32_1 = arith.constant 0 : i32
    return %c0_i32, %c0_i32_0 : i32, i32
  }
  func.func @transform_15(%arg0: i32) -> (i32, i32) {
    %c0_i32 = arith.constant 0 : i32
    %c0_i32_0 = arith.constant 0 : i32
    %c0_i32_1 = arith.constant 0 : i32
    return %c0_i32, %c0_i32_0 : i32, i32
  }
  func.func @transform_16(%arg0: i32) -> (i32, i32) {
    %c0_i32 = arith.constant 0 : i32
    %c0_i32_0 = arith.constant 0 : i32
    %c0_i32_1 = arith.constant 0 : i32
    return %c0_i32, %c0_i32_0 : i32, i32
  }
  func.func @transform_17(%arg0: i32) -> (i32, i32) {
    %c0_i32 = arith.constant 0 : i32
    %c0_i32_0 = arith.constant 0 : i32
    %c0_i32_1 = arith.constant 0 : i32
    return %c0_i32, %c0_i32_0 : i32, i32
  }
}

</mosaic_0001>

<llo_original>
// kernel: pairnet_layer_forward.1
$region0: #{pairnet_layer_forward.1}
  #allocation0 [shape = 'u32[]', space=smem, size = 0x4, offset = 0x4, fixed_abs, tag = 'smem constant byte address 0x4 - core index']
  #allocation1 [shape = 'u32[144,128]{1,0:T(1,128)}', space=vmem, size = 0x12000, scoped, tag = 'internal scratch']
  #allocation2 [shape = 'f32[16,256]{1,0:T(8,128)}', space=vmem, size = 0x4000, scoped, tag = 'scratch operand']
  #allocation3 [shape = 'f32[256,256]{1,0:T(8,128)}', space=vmem, size = 0x40000, scoped, tag = 'scratch operand']
  #allocation4 [shape = 'f32[256,256]{1,0:T(8,128)}', space=vmem, size = 0x40000, scoped, tag = 'scratch operand']
  %s0 = inlined_call_operand.vmem [shape: f32[128,32], index: 0, kind: input, shape index: {}]
  %s1 = inlined_call_operand.vmem [shape: f32[128,32], index: 1, kind: input, shape index: {}]
  %s2 = inlined_call_operand.vmem [shape: f32[128,128], index: 2, kind: input, shape index: {}]
  %s3 = inlined_call_operand.vmem [shape: f32[32,32], index: 3, kind: input, shape index: {}]
  %s4 = inlined_call_operand.vmem [shape: f32[32,32], index: 4, kind: input, shape index: {}]
  %s5 = inlined_call_operand.vmem [shape: bf16[256,128], index: 5, kind: input, shape index: {}]
  %s6 = inlined_call_operand.vmem [shape: bf16[256,128], index: 6, kind: input, shape index: {}]
  %s7 = inlined_call_operand.vmem [shape: f32[256,32], index: 7, kind: input, shape index: {}]
  %s8 = inlined_call_operand.vmem [shape: f32[256,32], index: 8, kind: input, shape index: {}]
  %s9 = inlined_call_operand.vmem [shape: bf16[128,256], index: 9, kind: input, shape index: {}]
  %s10 = inlined_call_operand.vmem [shape: f32[32,32], index: 10, kind: input, shape index: {}]
  %s11 = inlined_call_operand.vmem [shape: f32[32,32], index: 11, kind: input, shape index: {}]
  %s12 = inlined_call_operand.vmem [shape: bf16[128,16], index: 12, kind: input, shape index: {}]
  %s13 = inlined_call_operand.vmem [shape: bf16[16,128], index: 13, kind: input, shape index: {}]
  %s14 = inlined_call_operand.vmem [shape: f32[32,32], index: 14, kind: input, shape index: {}]
  %s15 = inlined_call_operand.vmem [shape: f32[32,32], index: 15, kind: input, shape index: {}]
  %s16 = inlined_call_operand.vmem [shape: f32[16,256], index: 16, kind: input, shape index: {}]
  %s17 = inlined_call_operand.vmem [shape: f32[16,256], index: 17, kind: output, shape index: {}]
  %s18 = sld [smem:[#allocation0]]
  $region78: #{pairnet_layer_forward.1} parent=0
    _
  %s20 = ssub.s32 1, %s18
  %s21 = scalar_select 0, %s20, %s18
  // Predicated region
  $region2: #{pairnet_layer_forward.1} parent=0 // pred_check
    _
  $region3: #{pairnet_layer_forward.1} parent=0 // pred_check_branch
    %23 = sbr.rel (0) target = $region5
  $region4: #{pairnet_layer_forward.1} parent=0 // pred_region
    _
  $region5: #{pairnet_layer_forward.1} parent=0 // pred_fallthru
    _
  // Predicated region
  $region6: #{pairnet_layer_forward.1} parent=0 // pred_check
    _
  $region7: #{pairnet_layer_forward.1} parent=0 // pred_check_branch
    %25 = sbr.rel (0) target = $region9
  $region8: #{pairnet_layer_forward.1} parent=0 // pred_region
    _
  $region9: #{pairnet_layer_forward.1} parent=0 // pred_fallthru
    _
  // Predicated region
  $region10: #{pairnet_layer_forward.1} parent=0 // pred_check
    _
  $region11: #{pairnet_layer_forward.1} parent=0 // pred_check_branch
    %27 = sbr.rel (0) target = $region13
  $region12: #{pairnet_layer_forward.1} parent=0 // pred_region
    _
  $region13: #{pairnet_layer_forward.1} parent=0 // pred_fallthru
    _
  // Predicated region
  $region14: #{pairnet_layer_forward.1} parent=0 // pred_check
    _
  $region15: #{pairnet_layer_forward.1} parent=0 // pred_check_branch
    %29 = sbr.rel (0) target = $region17
  $region16: #{pairnet_layer_forward.1} parent=0 // pred_region
    _
  $region17: #{pairnet_layer_forward.1} parent=0 // pred_fallthru
    _
  // Predicated region
  $region18: #{pairnet_layer_forward.1} parent=0 // pred_check
    _
  $region19: #{pairnet_layer_forward.1} parent=0 // pred_check_branch
    %31 = sbr.rel (0) target = $region21
  $region20: #{pairnet_layer_forward.1} parent=0 // pred_region
    _
  $region21: #{pairnet_layer_forward.1} parent=0 // pred_fallthru
    _
  // Predicated region
  $region22: #{pairnet_layer_forward.1} parent=0 // pred_check
    _
  $region23: #{pairnet_layer_forward.1} parent=0 // pred_check_branch
    %33 = sbr.rel (0) target = $region25
  $region24: #{pairnet_layer_forward.1} parent=0 // pred_region
    _
  $region25: #{pairnet_layer_forward.1} parent=0 // pred_fallthru
    _
  // Predicated region
  $region26: #{pairnet_layer_forward.1} parent=0 // pred_check
    _
  $region27: #{pairnet_layer_forward.1} parent=0 // pred_check_branch
    %35 = sbr.rel (0) target = $region29
  $region28: #{pairnet_layer_forward.1} parent=0 // pred_region
    _
  $region29: #{pairnet_layer_forward.1} parent=0 // pred_fallthru
    _
  // Predicated region
  $region30: #{pairnet_layer_forward.1} parent=0 // pred_check
    _
  $region31: #{pairnet_layer_forward.1} parent=0 // pred_check_branch
    %37 = sbr.rel (0) target = $region33
  $region32: #{pairnet_layer_forward.1} parent=0 // pred_region
    _
  $region33: #{pairnet_layer_forward.1} parent=0 // pred_fallthru
    _
  // Predicated region
  $region34: #{pairnet_layer_forward.1} parent=0 // pred_check
    _
  $region35: #{pairnet_layer_forward.1} parent=0 // pred_check_branch
    %39 = sbr.rel (0) target = $region37
  $region36: #{pairnet_layer_forward.1} parent=0 // pred_region
    _
  $region37: #{pairnet_layer_forward.1} parent=0 // pred_fallthru
    _
  // Predicated region
  $region38: #{pairnet_layer_forward.1} parent=0 // pred_check
    _
  $region39: #{pairnet_layer_forward.1} parent=0 // pred_check_branch
    %41 = sbr.rel (0) target = $region41
  $region40: #{pairnet_layer_forward.1} parent=0 // pred_region
    _
  $region41: #{pairnet_layer_forward.1} parent=0 // pred_fallthru
    _
  // Predicated region
  $region42: #{pairnet_layer_forward.1} parent=0 // pred_check
    _
  $region43: #{pairnet_layer_forward.1} parent=0 // pred_check_branch
    %43 = sbr.rel (0) target = $region45
  $region44: #{pairnet_layer_forward.1} parent=0 // pred_region
    _
  $region45: #{pairnet_layer_forward.1} parent=0 // pred_fallthru
    _
  // Predicated region
  $region46: #{pairnet_layer_forward.1} parent=0 // pred_check
    _
  $region47: #{pairnet_layer_forward.1} parent=0 // pred_check_branch
    %45 = sbr.rel (0) target = $region49
  $region48: #{pairnet_layer_forward.1} parent=0 // pred_region
    _
  $region49: #{pairnet_layer_forward.1} parent=0 // pred_fallthru
    _
  // Predicated region
  $region50: #{pairnet_layer_forward.1} parent=0 // pred_check
    _
  $region51: #{pairnet_layer_forward.1} parent=0 // pred_check_branch
    %47 = sbr.rel (0) target = $region53
  $region52: #{pairnet_layer_forward.1} parent=0 // pred_region
    _
  $region53: #{pairnet_layer_forward.1} parent=0 // pred_fallthru
    _
  // Predicated region
  $region54: #{pairnet_layer_forward.1} parent=0 // pred_check
    _
  $region55: #{pairnet_layer_forward.1} parent=0 // pred_check_branch
    %49 = sbr.rel (0) target = $region57
  $region56: #{pairnet_layer_forward.1} parent=0 // pred_region
    _
  $region57: #{pairnet_layer_forward.1} parent=0 // pred_fallthru
    _
  // Predicated region
  $region58: #{pairnet_layer_forward.1} parent=0 // pred_check
    _
  $region59: #{pairnet_layer_forward.1} parent=0 // pred_check_branch
    %51 = sbr.rel (0) target = $region61
  $region60: #{pairnet_layer_forward.1} parent=0 // pred_region
    _
  $region61: #{pairnet_layer_forward.1} parent=0 // pred_fallthru
    _
  // Predicated region
  $region62: #{pairnet_layer_forward.1} parent=0 // pred_check
    _
  $region63: #{pairnet_layer_forward.1} parent=0 // pred_check_branch
    %53 = sbr.rel (0) target = $region65
  $region64: #{pairnet_layer_forward.1} parent=0 // pred_region
    _
  $region65: #{pairnet_layer_forward.1} parent=0 // pred_fallthru
    _
  // Predicated region
  $region66: #{pairnet_layer_forward.1} parent=0 // pred_check
    _
  $region67: #{pairnet_layer_forward.1} parent=0 // pred_check_branch
    %55 = sbr.rel (0) target = $region69
  $region68: #{pairnet_layer_forward.1} parent=0 // pred_region
    _
  $region69: #{pairnet_layer_forward.1} parent=0 // pred_fallthru
    _
  %57 = vst [vmem:[#allocation3] sm:$0xff] 0.0
  %58 = vst [vmem:[#allocation3 + $0x8] sm:$0xff] 0.0
  %59 = vst [vmem:[#allocation3 + $0x10] sm:$0xff] 0.0
  %60 = vst [vmem:[#allocation3 + $0x18] sm:$0xff] 0.0
  %61 = vst [vmem:[#allocation3 + $0x20] sm:$0xff] 0.0
  %62 = vst [vmem:[#allocation3 + $0x28] sm:$0xff] 0.0
  %63 = vst [vmem:[#allocation3 + $0x30] sm:$0xff] 0.0
  %64 = vst [vmem:[#allocation3 + $0x38] sm:$0xff] 0.0
  %65 = vst [vmem:[#allocation3 + $0x40] sm:$0xff] 0.0
  %66 = vst [vmem:[#allocation3 + $0x48] sm:$0xff] 0.0
  %67 = vst [vmem:[#allocation3 + $0x50] sm:$0xff] 0.0
  %68 = vst [vmem:[#allocation3 + $0x58] sm:$0xff] 0.0
  %69 = vst [vmem:[#allocation3 + $0x60] sm:$0xff] 0.0
  %70 = vst [vmem:[#allocation3 + $0x68] sm:$0xff] 0.0
  %71 = vst [vmem:[#allocation3 + $0x70] sm:$0xff] 0.0
  %72 = vst [vmem:[#allocation3 + $0x78] sm:$0xff] 0.0
  %73 = vst [vmem:[#allocation3 + $0x80] sm:$0xff] 0.0
  %74 = vst [vmem:[#allocation3 + $0x88] sm:$0xff] 0.0
  %75 = vst [vmem:[#allocation3 + $0x90] sm:$0xff] 0.0
  %76 = vst [vmem:[#allocation3 + $0x98] sm:$0xff] 0.0
  %77 = vst [vmem:[#allocation3 + $0xa0] sm:$0xff] 0.0
  %78 = vst [vmem:[#allocation3 + $0xa8] sm:$0xff] 0.0
  %79 = vst [vmem:[#allocation3 + $0xb0] sm:$0xff] 0.0
  %80 = vst [vmem:[#allocation3 + $0xb8] sm:$0xff] 0.0
  %81 = vst [vmem:[#allocation3 + $0xc0] sm:$0xff] 0.0
  %82 = vst [vmem:[#allocation3 + $0xc8] sm:$0xff] 0.0
  %83 = vst [vmem:[#allocation3 + $0xd0] sm:$0xff] 0.0
  %84 = vst [vmem:[#allocation3 + $0xd8] sm:$0xff] 0.0
  %85 = vst [vmem:[#allocation3 + $0xe0] sm:$0xff] 0.0
  %86 = vst [vmem:[#allocation3 + $0xe8] sm:$0xff] 0.0
  %87 = vst [vmem:[#allocation3 + $0xf0] sm:$0xff] 0.0
  %88 = vst [vmem:[#allocation3 + $0xf8] sm:$0xff] 0.0
  %89 = vst [vmem:[#allocation3 + $0x100] sm:$0xff] 0.0
  %90 = vst [vmem:[#allocation3 + $0x108] sm:$0xff] 0.0
  %91 = vst [vmem:[#allocation3 + $0x110] sm:$0xff] 0.0
  %92 = vst [vmem:[#allocation3 + $0x118] sm:$0xff] 0.0
  %93 = vst [vmem:[#allocation3 + $0x120] sm:$0xff] 0.0
  %94 = vst [vmem:[#allocation3 + $0x128] sm:$0xff] 0.0
  %95 = vst [vmem:[#allocation3 + $0x130] sm:$0xff] 0.0
  %96 = vst [vmem:[#allocation3 + $0x138] sm:$0xff] 0.0
  %97 = vst [vmem:[#allocation3 + $0x140] sm:$0xff] 0.0
  %98 = vst [vmem:[#allocation3 + $0x148] sm:$0xff] 0.0
  %99 = vst [vmem:[#allocation3 + $0x150] sm:$0xff] 0.0
  %100 = vst [vmem:[#allocation3 + $0x158] sm:$0xff] 0.0
  %101 = vst [vmem:[#allocation3 + $0x160] sm:$0xff] 0.0
  %102 = vst [vmem:[#allocation3 + $0x168] sm:$0xff] 0.0
  %103 = vst [vmem:[#allocation3 + $0x170] sm:$0xff] 0.0
  %104 = vst [vmem:[#allocation3 + $0x178] sm:$0xff] 0.0
  %105 = vst [vmem:[#allocation3 + $0x180] sm:$0xff] 0.0
  %106 = vst [vmem:[#allocation3 + $0x188] sm:$0xff] 0.0
  %107 = vst [vmem:[#allocation3 + $0x190] sm:$0xff] 0.0
  %108 = vst [vmem:[#allocation3 + $0x198] sm:$0xff] 0.0
  %109 = vst [vmem:[#allocation3 + $0x1a0] sm:$0xff] 0.0
  %110 = vst [vmem:[#allocation3 + $0x1a8] sm:$0xff] 0.0
  %111 = vst [vmem:[#allocation3 + $0x1b0] sm:$0xff] 0.0
  %112 = vst [vmem:[#allocation3 + $0x1b8] sm:$0xff] 0.0
  %113 = vst [vmem:[#allocation3 + $0x1c0] sm:$0xff] 0.0
  %114 = vst [vmem:[#allocation3 + $0x1c8] sm:$0xff] 0.0
  %115 = vst [vmem:[#allocation3 + $0x1d0] sm:$0xff] 0.0
  %116 = vst [vmem:[#allocation3 + $0x1d8] sm:$0xff] 0.0
  %117 = vst [vmem:[#allocation3 + $0x1e0] sm:$0xff] 0.0
  %118 = vst [vmem:[#allocation3 + $0x1e8] sm:$0xff] 0.0
  %119 = vst [vmem:[#allocation3 + $0x1f0] sm:$0xff] 0.0
  %120 = vst [vmem:[#allocation3 + $0x1f8] sm:$0xff] 0.0
  %121 = vst [vmem:[#allocation4] sm:$0xff] 0.0
  %122 = vst [vmem:[#allocation4 + $0x8] sm:$0xff] 0.0
  %123 = vst [vmem:[#allocation4 + $0x10] sm:$0xff] 0.0
  %124 = vst [vmem:[#allocation4 + $0x18] sm:$0xff] 0.0
  %125 = vst [vmem:[#allocation4 + $0x20] sm:$0xff] 0.0
  %126 = vst [vmem:[#allocation4 + $0x28] sm:$0xff] 0.0
  %127 = vst [vmem:[#allocation4 + $0x30] sm:$0xff] 0.0
  %128 = vst [vmem:[#allocation4 + $0x38] sm:$0xff] 0.0
  %129 = vst [vmem:[#allocation4 + $0x40] sm:$0xff] 0.0
  %130 = vst [vmem:[#allocation4 + $0x48] sm:$0xff] 0.0
  %131 = vst [vmem:[#allocation4 + $0x50] sm:$0xff] 0.0
  %132 = vst [vmem:[#allocation4 + $0x58] sm:$0xff] 0.0
  %133 = vst [vmem:[#allocation4 + $0x60] sm:$0xff] 0.0
  %134 = vst [vmem:[#allocation4 + $0x68] sm:$0xff] 0.0
  %135 = vst [vmem:[#allocation4 + $0x70] sm:$0xff] 0.0
  %136 = vst [vmem:[#allocation4 + $0x78] sm:$0xff] 0.0
  %137 = vst [vmem:[#allocation4 + $0x80] sm:$0xff] 0.0
  %138 = vst [vmem:[#allocation4 + $0x88] sm:$0xff] 0.0
  %139 = vst [vmem:[#allocation4 + $0x90] sm:$0xff] 0.0
  %140 = vst [vmem:[#allocation4 + $0x98] sm:$0xff] 0.0
  %141 = vst [vmem:[#allocation4 + $0xa0] sm:$0xff] 0.0
  %142 = vst [vmem:[#allocation4 + $0xa8] sm:$0xff] 0.0
  %143 = vst [vmem:[#allocation4 + $0xb0] sm:$0xff] 0.0
  %144 = vst [vmem:[#allocation4 + $0xb8] sm:$0xff] 0.0
  %145 = vst [vmem:[#allocation4 + $0xc0] sm:$0xff] 0.0
  %146 = vst [vmem:[#allocation4 + $0xc8] sm:$0xff] 0.0
  %147 = vst [vmem:[#allocation4 + $0xd0] sm:$0xff] 0.0
  %148 = vst [vmem:[#allocation4 + $0xd8] sm:$0xff] 0.0
  %149 = vst [vmem:[#allocation4 + $0xe0] sm:$0xff] 0.0
  %150 = vst [vmem:[#allocation4 + $0xe8] sm:$0xff] 0.0
  %151 = vst [vmem:[#allocation4 + $0xf0] sm:$0xff] 0.0
  %152 = vst [vmem:[#allocation4 + $0xf8] sm:$0xff] 0.0
  %153 = vst [vmem:[#allocation4 + $0x100] sm:$0xff] 0.0
  %154 = vst [vmem:[#allocation4 + $0x108] sm:$0xff] 0.0
  %155 = vst [vmem:[#allocation4 + $0x110] sm:$0xff] 0.0
  %156 = vst [vmem:[#allocation4 + $0x118] sm:$0xff] 0.0
  %157 = vst [vmem:[#allocation4 + $0x120] sm:$0xff] 0.0
  %158 = vst [vmem:[#allocation4 + $0x128] sm:$0xff] 0.0
  %159 = vst [vmem:[#allocation4 + $0x130] sm:$0xff] 0.0
  %160 = vst [vmem:[#allocation4 + $0x138] sm:$0xff] 0.0
  %161 = vst [vmem:[#allocation4 + $0x140] sm:$0xff] 0.0
  %162 = vst [vmem:[#allocation4 + $0x148] sm:$0xff] 0.0
  %163 = vst [vmem:[#allocation4 + $0x150] sm:$0xff] 0.0
  %164 = vst [vmem:[#allocation4 + $0x158] sm:$0xff] 0.0
  %165 = vst [vmem:[#allocation4 + $0x160] sm:$0xff] 0.0
  %166 = vst [vmem:[#allocation4 + $0x168] sm:$0xff] 0.0
  %167 = vst [vmem:[#allocation4 + $0x170] sm:$0xff] 0.0
  %168 = vst [vmem:[#allocation4 + $0x178] sm:$0xff] 0.0
  %169 = vst [vmem:[#allocation4 + $0x180] sm:$0xff] 0.0
  %170 = vst [vmem:[#allocation4 + $0x188] sm:$0xff] 0.0
  %171 = vst [vmem:[#allocation4 + $0x190] sm:$0xff] 0.0
  %172 = vst [vmem:[#allocation4 + $0x198] sm:$0xff] 0.0
  %173 = vst [vmem:[#allocation4 + $0x1a0] sm:$0xff] 0.0
  %174 = vst [vmem:[#allocation4 + $0x1a8] sm:$0xff] 0.0
  %175 = vst [vmem:[#allocation4 + $0x1b0] sm:$0xff] 0.0
  %176 = vst [vmem:[#allocation4 + $0x1b8] sm:$0xff] 0.0
  %177 = vst [vmem:[#allocation4 + $0x1c0] sm:$0xff] 0.0
  %178 = vst [vmem:[#allocation4 + $0x1c8] sm:$0xff] 0.0
  %179 = vst [vmem:[#allocation4 + $0x1d0] sm:$0xff] 0.0
  %180 = vst [vmem:[#allocation4 + $0x1d8] sm:$0xff] 0.0
  %181 = vst [vmem:[#allocation4 + $0x1e0] sm:$0xff] 0.0
  %182 = vst [vmem:[#allocation4 + $0x1e8] sm:$0xff] 0.0
  %183 = vst [vmem:[#allocation4 + $0x1f0] sm:$0xff] 0.0
  %184 = vst [vmem:[#allocation4 + $0x1f8] sm:$0xff] 0.0
  %v185 = vld [vmem:[%s14] sm:$0xff]
  %v186 = vld [vmem:[%s14 + $0x8] sm:$0xff]
  %v187 = vld [vmem:[%s14 + $0x10] sm:$0xff]
  %v188 = vld [vmem:[%s14 + $0x18] sm:$0xff]
  %v189 = vld [vmem:[%s15] sm:$0xff]
  %v190 = vld [vmem:[%s15 + $0x8] sm:$0xff]
  %v191 = vld [vmem:[%s15 + $0x10] sm:$0xff]
  %v192 = vld [vmem:[%s15 + $0x18] sm:$0xff]
  %vm193 = vcmask 261120
  %194 = vst.msk [vmem:[#allocation3] sm:$0xff] %vm193, %v185
  %195 = vst.msk [vmem:[#allocation3 + $0x10] sm:$0xff] %vm193, %v186
  %196 = vst.msk [vmem:[#allocation3 + $0x20] sm:$0xff] %vm193, %v187
  %197 = vst.msk [vmem:[#allocation3 + $0x30] sm:$0xff] %vm193, %v188
  %198 = vst.msk [vmem:[#allocation4] sm:$0xff] %vm193, %v189
  %199 = vst.msk [vmem:[#allocation4 + $0x10] sm:$0xff] %vm193, %v190
  %200 = vst.msk [vmem:[#allocation4 + $0x20] sm:$0xff] %vm193, %v191
  %201 = vst.msk [vmem:[#allocation4 + $0x30] sm:$0xff] %vm193, %v192
  %206 = vrot.lane.b32.xlu0 %v185, 32
  %v207 = vpop.permute.xlu0 %206
  %208 = vrot.lane.b32.xlu0 %v186, 32
  %v209 = vpop.permute.xlu0 %208
  %210 = vrot.lane.b32.xlu0 %v187, 32
  %v211 = vpop.permute.xlu0 %210
  %212 = vrot.lane.b32.xlu0 %v188, 32
  %v213 = vpop.permute.xlu0 %212
  %vm218 = vcmask 523520
  %219 = vst.msk [vmem:[#allocation3 + $0x40] sm:$0xff] %vm218, %v207
  %220 = vst.msk [vmem:[#allocation3 + $0x50] sm:$0xff] %vm218, %v209
  %221 = vst.msk [vmem:[#allocation3 + $0x60] sm:$0xff] %vm218, %v211
  %222 = vst.msk [vmem:[#allocation3 + $0x70] sm:$0xff] %vm218, %v213
  %227 = vrot.lane.b32.xlu0 %v189, 32
  %v228 = vpop.permute.xlu0 %227
  %229 = vrot.lane.b32.xlu0 %v190, 32
  %v230 = vpop.permute.xlu0 %229
  %231 = vrot.lane.b32.xlu0 %v191, 32
  %v232 = vpop.permute.xlu0 %231
  %233 = vrot.lane.b32.xlu0 %v192, 32
  %v234 = vpop.permute.xlu0 %233
  %239 = vst.msk [vmem:[#allocation4 + $0x40] sm:$0xff] %vm218, %v228
  %240 = vst.msk [vmem:[#allocation4 + $0x50] sm:$0xff] %vm218, %v230
  %241 = vst.msk [vmem:[#allocation4 + $0x60] sm:$0xff] %vm218, %v232
  %242 = vst.msk [vmem:[#allocation4 + $0x70] sm:$0xff] %vm218, %v234
  %243 = vrot.lane.b32.xlu0 %v185, 64
  %v244 = vpop.permute.xlu0 %243
  %245 = vrot.lane.b32.xlu0 %v186, 64
  %v246 = vpop.permute.xlu0 %245
  %247 = vrot.lane.b32.xlu0 %v187, 64
  %v248 = vpop.permute.xlu0 %247
  %249 = vrot.lane.b32.xlu0 %v188, 64
  %v250 = vpop.permute.xlu0 %249
  %vm255 = vcmask 785920
  %256 = vst.msk [vmem:[#allocation3 + $0x80] sm:$0xff] %vm255, %v244
  %257 = vst.msk [vmem:[#allocation3 + $0x90] sm:$0xff] %vm255, %v246
  %258 = vst.msk [vmem:[#allocation3 + $0xa0] sm:$0xff] %vm255, %v248
  %259 = vst.msk [vmem:[#allocation3 + $0xb0] sm:$0xff] %vm255, %v250
  %260 = vrot.lane.b32.xlu0 %v189, 64
  %v261 = vpop.permute.xlu0 %260
  %262 = vrot.lane.b32.xlu0 %v190, 64
  %v263 = vpop.permute.xlu0 %262
  %264 = vrot.lane.b32.xlu0 %v191, 64
  %v265 = vpop.permute.xlu0 %264
  %266 = vrot.lane.b32.xlu0 %v192, 64
  %v267 = vpop.permute.xlu0 %266
  %272 = vst.msk [vmem:[#allocation4 + $0x80] sm:$0xff] %vm255, %v261
  %273 = vst.msk [vmem:[#allocation4 + $0x90] sm:$0xff] %vm255, %v263
  %274 = vst.msk [vmem:[#allocation4 + $0xa0] sm:$0xff] %vm255, %v265
  %275 = vst.msk [vmem:[#allocation4 + $0xb0] sm:$0xff] %vm255, %v267
  %276 = vrot.lane.b32.xlu0 %v185, 96
  %v277 = vpop.permute.xlu0 %276
  %278 = vrot.lane.b32.xlu0 %v186, 96
  %v279 = vpop.permute.xlu0 %278
  %280 = vrot.lane.b32.xlu0 %v187, 96
  %v281 = vpop.permute.xlu0 %280
  %282 = vrot.lane.b32.xlu0 %v188, 96
  %v283 = vpop.permute.xlu0 %282
  %vm288 = vcmask 1048320
  %289 = vst.msk [vmem:[#allocation3 + $0xc0] sm:$0xff] %vm288, %v277
  %290 = vst.msk [vmem:[#allocation3 + $0xd0] sm:$0xff] %vm288, %v279
  %291 = vst.msk [vmem:[#allocation3 + $0xe0] sm:$0xff] %vm288, %v281
  %292 = vst.msk [vmem:[#allocation3 + $0xf0] sm:$0xff] %vm288, %v283
  %293 = vrot.lane.b32.xlu0 %v189, 96
  %v294 = vpop.permute.xlu0 %293
  %295 = vrot.lane.b32.xlu0 %v190, 96
  %v296 = vpop.permute.xlu0 %295
  %297 = vrot.lane.b32.xlu0 %v191, 96
  %v298 = vpop.permute.xlu0 %297
  %299 = vrot.lane.b32.xlu0 %v192, 96
  %v300 = vpop.permute.xlu0 %299
  %305 = vst.msk [vmem:[#allocation4 + $0xc0] sm:$0xff] %vm288, %v294
  %306 = vst.msk [vmem:[#allocation4 + $0xd0] sm:$0xff] %vm288, %v296
  %307 = vst.msk [vmem:[#allocation4 + $0xe0] sm:$0xff] %vm288, %v298
  %308 = vst.msk [vmem:[#allocation4 + $0xf0] sm:$0xff] %vm288, %v300
  %309 = vst.msk [vmem:[#allocation3 + $0x108] sm:$0xff] %vm193, %v185
  %310 = vst.msk [vmem:[#allocation3 + $0x118] sm:$0xff] %vm193, %v186
  %311 = vst.msk [vmem:[#allocation3 + $0x128] sm:$0xff] %vm193, %v187
  %312 = vst.msk [vmem:[#allocation3 + $0x138] sm:$0xff] %vm193, %v188
  %313 = vst.msk [vmem:[#allocation4 + $0x108] sm:$0xff] %vm193, %v189
  %314 = vst.msk [vmem:[#allocation4 + $0x118] sm:$0xff] %vm193, %v190
  %315 = vst.msk [vmem:[#allocation4 + $0x128] sm:$0xff] %vm193, %v191
  %316 = vst.msk [vmem:[#allocation4 + $0x138] sm:$0xff] %vm193, %v192
  %317 = vst.msk [vmem:[#allocation3 + $0x148] sm:$0xff] %vm218, %v207
  %318 = vst.msk [vmem:[#allocation3 + $0x158] sm:$0xff] %vm218, %v209
  %319 = vst.msk [vmem:[#allocation3 + $0x168] sm:$0xff] %vm218, %v211
  %320 = vst.msk [vmem:[#allocation3 + $0x178] sm:$0xff] %vm218, %v213
  %321 = vst.msk [vmem:[#allocation4 + $0x148] sm:$0xff] %vm218, %v228
  %322 = vst.msk [vmem:[#allocation4 + $0x158] sm:$0xff] %vm218, %v230
  %323 = vst.msk [vmem:[#allocation4 + $0x168] sm:$0xff] %vm218, %v232
  %324 = vst.msk [vmem:[#allocation4 + $0x178] sm:$0xff] %vm218, %v234
  %325 = vst.msk [vmem:[#allocation3 + $0x188] sm:$0xff] %vm255, %v244
  %326 = vst.msk [vmem:[#allocation3 + $0x198] sm:$0xff] %vm255, %v246
  %327 = vst.msk [vmem:[#allocation3 + $0x1a8] sm:$0xff] %vm255, %v248
  %328 = vst.msk [vmem:[#allocation3 + $0x1b8] sm:$0xff] %vm255, %v250
  %329 = vst.msk [vmem:[#allocation4 + $0x188] sm:$0xff] %vm255, %v261
  %330 = vst.msk [vmem:[#allocation4 + $0x198] sm:$0xff] %vm255, %v263
  %331 = vst.msk [vmem:[#allocation4 + $0x1a8] sm:$0xff] %vm255, %v265
  %332 = vst.msk [vmem:[#allocation4 + $0x1b8] sm:$0xff] %vm255, %v267
  %333 = vst.msk [vmem:[#allocation3 + $0x1c8] sm:$0xff] %vm288, %v277
  %334 = vst.msk [vmem:[#allocation3 + $0x1d8] sm:$0xff] %vm288, %v279
  %335 = vst.msk [vmem:[#allocation3 + $0x1e8] sm:$0xff] %vm288, %v281
  %336 = vst.msk [vmem:[#allocation3 + $0x1f8] sm:$0xff] %vm288, %v283
  %337 = vst.msk [vmem:[#allocation4 + $0x1c8] sm:$0xff] %vm288, %v294
  %338 = vst.msk [vmem:[#allocation4 + $0x1d8] sm:$0xff] %vm288, %v296
  %339 = vst.msk [vmem:[#allocation4 + $0x1e8] sm:$0xff] %vm288, %v298
  %340 = vst.msk [vmem:[#allocation4 + $0x1f8] sm:$0xff] %vm288, %v300
  %v341 = vld [vmem:[%s0] sm:$0xff]
  %v342 = vld [vmem:[%s0 + $0x8] sm:$0xff]
  %v343 = vld [vmem:[%s0 + $0x10] sm:$0xff]
  %v344 = vld [vmem:[%s0 + $0x18] sm:$0xff]
  %v345 = vld [vmem:[%s0 + $0x20] sm:$0xff]
  %v346 = vld [vmem:[%s0 + $0x28] sm:$0xff]
  %v347 = vld [vmem:[%s0 + $0x30] sm:$0xff]
  %v348 = vld [vmem:[%s0 + $0x38] sm:$0xff]
  %v349 = vld [vmem:[%s0 + $0x40] sm:$0xff]
  %v350 = vld [vmem:[%s0 + $0x48] sm:$0xff]
  %v351 = vld [vmem:[%s0 + $0x50] sm:$0xff]
  %v352 = vld [vmem:[%s0 + $0x58] sm:$0xff]
  %v353 = vld [vmem:[%s0 + $0x60] sm:$0xff]
  %v354 = vld [vmem:[%s0 + $0x68] sm:$0xff]
  %v355 = vld [vmem:[%s0 + $0x70] sm:$0xff]
  %v356 = vld [vmem:[%s0 + $0x78] sm:$0xff]
  %v357 = vld [vmem:[%s2] sm:$0xff]
  %v358 = vld [vmem:[%s2 + $0x8] sm:$0xff]
  %v359 = vld [vmem:[%s2 + $0x10] sm:$0xff]
  %v360 = vld [vmem:[%s2 + $0x18] sm:$0xff]
  %v361 = vld [vmem:[%s2 + $0x20] sm:$0xff]
  %v362 = vld [vmem:[%s2 + $0x28] sm:$0xff]
  %v363 = vld [vmem:[%s2 + $0x30] sm:$0xff]
  %v364 = vld [vmem:[%s2 + $0x38] sm:$0xff]
  %v365 = vld [vmem:[%s2 + $0x40] sm:$0xff]
  %v366 = vld [vmem:[%s2 + $0x48] sm:$0xff]
  %v367 = vld [vmem:[%s2 + $0x50] sm:$0xff]
  %v368 = vld [vmem:[%s2 + $0x58] sm:$0xff]
  %v369 = vld [vmem:[%s2 + $0x60] sm:$0xff]
  %v370 = vld [vmem:[%s2 + $0x68] sm:$0xff]
  %v371 = vld [vmem:[%s2 + $0x70] sm:$0xff]
  %v372 = vld [vmem:[%s2 + $0x78] sm:$0xff]
  %v373 = vmul.f32 %v341, %v341
  %v374 = vmul.f32 %v342, %v342
  %v375 = vmul.f32 %v343, %v343
  %v376 = vmul.f32 %v344, %v344
  %v377 = vmul.f32 %v345, %v345
  %v378 = vmul.f32 %v346, %v346
  %v379 = vmul.f32 %v347, %v347
  %v380 = vmul.f32 %v348, %v348
  %v381 = vmul.f32 %v349, %v349
  %v382 = vmul.f32 %v350, %v350
  %v383 = vmul.f32 %v351, %v351
  %v384 = vmul.f32 %v352, %v352
  %v385 = vmul.f32 %v353, %v353
  %v386 = vmul.f32 %v354, %v354
  %v387 = vmul.f32 %v355, %v355
  %v388 = vmul.f32 %v356, %v356
  %389 = vmatprep.subr.mxu0 0.0
  %390 = vmatpush1.msra.mxu0 %v373
  %391 = vmatprep.subr.mxu0 0.0
  %392 = vmatpush1.msra.mxu0 %v374
  %393 = vmatprep.subr.mxu0 0.0
  %394 = vmatpush1.msra.mxu0 %v375
  %395 = vmatprep.subr.mxu0 0.0
  %396 = vmatpush1.msra.mxu0 %v376
  %397 = vmatprep.subr.mxu0 0.0
  %398 = vmatpush1.msra.mxu0 %v377
  %399 = vmatprep.subr.mxu0 0.0
  %400 = vmatpush1.msra.mxu0 %v378
  %401 = vmatprep.subr.mxu0 0.0
  %402 = vmatpush1.msra.mxu0 %v379
  %403 = vmatprep.subr.mxu0 0.0
  %404 = vmatpush1.msra.mxu0 %v380
  %405 = vmatprep.subr.mxu0 0.0
  %406 = vmatpush1.msra.mxu0 %v381
  %407 = vmatprep.subr.mxu0 0.0
  %408 = vmatpush1.msra.mxu0 %v382
  %409 = vmatprep.subr.mxu0 0.0
  %410 = vmatpush1.msra.mxu0 %v383
  %411 = vmatprep.subr.mxu0 0.0
  %412 = vmatpush1.msra.mxu0 %v384
  %413 = vmatprep.subr.mxu0 0.0
  %414 = vmatpush1.msra.mxu0 %v385
  %415 = vmatprep.subr.mxu0 0.0
  %416 = vmatpush1.msra.mxu0 %v386
  %417 = vmatprep.subr.mxu0 0.0
  %418 = vmatpush1.msra.mxu0 %v387
  %419 = vmatprep.subr.mxu0 0.0
  %420 = vmatpush1.msra.mxu0 %v388
  %421 = vmatprep.subr.mxu0 0.0
  %422 = vmatpush1.msra.mxu0 0.0
  %423 = vmatprep.subr.mxu0 0.0
  %424 = vmatpush1.msra.mxu0 0.0
  %425 = vmatprep.subr.mxu0 0.0
  %426 = vmatpush1.msra.mxu0 0.0
  %427 = vmatprep.subr.mxu0 0.0
  %428 = vmatpush1.msra.mxu0 0.0
  %429 = vmatprep.subr.mxu0 0.0
  %430 = vmatpush1.msra.mxu0 0.0
  %431 = vmatprep.subr.mxu0 0.0
  %432 = vmatpush1.msra.mxu0 0.0
  %433 = vmatprep.subr.mxu0 0.0
  %434 = vmatpush1.msra.mxu0 0.0
  %435 = vmatprep.subr.mxu0 0.0
  %436 = vmatpush1.msra.mxu0 0.0
  %437 = vmatprep.subr.mxu0 0.0
  %438 = vmatpush1.msra.mxu0 0.0
  %439 = vmatprep.subr.mxu0 0.0
  %440 = vmatpush1.msra.mxu0 0.0
  %441 = vmatprep.subr.mxu0 0.0
  %442 = vmatpush1.msra.mxu0 0.0
  %443 = vmatprep.subr.mxu0 0.0
  %444 = vmatpush1.msra.mxu0 0.0
  %445 = vmatprep.subr.mxu0 0.0
  %446 = vmatpush1.msra.mxu0 0.0
  %447 = vmatprep.subr.mxu0 0.0
  %448 = vmatpush1.msra.mxu0 0.0
  %449 = vmatprep.subr.mxu0 0.0
  %450 = vmatpush1.msra.mxu0 0.0
  %451 = vmatprep.subr.mxu0 0.0
  %452 = vmatpush1.msra.mxu0 0.0
  %453 = vmatprep.mubr.f32.mxu0 0.0
  %454 = vmatmul.mubr.f32.gmra.mrb[0].mxu0 %v357
  %v455 = vpop.f32.mrb[0].mxu0
  %v456 = vadd.f32 0.0, %v455
  %v457 = vpop.f32.mrb[0].mxu0
  %458 = vmatprep.mubr.f32.mxu0 0.0
  %459 = vmatmul.mubr.f32.gmra.mrb[0].mxu0 %v358
  %v460 = vpop.f32.mrb[0].mxu0
  %v461 = vadd.f32 0.0, %v460
  %v462 = vpop.f32.mrb[0].mxu0
  %463 = vmatprep.mubr.f32.mxu0 0.0
  %464 = vmatmul.mubr.f32.gmra.mrb[0].mxu0 %v359
  %v465 = vpop.f32.mrb[0].mxu0
  %v466 = vadd.f32 0.0, %v465
  %v467 = vpop.f32.mrb[0].mxu0
  %468 = vmatprep.mubr.f32.mxu0 0.0
  %469 = vmatmul.mubr.f32.gmra.mrb[0].mxu0 %v360
  %v470 = vpop.f32.mrb[0].mxu0
  %v471 = vadd.f32 0.0, %v470
  %v472 = vpop.f32.mrb[0].mxu0
  %473 = vmatprep.mubr.f32.mxu0 0.0
  %474 = vmatmul.mubr.f32.gmra.mrb[0].mxu0 %v361
  %v475 = vpop.f32.mrb[0].mxu0
  %v476 = vadd.f32 0.0, %v475
  %v477 = vpop.f32.mrb[0].mxu0
  %478 = vmatprep.mubr.f32.mxu0 0.0
  %479 = vmatmul.mubr.f32.gmra.mrb[0].mxu0 %v362
  %v480 = vpop.f32.mrb[0].mxu0
  %v481 = vadd.f32 0.0, %v480
  %v482 = vpop.f32.mrb[0].mxu0
  %483 = vmatprep.mubr.f32.mxu0 0.0
  %484 = vmatmul.mubr.f32.gmra.mrb[0].mxu0 %v363
  %v485 = vpop.f32.mrb[0].mxu0
  %v486 = vadd.f32 0.0, %v485
  %v487 = vpop.f32.mrb[0].mxu0
  %488 = vmatprep.mubr.f32.mxu0 0.0
  %489 = vmatmul.mubr.f32.gmra.mrb[0].mxu0 %v364
  %v490 = vpop.f32.mrb[0].mxu0
  %v491 = vadd.f32 0.0, %v490
  %v492 = vpop.f32.mrb[0].mxu0
  %493 = vmatprep.mubr.f32.mxu0 0.0
  %494 = vmatmul.mubr.f32.gmra.mrb[0].mxu0 %v365
  %v495 = vpop.f32.mrb[0].mxu0
  %v496 = vadd.f32 0.0, %v495
  %v497 = vpop.f32.mrb[0].mxu0
  %498 = vmatprep.mubr.f32.mxu0 0.0
  %499 = vmatmul.mubr.f32.gmra.mrb[0].mxu0 %v366
  %v500 = vpop.f32.mrb[0].mxu0
  %v501 = vadd.f32 0.0, %v500
  %v502 = vpop.f32.mrb[0].mxu0
  %503 = vmatprep.mubr.f32.mxu0 0.0
  %504 = vmatmul.mubr.f32.gmra.mrb[0].mxu0 %v367
  %v505 = vpop.f32.mrb[0].mxu0
  %v506 = vadd.f32 0.0, %v505
  %v507 = vpop.f32.mrb[0].mxu0
  %508 = vmatprep.mubr.f32.mxu0 0.0
  %509 = vmatmul.mubr.f32.gmra.mrb[0].mxu0 %v368
  %v510 = vpop.f32.mrb[0].mxu0
  %v511 = vadd.f32 0.0, %v510
  %v512 = vpop.f32.mrb[0].mxu0
  %513 = vmatprep.mubr.f32.mxu0 0.0
  %514 = vmatmul.mubr.f32.gmra.mrb[0].mxu0 %v369
  %v515 = vpop.f32.mrb[0].mxu0
  %v516 = vadd.f32 0.0, %v515
  %v517 = vpop.f32.mrb[0].mxu0
  %518 = vmatprep.mubr.f32.mxu0 0.0
  %519 = vmatmul.mubr.f32.gmra.mrb[0].mxu0 %v370
  %v520 = vpop.f32.mrb[0].mxu0
  %v521 = vadd.f32 0.0, %v520
  %v522 = vpop.f32.mrb[0].mxu0
  %523 = vmatprep.mubr.f32.mxu0 0.0
  %524 = vmatmul.mubr.f32.gmra.mrb[0].mxu0 %v371
  %v525 = vpop.f32.mrb[0].mxu0
  %v526 = vadd.f32 0.0, %v525
  %v527 = vpop.f32.mrb[0].mxu0
  %528 = vmatprep.mubr.f32.mxu0 0.0
  %529 = vmatmul.mubr.f32.gmra.mrb[0].mxu0 %v372
  %v530 = vpop.f32.mrb[0].mxu0
  %v531 = vadd.f32 0.0, %v530
  %v532 = vpop.f32.mrb[0].mxu0
  %533 = vdwg.mxu0
  %v534 = vsel %vm193, %v456, 0.0
  %535 = vadd.xlane.f32.xlu0 %v534
  %v536 = vpop.xlane.xlu0 %535
  %v537 = vsel %vm193, %v461, 0.0
  %538 = vadd.xlane.f32.xlu0 %v537
  %v539 = vpop.xlane.xlu0 %538
  %v540 = vsel %vm193, %v466, 0.0
  %541 = vadd.xlane.f32.xlu0 %v540
  %v542 = vpop.xlane.xlu0 %541
  %v543 = vsel %vm193, %v471, 0.0
  %544 = vadd.xlane.f32.xlu0 %v543
  %v545 = vpop.xlane.xlu0 %544
  %v546 = vsel %vm193, %v476, 0.0
  %547 = vadd.xlane.f32.xlu0 %v546
  %v548 = vpop.xlane.xlu0 %547
  %v549 = vsel %vm193, %v481, 0.0
  %550 = vadd.xlane.f32.xlu0 %v549
  %v551 = vpop.xlane.xlu0 %550
  %v552 = vsel %vm193, %v486, 0.0
  %553 = vadd.xlane.f32.xlu0 %v552
  %v554 = vpop.xlane.xlu0 %553
  %v555 = vsel %vm193, %v491, 0.0
  %556 = vadd.xlane.f32.xlu0 %v555
  %v557 = vpop.xlane.xlu0 %556
  %v558 = vsel %vm193, %v496, 0.0
  %559 = vadd.xlane.f32.xlu0 %v558
  %v560 = vpop.xlane.xlu0 %559
  %v561 = vsel %vm193, %v501, 0.0
  %562 = vadd.xlane.f32.xlu0 %v561
  %v563 = vpop.xlane.xlu0 %562
  %v564 = vsel %vm193, %v506, 0.0
  %565 = vadd.xlane.f32.xlu0 %v564
  %v566 = vpop.xlane.xlu0 %565
  %v567 = vsel %vm193, %v511, 0.0
  %568 = vadd.xlane.f32.xlu0 %v567
  %v569 = vpop.xlane.xlu0 %568
  %v570 = vsel %vm193, %v516, 0.0
  %571 = vadd.xlane.f32.xlu0 %v570
  %v572 = vpop.xlane.xlu0 %571
  %v573 = vsel %vm193, %v521, 0.0
  %574 = vadd.xlane.f32.xlu0 %v573
  %v575 = vpop.xlane.xlu0 %574
  %v576 = vsel %vm193, %v526, 0.0
  %577 = vadd.xlane.f32.xlu0 %v576
  %v578 = vpop.xlane.xlu0 %577
  %v579 = vsel %vm193, %v531, 0.0
  %580 = vadd.xlane.f32.xlu0 %v579
  %v581 = vpop.xlane.xlu0 %580
  %v582 = vadd.f32 %v536, 1e-05
  %v583 = vadd.f32 %v539, 1e-05
  %v584 = vadd.f32 %v542, 1e-05
  %v585 = vadd.f32 %v545, 1e-05
  %v586 = vadd.f32 %v548, 1e-05
  %v587 = vadd.f32 %v551, 1e-05
  %v588 = vadd.f32 %v554, 1e-05
  %v589 = vadd.f32 %v557, 1e-05
  %v590 = vadd.f32 %v560, 1e-05
  %v591 = vadd.f32 %v563, 1e-05
  %v592 = vadd.f32 %v566, 1e-05
  %v593 = vadd.f32 %v569, 1e-05
  %v594 = vadd.f32 %v572, 1e-05
  %v595 = vadd.f32 %v575, 1e-05
  %v596 = vadd.f32 %v578, 1e-05
  %v597 = vadd.f32 %v581, 1e-05
  %v598 = vrsqrt.pop %v582
  %v599 = vrsqrt.pop %v583
  %v600 = vrsqrt.pop %v584
  %v601 = vrsqrt.pop %v585
  %v602 = vrsqrt.pop %v586
  %v603 = vrsqrt.pop %v587
  %v604 = vrsqrt.pop %v588
  %v605 = vrsqrt.pop %v589
  %v606 = vrsqrt.pop %v590
  %v607 = vrsqrt.pop %v591
  %v608 = vrsqrt.pop %v592
  %v609 = vrsqrt.pop %v593
  %v610 = vrsqrt.pop %v594
  %v611 = vrsqrt.pop %v595
  %v612 = vrsqrt.pop %v596
  %v613 = vrsqrt.pop %v597
  %v614 = vmul.f32 %v341, %v598
  %v615 = vmul.f32 %v342, %v599
  %v616 = vmul.f32 %v343, %v600
  %v617 = vmul.f32 %v344, %v601
  %v618 = vmul.f32 %v345, %v602
  %v619 = vmul.f32 %v346, %v603
  %v620 = vmul.f32 %v347, %v604
  %v621 = vmul.f32 %v348, %v605
  %v622 = vmul.f32 %v349, %v606
  %v623 = vmul.f32 %v350, %v607
  %v624 = vmul.f32 %v351, %v608
  %v625 = vmul.f32 %v352, %v609
  %v626 = vmul.f32 %v353, %v610
  %v627 = vmul.f32 %v354, %v611
  %v628 = vmul.f32 %v355, %v612
  %v629 = vmul.f32 %v356, %v613
  %v630 = vld [vmem:[%s1] sm:$0xff]
  %v631 = vld [vmem:[%s1 + $0x8] sm:$0xff]
  %v632 = vld [vmem:[%s1 + $0x10] sm:$0xff]
  %v633 = vld [vmem:[%s1 + $0x18] sm:$0xff]
  %v634 = vld [vmem:[%s1 + $0x20] sm:$0xff]
  %v635 = vld [vmem:[%s1 + $0x28] sm:$0xff]
  %v636 = vld [vmem:[%s1 + $0x30] sm:$0xff]
  %v637 = vld [vmem:[%s1 + $0x38] sm:$0xff]
  %v638 = vld [vmem:[%s1 + $0x40] sm:$0xff]
  %v639 = vld [vmem:[%s1 + $0x48] sm:$0xff]
  %v640 = vld [vmem:[%s1 + $0x50] sm:$0xff]
  %v641 = vld [vmem:[%s1 + $0x58] sm:$0xff]
  %v642 = vld [vmem:[%s1 + $0x60] sm:$0xff]
  %v643 = vld [vmem:[%s1 + $0x68] sm:$0xff]
  %v644 = vld [vmem:[%s1 + $0x70] sm:$0xff]
  %v645 = vld [vmem:[%s1 + $0x78] sm:$0xff]
  %v646 = vmul.f32 %v614, %v630
  %v647 = vmul.f32 %v615, %v631
  %v648 = vmul.f32 %v616, %v632
  %v649 = vmul.f32 %v617, %v633
  %v650 = vmul.f32 %v618, %v634
  %v651 = vmul.f32 %v619, %v635
  %v652 = vmul.f32 %v620, %v636
  %v653 = vmul.f32 %v621, %v637
  %v654 = vmul.f32 %v622, %v638
  %v655 = vmul.f32 %v623, %v639
  %v656 = vmul.f32 %v624, %v640
  %v657 = vmul.f32 %v625, %v641
  %v658 = vmul.f32 %v626, %v642
  %v659 = vmul.f32 %v627, %v643
  %v660 = vmul.f32 %v628, %v644
  %v661 = vmul.f32 %v629, %v645
  %v662 = vld [vmem:[%s3] sm:$0xff]
  %v663 = vld [vmem:[%s3 + $0x8] sm:$0xff]
  %v664 = vld [vmem:[%s3 + $0x10] sm:$0xff]
  %v665 = vld [vmem:[%s3 + $0x18] sm:$0xff]
  %v667 = vsel %vm193, %v646, 0
  %v670 = vsel %vm193, %v647, 0
  %v673 = vsel %vm193, %v648, 0
  %v676 = vsel %vm193, %v649, 0
  %v679 = vsel %vm193, %v650, 0
  %v682 = vsel %vm193, %v651, 0
  %v685 = vsel %vm193, %v652, 0
  %v688 = vsel %vm193, %v653, 0
  %v691 = vsel %vm193, %v654, 0
  %v694 = vsel %vm193, %v655, 0
  %v697 = vsel %vm193, %v656, 0
  %v700 = vsel %vm193, %v657, 0
  %v703 = vsel %vm193, %v658, 0
  %v706 = vsel %vm193, %v659, 0
  %v709 = vsel %vm193, %v660, 0
  %v712 = vsel %vm193, %v661, 0
  %714 = vmatprep.subr.mxu0 0.0
  %715 = vmatpush1.msra.mxu0 %v662
  %716 = vmatprep.subr.mxu0 0.0
  %717 = vmatpush1.msra.mxu0 %v663
  %718 = vmatprep.subr.mxu0 0.0
  %719 = vmatpush1.msra.mxu0 %v664
  %720 = vmatprep.subr.mxu0 0.0
  %721 = vmatpush1.msra.mxu0 %v665
  %722 = vmatprep.subr.mxu0 0.0
  %723 = vmatpush1.msra.mxu0 0.0
  %724 = vmatprep.subr.mxu0 0.0
  %725 = vmatpush1.msra.mxu0 0.0
  %726 = vmatprep.subr.mxu0 0.0
  %727 = vmatpush1.msra.mxu0 0.0
  %728 = vmatprep.subr.mxu0 0.0
  %729 = vmatpush1.msra.mxu0 0.0
  %730 = vmatprep.subr.mxu0 0.0
  %731 = vmatpush1.msra.mxu0 0.0
  %732 = vmatprep.subr.mxu0 0.0
  %733 = vmatpush1.msra.mxu0 0.0
  %734 = vmatprep.subr.mxu0 0.0
  %735 = vmatpush1.msra.mxu0 0.0
  %736 = vmatprep.subr.mxu0 0.0
  %737 = vmatpush1.msra.mxu0 0.0
  %738 = vmatprep.subr.mxu0 0.0
  %739 = vmatpush1.msra.mxu0 0.0
  %740 = vmatprep.subr.mxu0 0.0
  %741 = vmatpush1.msra.mxu0 0.0
  %742 = vmatprep.subr.mxu0 0.0
  %743 = vmatpush1.msra.mxu0 0.0
  %744 = vmatprep.subr.mxu0 0.0
  %745 = vmatpush1.msra.mxu0 0.0
  %746 = vmatprep.subr.mxu0 0.0
  %747 = vmatpush1.msra.mxu0 0.0
  %748 = vmatprep.subr.mxu0 0.0
  %749 = vmatpush1.msra.mxu0 0.0
  %750 = vmatprep.subr.mxu0 0.0
  %751 = vmatpush1.msra.mxu0 0.0
  %752 = vmatprep.subr.mxu0 0.0
  %753 = vmatpush1.msra.mxu0 0.0
  %754 = vmatprep.subr.mxu0 0.0
  %755 = vmatpush1.msra.mxu0 0.0
  %756 = vmatprep.subr.mxu0 0.0
  %757 = vmatpush1.msra.mxu0 0.0
  %758 = vmatprep.subr.mxu0 0.0
  %759 = vmatpush1.msra.mxu0 0.0
  %760 = vmatprep.subr.mxu0 0.0
  %761 = vmatpush1.msra.mxu0 0.0
  %762 = vmatprep.subr.mxu0 0.0
  %763 = vmatpush1.msra.mxu0 0.0
  %764 = vmatprep.subr.mxu0 0.0
  %765 = vmatpush1.msra.mxu0 0.0
  %766 = vmatprep.subr.mxu0 0.0
  %767 = vmatpush1.msra.mxu0 0.0
  %768 = vmatprep.subr.mxu0 0.0
  %769 = vmatpush1.msra.mxu0 0.0
  %770 = vmatprep.subr.mxu0 0.0
  %771 = vmatpush1.msra.mxu0 0.0
  %772 = vmatprep.subr.mxu0 0.0
  %773 = vmatpush1.msra.mxu0 0.0
  %774 = vmatprep.subr.mxu0 0.0
  %775 = vmatpush1.msra.mxu0 0.0
  %776 = vmatprep.subr.mxu0 0.0
  %777 = vmatpush1.msra.mxu0 0.0
  %778 = vmatprep.mubr.f32.mxu0 0.0
  %779 = vmatmul.mubr.f32.gmra.mrb[0].mxu0 %v667
  %v780 = vpop.f32.mrb[0].mxu0
  %v781 = vadd.f32 0.0, %v780
  %v782 = vpop.f32.mrb[0].mxu0
  %783 = vmatprep.mubr.f32.mxu0 0.0
  %784 = vmatmul.mubr.f32.gmra.mrb[0].mxu0 %v670
  %v785 = vpop.f32.mrb[0].mxu0
  %v786 = vadd.f32 0.0, %v785
  %v787 = vpop.f32.mrb[0].mxu0
  %788 = vmatprep.mubr.f32.mxu0 0.0
  %789 = vmatmul.mubr.f32.gmra.mrb[0].mxu0 %v673
  %v790 = vpop.f32.mrb[0].mxu0
  %v791 = vadd.f32 0.0, %v790
  %v792 = vpop.f32.mrb[0].mxu0
  %793 = vmatprep.mubr.f32.mxu0 0.0
  %794 = vmatmul.mubr.f32.gmra.mrb[0].mxu0 %v676
  %v795 = vpop.f32.mrb[0].mxu0
  %v796 = vadd.f32 0.0, %v795
  %v797 = vpop.f32.mrb[0].mxu0
  %798 = vmatprep.mubr.f32.mxu0 0.0
  %799 = vmatmul.mubr.f32.gmra.mrb[0].mxu0 %v679
  %v800 = vpop.f32.mrb[0].mxu0
  %v801 = vadd.f32 0.0, %v800
  %v802 = vpop.f32.mrb[0].mxu0
  %803 = vmatprep.mubr.f32.mxu0 0.0
  %804 = vmatmul.mubr.f32.gmra.mrb[0].mxu0 %v682
  %v805 = vpop.f32.mrb[0].mxu0
  %v806 = vadd.f32 0.0, %v805
  %v807 = vpop.f32.mrb[0].mxu0
  %808 = vmatprep.mubr.f32.mxu0 0.0
  %809 = vmatmul.mubr.f32.gmra.mrb[0].mxu0 %v685
  %v810 = vpop.f32.mrb[0].mxu0
  %v811 = vadd.f32 0.0, %v810
  %v812 = vpop.f32.mrb[0].mxu0
  %813 = vmatprep.mubr.f32.mxu0 0.0
  %814 = vmatmul.mubr.f32.gmra.mrb[0].mxu0 %v688
  %v815 = vpop.f32.mrb[0].mxu0
  %v816 = vadd.f32 0.0, %v815
  %v817 = vpop.f32.mrb[0].mxu0
  %818 = vmatprep.mubr.f32.mxu0 0.0
  %819 = vmatmul.mubr.f32.gmra.mrb[0].mxu0 %v691
  %v820 = vpop.f32.mrb[0].mxu0
  %v821 = vadd.f32 0.0, %v820
  %v822 = vpop.f32.mrb[0].mxu0
  %823 = vmatprep.mubr.f32.mxu0 0.0
  %824 = vmatmul.mubr.f32.gmra.mrb[0].mxu0 %v694
  %v825 = vpop.f32.mrb[0].mxu0
  %v826 = vadd.f32 0.0, %v825
  %v827 = vpop.f32.mrb[0].mxu0
  %828 = vmatprep.mubr.f32.mxu0 0.0
  %829 = vmatmul.mubr.f32.gmra.mrb[0].mxu0 %v697
  %v830 = vpop.f32.mrb[0].mxu0
  %v831 = vadd.f32 0.0, %v830
  %v832 = vpop.f32.mrb[0].mxu0
  %833 = vmatprep.mubr.f32.mxu0 0.0
  %834 = vmatmul.mubr.f32.gmra.mrb[0].mxu0 %v700
  %v835 = vpop.f32.mrb[0].mxu0
  %v836 = vadd.f32 0.0, %v835
  %v837 = vpop.f32.mrb[0].mxu0
  %838 = vmatprep.mubr.f32.mxu0 0.0
  %839 = vmatmul.mubr.f32.gmra.mrb[0].mxu0 %v703
  %v840 = vpop.f32.mrb[0].mxu0
  %v841 = vadd.f32 0.0, %v840
  %v842 = vpop.f32.mrb[0].mxu0
  %843 = vmatprep.mubr.f32.mxu0 0.0
  %844 = vmatmul.mubr.f32.gmra.mrb[0].mxu0 %v706
  %v845 = vpop.f32.mrb[0].mxu0
  %v846 = vadd.f32 0.0, %v845
  %v847 = vpop.f32.mrb[0].mxu0
  %848 = vmatprep.mubr.f32.mxu0 0.0
  %849 = vmatmul.mubr.f32.gmra.mrb[0].mxu0 %v709
  %v850 = vpop.f32.mrb[0].mxu0
  %v851 = vadd.f32 0.0, %v850
  %v852 = vpop.f32.mrb[0].mxu0
  %853 = vmatprep.mubr.f32.mxu0 0.0
  %854 = vmatmul.mubr.f32.gmra.mrb[0].mxu0 %v712
  %v855 = vpop.f32.mrb[0].mxu0
  %v856 = vadd.f32 0.0, %v855
  %v857 = vpop.f32.mrb[0].mxu0
  %858 = vdwg.mxu0
  %v859 = vpack.c.bf16 %v786, %v781
  %v860 = vpack.c.bf16 %v796, %v791
  %v861 = vpack.c.bf16 %v806, %v801
  %v862 = vpack.c.bf16 %v816, %v811
  %v863 = vpack.c.bf16 %v826, %v821
  %v864 = vpack.c.bf16 %v836, %v831
  %v865 = vpack.c.bf16 %v846, %v841
  %v866 = vpack.c.bf16 %v856, %v851
  %v867 = vld [vmem:[%s4] sm:$0xff]
  %v868 = vld [vmem:[%s4 + $0x8] sm:$0xff]
  %v869 = vld [vmem:[%s4 + $0x10] sm:$0xff]
  %v870 = vld [vmem:[%s4 + $0x18] sm:$0xff]
  %871 = vmatprep.subr.mxu0 0.0
  %872 = vmatpush1.msra.mxu0 %v867
  %873 = vmatprep.subr.mxu0 0.0
  %874 = vmatpush1.msra.mxu0 %v868
  %875 = vmatprep.subr.mxu0 0.0
  %876 = vmatpush1.msra.mxu0 %v869
  %877 = vmatprep.subr.mxu0 0.0
  %878 = vmatpush1.msra.mxu0 %v870
  %879 = vmatprep.subr.mxu0 0.0
  %880 = vmatpush1.msra.mxu0 0.0
  %881 = vmatprep.subr.mxu0 0.0
  %882 = vmatpush1.msra.mxu0 0.0
  %883 = vmatprep.subr.mxu0 0.0
  %884 = vmatpush1.msra.mxu0 0.0
  %885 = vmatprep.subr.mxu0 0.0
  %886 = vmatpush1.msra.mxu0 0.0
  %887 = vmatprep.subr.mxu0 0.0
  %888 = vmatpush1.msra.mxu0 0.0
  %889 = vmatprep.subr.mxu0 0.0
  %890 = vmatpush1.msra.mxu0 0.0
  %891 = vmatprep.subr.mxu0 0.0
  %892 = vmatpush1.msra.mxu0 0.0
  %893 = vmatprep.subr.mxu0 0.0
  %894 = vmatpush1.msra.mxu0 0.0
  %895 = vmatprep.subr.mxu0 0.0
  %896 = vmatpush1.msra.mxu0 0.0
  %897 = vmatprep.subr.mxu0 0.0
  %898 = vmatpush1.msra.mxu0 0.0
  %899 = vmatprep.subr.mxu0 0.0
  %900 = vmatpush1.msra.mxu0 0.0
  %901 = vmatprep.subr.mxu0 0.0
  %902 = vmatpush1.msra.mxu0 0.0
  %903 = vmatprep.subr.mxu0 0.0
  %904 = vmatpush1.msra.mxu0 0.0
  %905 = vmatprep.subr.mxu0 0.0
  %906 = vmatpush1.msra.mxu0 0.0
  %907 = vmatprep.subr.mxu0 0.0
  %908 = vmatpush1.msra.mxu0 0.0
  %909 = vmatprep.subr.mxu0 0.0
  %910 = vmatpush1.msra.mxu0 0.0
  %911 = vmatprep.subr.mxu0 0.0
  %912 = vmatpush1.msra.mxu0 0.0
  %913 = vmatprep.subr.mxu0 0.0
  %914 = vmatpush1.msra.mxu0 0.0
  %915 = vmatprep.subr.mxu0 0.0
  %916 = vmatpush1.msra.mxu0 0.0
  %917 = vmatprep.subr.mxu0 0.0
  %918 = vmatpush1.msra.mxu0 0.0
  %919 = vmatprep.subr.mxu0 0.0
  %920 = vmatpush1.msra.mxu0 0.0
  %921 = vmatprep.subr.mxu0 0.0
  %922 = vmatpush1.msra.mxu0 0.0
  %923 = vmatprep.subr.mxu0 0.0
  %924 = vmatpush1.msra.mxu0 0.0
  %925 = vmatprep.subr.mxu0 0.0
  %926 = vmatpush1.msra.mxu0 0.0
  %927 = vmatprep.subr.mxu0 0.0
  %928 = vmatpush1.msra.mxu0 0.0
  %929 = vmatprep.subr.mxu0 0.0
  %930 = vmatpush1.msra.mxu0 0.0
  %931 = vmatprep.subr.mxu0 0.0
  %932 = vmatpush1.msra.mxu0 0.0
  %933 = vmatprep.subr.mxu0 0.0
  %934 = vmatpush1.msra.mxu0 0.0
  %935 = vmatprep.mubr.f32.mxu0 0.0
  %936 = vmatmul.mubr.f32.gmra.mrb[0].mxu0 %v667
  %v937 = vpop.f32.mrb[0].mxu0
  %v938 = vadd.f32 0.0, %v937
  %v939 = vpop.f32.mrb[0].mxu0
  %940 = vmatprep.mubr.f32.mxu0 0.0
  %941 = vmatmul.mubr.f32.gmra.mrb[0].mxu0 %v670
  %v942 = vpop.f32.mrb[0].mxu0
  %v943 = vadd.f32 0.0, %v942
  %v944 = vpop.f32.mrb[0].mxu0
  %945 = vmatprep.mubr.f32.mxu0 0.0
  %946 = vmatmul.mubr.f32.gmra.mrb[0].mxu0 %v673
  %v947 = vpop.f32.mrb[0].mxu0
  %v948 = vadd.f32 0.0, %v947
  %v949 = vpop.f32.mrb[0].mxu0
  %950 = vmatprep.mubr.f32.mxu0 0.0
  %951 = vmatmul.mubr.f32.gmra.mrb[0].mxu0 %v676
  %v952 = vpop.f32.mrb[0].mxu0
  %v953 = vadd.f32 0.0, %v952
  %v954 = vpop.f32.mrb[0].mxu0
  %955 = vmatprep.mubr.f32.mxu0 0.0
  %956 = vmatmul.mubr.f32.gmra.mrb[0].mxu0 %v679
  %v957 = vpop.f32.mrb[0].mxu0
  %v958 = vadd.f32 0.0, %v957
  %v959 = vpop.f32.mrb[0].mxu0
  %960 = vmatprep.mubr.f32.mxu0 0.0
  %961 = vmatmul.mubr.f32.gmra.mrb[0].mxu0 %v682
  %v962 = vpop.f32.mrb[0].mxu0
  %v963 = vadd.f32 0.0, %v962
  %v964 = vpop.f32.mrb[0].mxu0
  %965 = vmatprep.mubr.f32.mxu0 0.0
  %966 = vmatmul.mubr.f32.gmra.mrb[0].mxu0 %v685
  %v967 = vpop.f32.mrb[0].mxu0
  %v968 = vadd.f32 0.0, %v967
  %v969 = vpop.f32.mrb[0].mxu0
  %970 = vmatprep.mubr.f32.mxu0 0.0
  %971 = vmatmul.mubr.f32.gmra.mrb[0].mxu0 %v688
  %v972 = vpop.f32.mrb[0].mxu0
  %v973 = vadd.f32 0.0, %v972
  %v974 = vpop.f32.mrb[0].mxu0
  %975 = vmatprep.mubr.f32.mxu0 0.0
  %976 = vmatmul.mubr.f32.gmra.mrb[0].mxu0 %v691
  %v977 = vpop.f32.mrb[0].mxu0
  %v978 = vadd.f32 0.0, %v977
  %v979 = vpop.f32.mrb[0].mxu0
  %980 = vmatprep.mubr.f32.mxu0 0.0
  %981 = vmatmul.mubr.f32.gmra.mrb[0].mxu0 %v694
  %v982 = vpop.f32.mrb[0].mxu0
  %v983 = vadd.f32 0.0, %v982
  %v984 = vpop.f32.mrb[0].mxu0
  %985 = vmatprep.mubr.f32.mxu0 0.0
  %986 = vmatmul.mubr.f32.gmra.mrb[0].mxu0 %v697
  %v987 = vpop.f32.mrb[0].mxu0
  %v988 = vadd.f32 0.0, %v987
  %v989 = vpop.f32.mrb[0].mxu0
  %990 = vmatprep.mubr.f32.mxu0 0.0
  %991 = vmatmul.mubr.f32.gmra.mrb[0].mxu0 %v700
  %v992 = vpop.f32.mrb[0].mxu0
  %v993 = vadd.f32 0.0, %v992
  %v994 = vpop.f32.mrb[0].mxu0
  %995 = vmatprep.mubr.f32.mxu0 0.0
  %996 = vmatmul.mubr.f32.gmra.mrb[0].mxu0 %v703
  %v997 = vpop.f32.mrb[0].mxu0
  %v998 = vadd.f32 0.0, %v997
  %v999 = vpop.f32.mrb[0].mxu0
  %1000 = vmatprep.mubr.f32.mxu0 0.0
  %1001 = vmatmul.mubr.f32.gmra.mrb[0].mxu0 %v706
  %v1002 = vpop.f32.mrb[0].mxu0
  %v1003 = vadd.f32 0.0, %v1002
  %v1004 = vpop.f32.mrb[0].mxu0
  %1005 = vmatprep.mubr.f32.mxu0 0.0
  %1006 = vmatmul.mubr.f32.gmra.mrb[0].mxu0 %v709
  %v1007 = vpop.f32.mrb[0].mxu0
  %v1008 = vadd.f32 0.0, %v1007
  %v1009 = vpop.f32.mrb[0].mxu0
  %1010 = vmatprep.mubr.f32.mxu0 0.0
  %1011 = vmatmul.mubr.f32.gmra.mrb[0].mxu0 %v712
  %v1012 = vpop.f32.mrb[0].mxu0
  %v1013 = vadd.f32 0.0, %v1012
  %v1014 = vpop.f32.mrb[0].mxu0
  %1015 = vdwg.mxu0
  %v1016 = vpack.c.bf16 %v943, %v938
  %v1017 = vpack.c.bf16 %v953, %v948
  %v1018 = vpack.c.bf16 %v963, %v958
  %v1019 = vpack.c.bf16 %v973, %v968
  %v1020 = vpack.c.bf16 %v983, %v978
  %v1021 = vpack.c.bf16 %v993, %v988
  %v1022 = vpack.c.bf16 %v1003, %v998
  %v1023 = vpack.c.bf16 %v1013, %v1008
  %v1024 = vld [vmem:[%s5] sm:$0xf]
  %v1025 = vld [vmem:[%s5 + $0x4] sm:$0xf]
  %v1026 = vld [vmem:[%s5 + $0x8] sm:$0xf]
  %v1027 = vld [vmem:[%s5 + $0xc] sm:$0xf]
  %v1028 = vld [vmem:[%s5 + $0x10] sm:$0xf]
  %v1029 = vld [vmem:[%s5 + $0x14] sm:$0xf]
  %v1030 = vld [vmem:[%s5 + $0x18] sm:$0xf]
  %v1031 = vld [vmem:[%s5 + $0x1c] sm:$0xf]
  %v1032 = vld [vmem:[%s5 + $0x20] sm:$0xf]
  %v1033 = vld [vmem:[%s5 + $0x24] sm:$0xf]
  %v1034 = vld [vmem:[%s5 + $0x28] sm:$0xf]
  %v1035 = vld [vmem:[%s5 + $0x2c] sm:$0xf]
  %v1036 = vld [vmem:[%s5 + $0x30] sm:$0xf]
  %v1037 = vld [vmem:[%s5 + $0x34] sm:$0xf]
  %v1038 = vld [vmem:[%s5 + $0x38] sm:$0xf]
  %v1039 = vld [vmem:[%s5 + $0x3c] sm:$0xf]
  %v1040 = vld [vmem:[%s5 + $0x40] sm:$0xf]
  %v1041 = vld [vmem:[%s5 + $0x44] sm:$0xf]
  %v1042 = vld [vmem:[%s5 + $0x48] sm:$0xf]
  %v1043 = vld [vmem:[%s5 + $0x4c] sm:$0xf]
  %v1044 = vld [vmem:[%s5 + $0x50] sm:$0xf]
  %v1045 = vld [vmem:[%s5 + $0x54] sm:$0xf]
  %v1046 = vld [vmem:[%s5 + $0x58] sm:$0xf]
  %v1047 = vld [vmem:[%s5 + $0x5c] sm:$0xf]
  %v1048 = vld [vmem:[%s5 + $0x60] sm:$0xf]
  %v1049 = vld [vmem:[%s5 + $0x64] sm:$0xf]
  %v1050 = vld [vmem:[%s5 + $0x68] sm:$0xf]
  %v1051 = vld [vmem:[%s5 + $0x6c] sm:$0xf]
  %v1052 = vld [vmem:[%s5 + $0x70] sm:$0xf]
  %v1053 = vld [vmem:[%s5 + $0x74] sm:$0xf]
  %v1054 = vld [vmem:[%s5 + $0x78] sm:$0xf]
  %v1055 = vld [vmem:[%s5 + $0x7c] sm:$0xf]
  %v1088 = vunpack.c.l.b16 %v1024
  %v1089 = vunpack.c.l.b16 %v1025
  %v1090 = vunpack.c.l.b16 %v1026
  %v1091 = vunpack.c.l.b16 %v1027
  %v1092 = vunpack.c.l.b16 %v1028
  %v1093 = vunpack.c.l.b16 %v1029
  %v1094 = vunpack.c.l.b16 %v1030
  %v1095 = vunpack.c.l.b16 %v1031
  %v1096 = vunpack.c.l.b16 %v1032
  %v1097 = vunpack.c.l.b16 %v1033
  %v1098 = vunpack.c.l.b16 %v1034
  %v1099 = vunpack.c.l.b16 %v1035
  %v1100 = vunpack.c.l.b16 %v1036
  %v1101 = vunpack.c.l.b16 %v1037
  %v1102 = vunpack.c.l.b16 %v1038
  %v1103 = vunpack.c.l.b16 %v1039
  %v1104 = vunpack.c.l.b16 %v1040
  %v1105 = vunpack.c.l.b16 %v1041
  %v1106 = vunpack.c.l.b16 %v1042
  %v1107 = vunpack.c.l.b16 %v1043
  %v1108 = vunpack.c.l.b16 %v1044
  %v1109 = vunpack.c.l.b16 %v1045
  %v1110 = vunpack.c.l.b16 %v1046
  %v1111 = vunpack.c.l.b16 %v1047
  %v1112 = vunpack.c.l.b16 %v1048
  %v1113 = vunpack.c.l.b16 %v1049
  %v1114 = vunpack.c.l.b16 %v1050
  %v1115 = vunpack.c.l.b16 %v1051
  %v1116 = vunpack.c.l.b16 %v1052
  %v1117 = vunpack.c.l.b16 %v1053
  %v1118 = vunpack.c.l.b16 %v1054
  %v1119 = vunpack.c.l.b16 %v1055
  %v1120 = vpack.c.b16 %v1089, %v1088
  %v1121 = vpack.c.b16 %v1091, %v1090
  %v1122 = vpack.c.b16 %v1093, %v1092
  %v1123 = vpack.c.b16 %v1095, %v1094
  %v1124 = vpack.c.b16 %v1097, %v1096
  %v1125 = vpack.c.b16 %v1099, %v1098
  %v1126 = vpack.c.b16 %v1101, %v1100
  %v1127 = vpack.c.b16 %v1103, %v1102
  %v1128 = vpack.c.b16 %v1105, %v1104
  %v1129 = vpack.c.b16 %v1107, %v1106
  %v1130 = vpack.c.b16 %v1109, %v1108
  %v1131 = vpack.c.b16 %v1111, %v1110
  %v1132 = vpack.c.b16 %v1113, %v1112
  %v1133 = vpack.c.b16 %v1115, %v1114
  %v1134 = vpack.c.b16 %v1117, %v1116
  %v1135 = vpack.c.b16 %v1119, %v1118
  %1152 = vmatprep.subr.bf16.mxu0 0
  %1153 = vmatpush1.bf16.msra.mxu0 %v859
  %1154 = vmatprep.subr.bf16.mxu0 0
  %1155 = vmatpush1.bf16.msra.mxu0 %v860
  %1156 = vmatprep.subr.bf16.mxu0 0
  %1157 = vmatpush1.bf16.msra.mxu0 %v861
  %1158 = vmatprep.subr.bf16.mxu0 0
  %1159 = vmatpush1.bf16.msra.mxu0 %v862
  %1160 = vmatprep.subr.bf16.mxu0 0
  %1161 = vmatpush1.bf16.msra.mxu0 %v863
  %1162 = vmatprep.subr.bf16.mxu0 0
  %1163 = vmatpush1.bf16.msra.mxu0 %v864
  %1164 = vmatprep.subr.bf16.mxu0 0
  %1165 = vmatpush1.bf16.msra.mxu0 %v865
  %1166 = vmatprep.subr.bf16.mxu0 0
  %1167 = vmatpush1.bf16.msra.mxu0 %v866
  %1168 = vmatprep.subr.bf16.mxu0 0
  %1169 = vmatpush1.bf16.msra.mxu0 0
  %1170 = vmatprep.subr.bf16.mxu0 0
  %1171 = vmatpush1.bf16.msra.mxu0 0
  %1172 = vmatprep.subr.bf16.mxu0 0
  %1173 = vmatpush1.bf16.msra.mxu0 0
  %1174 = vmatprep.subr.bf16.mxu0 0
  %1175 = vmatpush1.bf16.msra.mxu0 0
  %1176 = vmatprep.subr.bf16.mxu0 0
  %1177 = vmatpush1.bf16.msra.mxu0 0
  %1178 = vmatprep.subr.bf16.mxu0 0
  %1179 = vmatpush1.bf16.msra.mxu0 0
  %1180 = vmatprep.subr.bf16.mxu0 0
  %1181 = vmatpush1.bf16.msra.mxu0 0
  %1182 = vmatprep.subr.bf16.mxu0 0
  %1183 = vmatpush1.bf16.msra.mxu0 0
  %1184 = vmatprep.mubr.bf16.mxu0 0
  %1185 = vmatmul.mubr.bf16.gmra.mrb[0].mxu0 %v1120
  %v1186 = vpop.f32.mrb[0].mxu0
  %v1187 = vadd.f32 0.0, %v1186
  %v1188 = vpop.f32.mrb[0].mxu0
  %v1189 = vpop.f32.mrb[0].mxu0
  %v1190 = vadd.f32 0.0, %v1189
  %v1191 = vpop.f32.mrb[0].mxu0
  %1192 = vmatprep.mubr.bf16.mxu0 0
  %1193 = vmatmul.mubr.bf16.gmra.mrb[0].mxu0 %v1121
  %v1194 = vpop.f32.mrb[0].mxu0
  %v1195 = vadd.f32 0.0, %v1194
  %v1196 = vpop.f32.mrb[0].mxu0
  %v1197 = vpop.f32.mrb[0].mxu0
  %v1198 = vadd.f32 0.0, %v1197
  %v1199 = vpop.f32.mrb[0].mxu0
  %1200 = vmatprep.mubr.bf16.mxu0 0
  %1201 = vmatmul.mubr.bf16.gmra.mrb[0].mxu0 %v1122
  %v1202 = vpop.f32.mrb[0].mxu0
  %v1203 = vadd.f32 0.0, %v1202
  %v1204 = vpop.f32.mrb[0].mxu0
  %v1205 = vpop.f32.mrb[0].mxu0
  %v1206 = vadd.f32 0.0, %v1205
  %v1207 = vpop.f32.mrb[0].mxu0
  %1208 = vmatprep.mubr.bf16.mxu0 0
  %1209 = vmatmul.mubr.bf16.gmra.mrb[0].mxu0 %v1123
  %v1210 = vpop.f32.mrb[0].mxu0
  %v1211 = vadd.f32 0.0, %v1210
  %v1212 = vpop.f32.mrb[0].mxu0
  %v1213 = vpop.f32.mrb[0].mxu0
  %v1214 = vadd.f32 0.0, %v1213
  %v1215 = vpop.f32.mrb[0].mxu0
  %1216 = vmatprep.mubr.bf16.mxu0 0
  %1217 = vmatmul.mubr.bf16.gmra.mrb[0].mxu0 %v1124
  %v1218 = vpop.f32.mrb[0].mxu0
  %v1219 = vadd.f32 0.0, %v1218
  %v1220 = vpop.f32.mrb[0].mxu0
  %v1221 = vpop.f32.mrb[0].mxu0
  %v1222 = vadd.f32 0.0, %v1221
  %v1223 = vpop.f32.mrb[0].mxu0
  %1224 = vmatprep.mubr.bf16.mxu0 0
  %1225 = vmatmul.mubr.bf16.gmra.mrb[0].mxu0 %v1125
  %v1226 = vpop.f32.mrb[0].mxu0
  %v1227 = vadd.f32 0.0, %v1226
  %v1228 = vpop.f32.mrb[0].mxu0
  %v1229 = vpop.f32.mrb[0].mxu0
  %v1230 = vadd.f32 0.0, %v1229
  %v1231 = vpop.f32.mrb[0].mxu0
  %1232 = vmatprep.mubr.bf16.mxu0 0
  %1233 = vmatmul.mubr.bf16.gmra.mrb[0].mxu0 %v1126
  %v1234 = vpop.f32.mrb[0].mxu0
  %v1235 = vadd.f32 0.0, %v1234
  %v1236 = vpop.f32.mrb[0].mxu0
  %v1237 = vpop.f32.mrb[0].mxu0
  %v1238 = vadd.f32 0.0, %v1237
  %v1239 = vpop.f32.mrb[0].mxu0
  %1240 = vmatprep.mubr.bf16.mxu0 0
  %1241 = vmatmul.mubr.bf16.gmra.mrb[0].mxu0 %v1127
  %v1242 = vpop.f32.mrb[0].mxu0
  %v1243 = vadd.f32 0.0, %v1242
  %v1244 = vpop.f32.mrb[0].mxu0
  %v1245 = vpop.f32.mrb[0].mxu0
  %v1246 = vadd.f32 0.0, %v1245
  %v1247 = vpop.f32.mrb[0].mxu0
  %1248 = vmatprep.mubr.bf16.mxu0 0
  %1249 = vmatmul.mubr.bf16.gmra.mrb[0].mxu0 %v1128
  %v1250 = vpop.f32.mrb[0].mxu0
  %v1251 = vadd.f32 0.0, %v1250
  %v1252 = vpop.f32.mrb[0].mxu0
  %v1253 = vpop.f32.mrb[0].mxu0
  %v1254 = vadd.f32 0.0, %v1253
  %v1255 = vpop.f32.mrb[0].mxu0
  %1256 = vmatprep.mubr.bf16.mxu0 0
  %1257 = vmatmul.mubr.bf16.gmra.mrb[0].mxu0 %v1129
  %v1258 = vpop.f32.mrb[0].mxu0
  %v1259 = vadd.f32 0.0, %v1258
  %v1260 = vpop.f32.mrb[0].mxu0
  %v1261 = vpop.f32.mrb[0].mxu0
  %v1262 = vadd.f32 0.0, %v1261
  %v1263 = vpop.f32.mrb[0].mxu0
  %1264 = vmatprep.mubr.bf16.mxu0 0
  %1265 = vmatmul.mubr.bf16.gmra.mrb[0].mxu0 %v1130
  %v1266 = vpop.f32.mrb[0].mxu0
  %v1267 = vadd.f32 0.0, %v1266
  %v1268 = vpop.f32.mrb[0].mxu0
  %v1269 = vpop.f32.mrb[0].mxu0
  %v1270 = vadd.f32 0.0, %v1269
  %v1271 = vpop.f32.mrb[0].mxu0
  %1272 = vmatprep.mubr.bf16.mxu0 0
  %1273 = vmatmul.mubr.bf16.gmra.mrb[0].mxu0 %v1131
  %v1274 = vpop.f32.mrb[0].mxu0
  %v1275 = vadd.f32 0.0, %v1274
  %v1276 = vpop.f32.mrb[0].mxu0
  %v1277 = vpop.f32.mrb[0].mxu0
  %v1278 = vadd.f32 0.0, %v1277
  %v1279 = vpop.f32.mrb[0].mxu0
  %1280 = vmatprep.mubr.bf16.mxu0 0
  %1281 = vmatmul.mubr.bf16.gmra.mrb[0].mxu0 %v1132
  %v1282 = vpop.f32.mrb[0].mxu0
  %v1283 = vadd.f32 0.0, %v1282
  %v1284 = vpop.f32.mrb[0].mxu0
  %v1285 = vpop.f32.mrb[0].mxu0
  %v1286 = vadd.f32 0.0, %v1285
  %v1287 = vpop.f32.mrb[0].mxu0
  %1288 = vmatprep.mubr.bf16.mxu0 0
  %1289 = vmatmul.mubr.bf16.gmra.mrb[0].mxu0 %v1133
  %v1290 = vpop.f32.mrb[0].mxu0
  %v1291 = vadd.f32 0.0, %v1290
  %v1292 = vpop.f32.mrb[0].mxu0
  %v1293 = vpop.f32.mrb[0].mxu0
  %v1294 = vadd.f32 0.0, %v1293
  %v1295 = vpop.f32.mrb[0].mxu0
  %1296 = vmatprep.mubr.bf16.mxu0 0
  %1297 = vmatmul.mubr.bf16.gmra.mrb[0].mxu0 %v1134
  %v1298 = vpop.f32.mrb[0].mxu0
  %v1299 = vadd.f32 0.0, %v1298
  %v1300 = vpop.f32.mrb[0].mxu0
  %v1301 = vpop.f32.mrb[0].mxu0
  %v1302 = vadd.f32 0.0, %v1301
  %v1303 = vpop.f32.mrb[0].mxu0
  %1304 = vmatprep.mubr.bf16.mxu0 0
  %1305 = vmatmul.mubr.bf16.gmra.mrb[0].mxu0 %v1135
  %v1306 = vpop.f32.mrb[0].mxu0
  %v1307 = vadd.f32 0.0, %v1306
  %v1308 = vpop.f32.mrb[0].mxu0
  %v1309 = vpop.f32.mrb[0].mxu0
  %v1310 = vadd.f32 0.0, %v1309
  %v1311 = vpop.f32.mrb[0].mxu0
  %1312 = vdwg.mxu0
  %v1313 = vld [vmem:[%s6] sm:$0xf]
  %v1314 = vld [vmem:[%s6 + $0x4] sm:$0xf]
  %v1315 = vld [vmem:[%s6 + $0x8] sm:$0xf]
  %v1316 = vld [vmem:[%s6 + $0xc] sm:$0xf]
  %v1317 = vld [vmem:[%s6 + $0x10] sm:$0xf]
  %v1318 = vld [vmem:[%s6 + $0x14] sm:$0xf]
  %v1319 = vld [vmem:[%s6 + $0x18] sm:$0xf]
  %v1320 = vld [vmem:[%s6 + $0x1c] sm:$0xf]
  %v1321 = vld [vmem:[%s6 + $0x20] sm:$0xf]
  %v1322 = vld [vmem:[%s6 + $0x24] sm:$0xf]
  %v1323 = vld [vmem:[%s6 + $0x28] sm:$0xf]
  %v1324 = vld [vmem:[%s6 + $0x2c] sm:$0xf]
  %v1325 = vld [vmem:[%s6 + $0x30] sm:$0xf]
  %v1326 = vld [vmem:[%s6 + $0x34] sm:$0xf]
  %v1327 = vld [vmem:[%s6 + $0x38] sm:$0xf]
  %v1328 = vld [vmem:[%s6 + $0x3c] sm:$0xf]
  %v1329 = vld [vmem:[%s6 + $0x40] sm:$0xf]
  %v1330 = vld [vmem:[%s6 + $0x44] sm:$0xf]
  %v1331 = vld [vmem:[%s6 + $0x48] sm:$0xf]
  %v1332 = vld [vmem:[%s6 + $0x4c] sm:$0xf]
  %v1333 = vld [vmem:[%s6 + $0x50] sm:$0xf]
  %v1334 = vld [vmem:[%s6 + $0x54] sm:$0xf]
  %v1335 = vld [vmem:[%s6 + $0x58] sm:$0xf]
  %v1336 = vld [vmem:[%s6 + $0x5c] sm:$0xf]
  %v1337 = vld [vmem:[%s6 + $0x60] sm:$0xf]
  %v1338 = vld [vmem:[%s6 + $0x64] sm:$0xf]
  %v1339 = vld [vmem:[%s6 + $0x68] sm:$0xf]
  %v1340 = vld [vmem:[%s6 + $0x6c] sm:$0xf]
  %v1341 = vld [vmem:[%s6 + $0x70] sm:$0xf]
  %v1342 = vld [vmem:[%s6 + $0x74] sm:$0xf]
  %v1343 = vld [vmem:[%s6 + $0x78] sm:$0xf]
  %v1344 = vld [vmem:[%s6 + $0x7c] sm:$0xf]
  %v1377 = vunpack.c.l.b16 %v1313
  %v1378 = vunpack.c.l.b16 %v1314
  %v1379 = vunpack.c.l.b16 %v1315
  %v1380 = vunpack.c.l.b16 %v1316
  %v1381 = vunpack.c.l.b16 %v1317
  %v1382 = vunpack.c.l.b16 %v1318
  %v1383 = vunpack.c.l.b16 %v1319
  %v1384 = vunpack.c.l.b16 %v1320
  %v1385 = vunpack.c.l.b16 %v1321
  %v1386 = vunpack.c.l.b16 %v1322
  %v1387 = vunpack.c.l.b16 %v1323
  %v1388 = vunpack.c.l.b16 %v1324
  %v1389 = vunpack.c.l.b16 %v1325
  %v1390 = vunpack.c.l.b16 %v1326
  %v1391 = vunpack.c.l.b16 %v1327
  %v1392 = vunpack.c.l.b16 %v1328
  %v1393 = vunpack.c.l.b16 %v1329
  %v1394 = vunpack.c.l.b16 %v1330
  %v1395 = vunpack.c.l.b16 %v1331
  %v1396 = vunpack.c.l.b16 %v1332
  %v1397 = vunpack.c.l.b16 %v1333
  %v1398 = vunpack.c.l.b16 %v1334
  %v1399 = vunpack.c.l.b16 %v1335
  %v1400 = vunpack.c.l.b16 %v1336
  %v1401 = vunpack.c.l.b16 %v1337
  %v1402 = vunpack.c.l.b16 %v1338
  %v1403 = vunpack.c.l.b16 %v1339
  %v1404 = vunpack.c.l.b16 %v1340
  %v1405 = vunpack.c.l.b16 %v1341
  %v1406 = vunpack.c.l.b16 %v1342
  %v1407 = vunpack.c.l.b16 %v1343
  %v1408 = vunpack.c.l.b16 %v1344
  %v1409 = vpack.c.b16 %v1378, %v1377
  %v1410 = vpack.c.b16 %v1380, %v1379
  %v1411 = vpack.c.b16 %v1382, %v1381
  %v1412 = vpack.c.b16 %v1384, %v1383
  %v1413 = vpack.c.b16 %v1386, %v1385
  %v1414 = vpack.c.b16 %v1388, %v1387
  %v1415 = vpack.c.b16 %v1390, %v1389
  %v1416 = vpack.c.b16 %v1392, %v1391
  %v1417 = vpack.c.b16 %v1394, %v1393
  %v1418 = vpack.c.b16 %v1396, %v1395
  %v1419 = vpack.c.b16 %v1398, %v1397
  %v1420 = vpack.c.b16 %v1400, %v1399
  %v1421 = vpack.c.b16 %v1402, %v1401
  %v1422 = vpack.c.b16 %v1404, %v1403
  %v1423 = vpack.c.b16 %v1406, %v1405
  %v1424 = vpack.c.b16 %v1408, %v1407
  %1441 = vmatprep.subr.bf16.mxu0 0
  %1442 = vmatpush1.bf16.msra.mxu0 %v1016
  %1443 = vmatprep.subr.bf16.mxu0 0
  %1444 = vmatpush1.bf16.msra.mxu0 %v1017
  %1445 = vmatprep.subr.bf16.mxu0 0
  %1446 = vmatpush1.bf16.msra.mxu0 %v1018
  %1447 = vmatprep.subr.bf16.mxu0 0
  %1448 = vmatpush1.bf16.msra.mxu0 %v1019
  %1449 = vmatprep.subr.bf16.mxu0 0
  %1450 = vmatpush1.bf16.msra.mxu0 %v1020
  %1451 = vmatprep.subr.bf16.mxu0 0
  %1452 = vmatpush1.bf16.msra.mxu0 %v1021
  %1453 = vmatprep.subr.bf16.mxu0 0
  %1454 = vmatpush1.bf16.msra.mxu0 %v1022
  %1455 = vmatprep.subr.bf16.mxu0 0
  %1456 = vmatpush1.bf16.msra.mxu0 %v1023
  %1457 = vmatprep.subr.bf16.mxu0 0
  %1458 = vmatpush1.bf16.msra.mxu0 0
  %1459 = vmatprep.subr.bf16.mxu0 0
  %1460 = vmatpush1.bf16.msra.mxu0 0
  %1461 = vmatprep.subr.bf16.mxu0 0
  %1462 = vmatpush1.bf16.msra.mxu0 0
  %1463 = vmatprep.subr.bf16.mxu0 0
  %1464 = vmatpush1.bf16.msra.mxu0 0
  %1465 = vmatprep.subr.bf16.mxu0 0
  %1466 = vmatpush1.bf16.msra.mxu0 0
  %1467 = vmatprep.subr.bf16.mxu0 0
  %1468 = vmatpush1.bf16.msra.mxu0 0
  %1469 = vmatprep.subr.bf16.mxu0 0
  %1470 = vmatpush1.bf16.msra.mxu0 0
  %1471 = vmatprep.subr.bf16.mxu0 0
  %1472 = vmatpush1.bf16.msra.mxu0 0
  %1473 = vmatprep.mubr.bf16.mxu0 0
  %1474 = vmatmul.mubr.bf16.gmra.mrb[0].mxu0 %v1409
  %v1475 = vpop.f32.mrb[0].mxu0
  %v1476 = vadd.f32 0.0, %v1475
  %v1477 = vpop.f32.mrb[0].mxu0
  %v1478 = vpop.f32.mrb[0].mxu0
  %v1479 = vadd.f32 0.0, %v1478
  %v1480 = vpop.f32.mrb[0].mxu0
  %1481 = vmatprep.mubr.bf16.mxu0 0
  %1482 = vmatmul.mubr.bf16.gmra.mrb[0].mxu0 %v1410
  %v1483 = vpop.f32.mrb[0].mxu0
  %v1484 = vadd.f32 0.0, %v1483
  %v1485 = vpop.f32.mrb[0].mxu0
  %v1486 = vpop.f32.mrb[0].mxu0
  %v1487 = vadd.f32 0.0, %v1486
  %v1488 = vpop.f32.mrb[0].mxu0
  %1489 = vmatprep.mubr.bf16.mxu0 0
  %1490 = vmatmul.mubr.bf16.gmra.mrb[0].mxu0 %v1411
  %v1491 = vpop.f32.mrb[0].mxu0
  %v1492 = vadd.f32 0.0, %v1491
  %v1493 = vpop.f32.mrb[0].mxu0
  %v1494 = vpop.f32.mrb[0].mxu0
  %v1495 = vadd.f32 0.0, %v1494
  %v1496 = vpop.f32.mrb[0].mxu0
  %1497 = vmatprep.mubr.bf16.mxu0 0
  %1498 = vmatmul.mubr.bf16.gmra.mrb[0].mxu0 %v1412
  %v1499 = vpop.f32.mrb[0].mxu0
  %v1500 = vadd.f32 0.0, %v1499
  %v1501 = vpop.f32.mrb[0].mxu0
  %v1502 = vpop.f32.mrb[0].mxu0
  %v1503 = vadd.f32 0.0, %v1502
  %v1504 = vpop.f32.mrb[0].mxu0
  %1505 = vmatprep.mubr.bf16.mxu0 0
  %1506 = vmatmul.mubr.bf16.gmra.mrb[0].mxu0 %v1413
  %v1507 = vpop.f32.mrb[0].mxu0
  %v1508 = vadd.f32 0.0, %v1507
  %v1509 = vpop.f32.mrb[0].mxu0
  %v1510 = vpop.f32.mrb[0].mxu0
  %v1511 = vadd.f32 0.0, %v1510
  %v1512 = vpop.f32.mrb[0].mxu0
  %1513 = vmatprep.mubr.bf16.mxu0 0
  %1514 = vmatmul.mubr.bf16.gmra.mrb[0].mxu0 %v1414
  %v1515 = vpop.f32.mrb[0].mxu0
  %v1516 = vadd.f32 0.0, %v1515
  %v1517 = vpop.f32.mrb[0].mxu0
  %v1518 = vpop.f32.mrb[0].mxu0
  %v1519 = vadd.f32 0.0, %v1518
  %v1520 = vpop.f32.mrb[0].mxu0
  %1521 = vmatprep.mubr.bf16.mxu0 0
  %1522 = vmatmul.mubr.bf16.gmra.mrb[0].mxu0 %v1415
  %v1523 = vpop.f32.mrb[0].mxu0
  %v1524 = vadd.f32 0.0, %v1523
  %v1525 = vpop.f32.mrb[0].mxu0
  %v1526 = vpop.f32.mrb[0].mxu0
  %v1527 = vadd.f32 0.0, %v1526
  %v1528 = vpop.f32.mrb[0].mxu0
  %1529 = vmatprep.mubr.bf16.mxu0 0
  %1530 = vmatmul.mubr.bf16.gmra.mrb[0].mxu0 %v1416
  %v1531 = vpop.f32.mrb[0].mxu0
  %v1532 = vadd.f32 0.0, %v1531
  %v1533 = vpop.f32.mrb[0].mxu0
  %v1534 = vpop.f32.mrb[0].mxu0
  %v1535 = vadd.f32 0.0, %v1534
  %v1536 = vpop.f32.mrb[0].mxu0
  %1537 = vmatprep.mubr.bf16.mxu0 0
  %1538 = vmatmul.mubr.bf16.gmra.mrb[0].mxu0 %v1417
  %v1539 = vpop.f32.mrb[0].mxu0
  %v1540 = vadd.f32 0.0, %v1539
  %v1541 = vpop.f32.mrb[0].mxu0
  %v1542 = vpop.f32.mrb[0].mxu0
  %v1543 = vadd.f32 0.0, %v1542
  %v1544 = vpop.f32.mrb[0].mxu0
  %1545 = vmatprep.mubr.bf16.mxu0 0
  %1546 = vmatmul.mubr.bf16.gmra.mrb[0].mxu0 %v1418
  %v1547 = vpop.f32.mrb[0].mxu0
  %v1548 = vadd.f32 0.0, %v1547
  %v1549 = vpop.f32.mrb[0].mxu0
  %v1550 = vpop.f32.mrb[0].mxu0
  %v1551 = vadd.f32 0.0, %v1550
  %v1552 = vpop.f32.mrb[0].mxu0
  %1553 = vmatprep.mubr.bf16.mxu0 0
  %1554 = vmatmul.mubr.bf16.gmra.mrb[0].mxu0 %v1419
  %v1555 = vpop.f32.mrb[0].mxu0
  %v1556 = vadd.f32 0.0, %v1555
  %v1557 = vpop.f32.mrb[0].mxu0
  %v1558 = vpop.f32.mrb[0].mxu0
  %v1559 = vadd.f32 0.0, %v1558
  %v1560 = vpop.f32.mrb[0].mxu0
  %1561 = vmatprep.mubr.bf16.mxu0 0
  %1562 = vmatmul.mubr.bf16.gmra.mrb[0].mxu0 %v1420
  %v1563 = vpop.f32.mrb[0].mxu0
  %v1564 = vadd.f32 0.0, %v1563
  %v1565 = vpop.f32.mrb[0].mxu0
  %v1566 = vpop.f32.mrb[0].mxu0
  %v1567 = vadd.f32 0.0, %v1566
  %v1568 = vpop.f32.mrb[0].mxu0
  %1569 = vmatprep.mubr.bf16.mxu0 0
  %1570 = vmatmul.mubr.bf16.gmra.mrb[0].mxu0 %v1421
  %v1571 = vpop.f32.mrb[0].mxu0
  %v1572 = vadd.f32 0.0, %v1571
  %v1573 = vpop.f32.mrb[0].mxu0
  %v1574 = vpop.f32.mrb[0].mxu0
  %v1575 = vadd.f32 0.0, %v1574
  %v1576 = vpop.f32.mrb[0].mxu0
  %1577 = vmatprep.mubr.bf16.mxu0 0
  %1578 = vmatmul.mubr.bf16.gmra.mrb[0].mxu0 %v1422
  %v1579 = vpop.f32.mrb[0].mxu0
  %v1580 = vadd.f32 0.0, %v1579
  %v1581 = vpop.f32.mrb[0].mxu0
  %v1582 = vpop.f32.mrb[0].mxu0
  %v1583 = vadd.f32 0.0, %v1582
  %v1584 = vpop.f32.mrb[0].mxu0
  %1585 = vmatprep.mubr.bf16.mxu0 0
  %1586 = vmatmul.mubr.bf16.gmra.mrb[0].mxu0 %v1423
  %v1587 = vpop.f32.mrb[0].mxu0
  %v1588 = vadd.f32 0.0, %v1587
  %v1589 = vpop.f32.mrb[0].mxu0
  %v1590 = vpop.f32.mrb[0].mxu0
  %v1591 = vadd.f32 0.0, %v1590
  %v1592 = vpop.f32.mrb[0].mxu0
  %1593 = vmatprep.mubr.bf16.mxu0 0
  %1594 = vmatmul.mubr.bf16.gmra.mrb[0].mxu0 %v1424
  %v1595 = vpop.f32.mrb[0].mxu0
  %v1596 = vadd.f32 0.0, %v1595
  %v1597 = vpop.f32.mrb[0].mxu0
  %v1598 = vpop.f32.mrb[0].mxu0
  %v1599 = vadd.f32 0.0, %v1598
  %v1600 = vpop.f32.mrb[0].mxu0
  %1601 = vdwg.mxu0
  %v1602 = vld [vmem:[%s7] sm:$0xff]
  %v1603 = vld [vmem:[%s7 + $0x8] sm:$0xff]
  %v1604 = vld [vmem:[%s7 + $0x10] sm:$0xff]
  %v1605 = vld [vmem:[%s7 + $0x18] sm:$0xff]
  %v1606 = vld [vmem:[%s7 + $0x20] sm:$0xff]
  %v1607 = vld [vmem:[%s7 + $0x28] sm:$0xff]
  %v1608 = vld [vmem:[%s7 + $0x30] sm:$0xff]
  %v1609 = vld [vmem:[%s7 + $0x38] sm:$0xff]
  %v1610 = vld [vmem:[%s7 + $0x40] sm:$0xff]
  %v1611 = vld [vmem:[%s7 + $0x48] sm:$0xff]
  %v1612 = vld [vmem:[%s7 + $0x50] sm:$0xff]
  %v1613 = vld [vmem:[%s7 + $0x58] sm:$0xff]
  %v1614 = vld [vmem:[%s7 + $0x60] sm:$0xff]
  %v1615 = vld [vmem:[%s7 + $0x68] sm:$0xff]
  %v1616 = vld [vmem:[%s7 + $0x70] sm:$0xff]
  %v1617 = vld [vmem:[%s7 + $0x78] sm:$0xff]
  %v1618 = vld [vmem:[%s7 + $0x80] sm:$0xff]
  %v1619 = vld [vmem:[%s7 + $0x88] sm:$0xff]
  %v1620 = vld [vmem:[%s7 + $0x90] sm:$0xff]
  %v1621 = vld [vmem:[%s7 + $0x98] sm:$0xff]
  %v1622 = vld [vmem:[%s7 + $0xa0] sm:$0xff]
  %v1623 = vld [vmem:[%s7 + $0xa8] sm:$0xff]
  %v1624 = vld [vmem:[%s7 + $0xb0] sm:$0xff]
  %v1625 = vld [vmem:[%s7 + $0xb8] sm:$0xff]
  %v1626 = vld [vmem:[%s7 + $0xc0] sm:$0xff]
  %v1627 = vld [vmem:[%s7 + $0xc8] sm:$0xff]
  %v1628 = vld [vmem:[%s7 + $0xd0] sm:$0xff]
  %v1629 = vld [vmem:[%s7 + $0xd8] sm:$0xff]
  %v1630 = vld [vmem:[%s7 + $0xe0] sm:$0xff]
  %v1631 = vld [vmem:[%s7 + $0xe8] sm:$0xff]
  %v1632 = vld [vmem:[%s7 + $0xf0] sm:$0xff]
  %v1633 = vld [vmem:[%s7 + $0xf8] sm:$0xff]
  %v1634 = vmul.f32 %v1187, %v1602
  %v1635 = vmul.f32 %v1190, %v1603
  %v1636 = vmul.f32 %v1195, %v1604
  %v1637 = vmul.f32 %v1198, %v1605
  %v1638 = vmul.f32 %v1203, %v1606
  %v1639 = vmul.f32 %v1206, %v1607
  %v1640 = vmul.f32 %v1211, %v1608
  %v1641 = vmul.f32 %v1214, %v1609
  %v1642 = vmul.f32 %v1219, %v1610
  %v1643 = vmul.f32 %v1222, %v1611
  %v1644 = vmul.f32 %v1227, %v1612
  %v1645 = vmul.f32 %v1230, %v1613
  %v1646 = vmul.f32 %v1235, %v1614
  %v1647 = vmul.f32 %v1238, %v1615
  %v1648 = vmul.f32 %v1243, %v1616
  %v1649 = vmul.f32 %v1246, %v1617
  %v1650 = vmul.f32 %v1251, %v1618
  %v1651 = vmul.f32 %v1254, %v1619
  %v1652 = vmul.f32 %v1259, %v1620
  %v1653 = vmul.f32 %v1262, %v1621
  %v1654 = vmul.f32 %v1267, %v1622
  %v1655 = vmul.f32 %v1270, %v1623
  %v1656 = vmul.f32 %v1275, %v1624
  %v1657 = vmul.f32 %v1278, %v1625
  %v1658 = vmul.f32 %v1283, %v1626
  %v1659 = vmul.f32 %v1286, %v1627
  %v1660 = vmul.f32 %v1291, %v1628
  %v1661 = vmul.f32 %v1294, %v1629
  %v1662 = vmul.f32 %v1299, %v1630
  %v1663 = vmul.f32 %v1302, %v1631
  %v1664 = vmul.f32 %v1307, %v1632
  %v1665 = vmul.f32 %v1310, %v1633
  %v1666 = vld [vmem:[%s8] sm:$0xff]
  %v1667 = vld [vmem:[%s8 + $0x8] sm:$0xff]
  %v1668 = vld [vmem:[%s8 + $0x10] sm:$0xff]
  %v1669 = vld [vmem:[%s8 + $0x18] sm:$0xff]
  %v1670 = vld [vmem:[%s8 + $0x20] sm:$0xff]
  %v1671 = vld [vmem:[%s8 + $0x28] sm:$0xff]
  %v1672 = vld [vmem:[%s8 + $0x30] sm:$0xff]
  %v1673 = vld [vmem:[%s8 + $0x38] sm:$0xff]
  %v1674 = vld [vmem:[%s8 + $0x40] sm:$0xff]
  %v1675 = vld [vmem:[%s8 + $0x48] sm:$0xff]
  %v1676 = vld [vmem:[%s8 + $0x50] sm:$0xff]
  %v1677 = vld [vmem:[%s8 + $0x58] sm:$0xff]
  %v1678 = vld [vmem:[%s8 + $0x60] sm:$0xff]
  %v1679 = vld [vmem:[%s8 + $0x68] sm:$0xff]
  %v1680 = vld [vmem:[%s8 + $0x70] sm:$0xff]
  %v1681 = vld [vmem:[%s8 + $0x78] sm:$0xff]
  %v1682 = vld [vmem:[%s8 + $0x80] sm:$0xff]
  %v1683 = vld [vmem:[%s8 + $0x88] sm:$0xff]
  %v1684 = vld [vmem:[%s8 + $0x90] sm:$0xff]
  %v1685 = vld [vmem:[%s8 + $0x98] sm:$0xff]
  %v1686 = vld [vmem:[%s8 + $0xa0] sm:$0xff]
  %v1687 = vld [vmem:[%s8 + $0xa8] sm:$0xff]
  %v1688 = vld [vmem:[%s8 + $0xb0] sm:$0xff]
  %v1689 = vld [vmem:[%s8 + $0xb8] sm:$0xff]
  %v1690 = vld [vmem:[%s8 + $0xc0] sm:$0xff]
  %v1691 = vld [vmem:[%s8 + $0xc8] sm:$0xff]
  %v1692 = vld [vmem:[%s8 + $0xd0] sm:$0xff]
  %v1693 = vld [vmem:[%s8 + $0xd8] sm:$0xff]
  %v1694 = vld [vmem:[%s8 + $0xe0] sm:$0xff]
  %v1695 = vld [vmem:[%s8 + $0xe8] sm:$0xff]
  %v1696 = vld [vmem:[%s8 + $0xf0] sm:$0xff]
  %v1697 = vld [vmem:[%s8 + $0xf8] sm:$0xff]
  %v1698 = vmul.f32 %v1476, %v1666
  %v1699 = vmul.f32 %v1479, %v1667
  %v1700 = vmul.f32 %v1484, %v1668
  %v1701 = vmul.f32 %v1487, %v1669
  %v1702 = vmul.f32 %v1492, %v1670
  %v1703 = vmul.f32 %v1495, %v1671
  %v1704 = vmul.f32 %v1500, %v1672
  %v1705 = vmul.f32 %v1503, %v1673
  %v1706 = vmul.f32 %v1508, %v1674
  %v1707 = vmul.f32 %v1511, %v1675
  %v1708 = vmul.f32 %v1516, %v1676
  %v1709 = vmul.f32 %v1519, %v1677
  %v1710 = vmul.f32 %v1524, %v1678
  %v1711 = vmul.f32 %v1527, %v1679
  %v1712 = vmul.f32 %v1532, %v1680
  %v1713 = vmul.f32 %v1535, %v1681
  %v1714 = vmul.f32 %v1540, %v1682
  %v1715 = vmul.f32 %v1543, %v1683
  %v1716 = vmul.f32 %v1548, %v1684
  %v1717 = vmul.f32 %v1551, %v1685
  %v1718 = vmul.f32 %v1556, %v1686
  %v1719 = vmul.f32 %v1559, %v1687
  %v1720 = vmul.f32 %v1564, %v1688
  %v1721 = vmul.f32 %v1567, %v1689
  %v1722 = vmul.f32 %v1572, %v1690
  %v1723 = vmul.f32 %v1575, %v1691
  %v1724 = vmul.f32 %v1580, %v1692
  %v1725 = vmul.f32 %v1583, %v1693
  %v1726 = vmul.f32 %v1588, %v1694
  %v1727 = vmul.f32 %v1591, %v1695
  %v1728 = vmul.f32 %v1596, %v1696
  %v1729 = vmul.f32 %v1599, %v1697
  %v1730 = vadd.f32 %v1634, %v1698
  %v1731 = vadd.f32 %v1635, %v1699
  %v1732 = vadd.f32 %v1636, %v1700
  %v1733 = vadd.f32 %v1637, %v1701
  %v1734 = vadd.f32 %v1638, %v1702
  %v1735 = vadd.f32 %v1639, %v1703
  %v1736 = vadd.f32 %v1640, %v1704
  %v1737 = vadd.f32 %v1641, %v1705
  %v1738 = vadd.f32 %v1642, %v1706
  %v1739 = vadd.f32 %v1643, %v1707
  %v1740 = vadd.f32 %v1644, %v1708
  %v1741 = vadd.f32 %v1645, %v1709
  %v1742 = vadd.f32 %v1646, %v1710
  %v1743 = vadd.f32 %v1647, %v1711
  %v1744 = vadd.f32 %v1648, %v1712
  %v1745 = vadd.f32 %v1649, %v1713
  %v1746 = vadd.f32 %v1650, %v1714
  %v1747 = vadd.f32 %v1651, %v1715
  %v1748 = vadd.f32 %v1652, %v1716
  %v1749 = vadd.f32 %v1653, %v1717
  %v1750 = vadd.f32 %v1654, %v1718
  %v1751 = vadd.f32 %v1655, %v1719
  %v1752 = vadd.f32 %v1656, %v1720
  %v1753 = vadd.f32 %v1657, %v1721
  %v1754 = vadd.f32 %v1658, %v1722
  %v1755 = vadd.f32 %v1659, %v1723
  %v1756 = vadd.f32 %v1660, %v1724
  %v1757 = vadd.f32 %v1661, %v1725
  %v1758 = vadd.f32 %v1662, %v1726
  %v1759 = vadd.f32 %v1663, %v1727
  %v1760 = vadd.f32 %v1664, %v1728
  %v1761 = vadd.f32 %v1665, %v1729
  %v1762 = vpack.c.bf16 %v1731, %v1730
  %v1763 = vpack.c.bf16 %v1733, %v1732
  %v1764 = vpack.c.bf16 %v1735, %v1734
  %v1765 = vpack.c.bf16 %v1737, %v1736
  %v1766 = vpack.c.bf16 %v1739, %v1738
  %v1767 = vpack.c.bf16 %v1741, %v1740
  %v1768 = vpack.c.bf16 %v1743, %v1742
  %v1769 = vpack.c.bf16 %v1745, %v1744
  %v1770 = vpack.c.bf16 %v1747, %v1746
  %v1771 = vpack.c.bf16 %v1749, %v1748
  %v1772 = vpack.c.bf16 %v1751, %v1750
  %v1773 = vpack.c.bf16 %v1753, %v1752
  %v1774 = vpack.c.bf16 %v1755, %v1754
  %v1775 = vpack.c.bf16 %v1757, %v1756
  %v1776 = vpack.c.bf16 %v1759, %v1758
  %v1777 = vpack.c.bf16 %v1761, %v1760
  %v1778 = vld [vmem:[%s9] sm:$0xff]
  %v1779 = vld [vmem:[%s9 + $0x8] sm:$0xff]
  %v1780 = vld [vmem:[%s9 + $0x10] sm:$0xff]
  %v1781 = vld [vmem:[%s9 + $0x18] sm:$0xff]
  %v1782 = vld [vmem:[%s9 + $0x20] sm:$0xff]
  %v1783 = vld [vmem:[%s9 + $0x28] sm:$0xff]
  %v1784 = vld [vmem:[%s9 + $0x30] sm:$0xff]
  %v1785 = vld [vmem:[%s9 + $0x38] sm:$0xff]
  %v1786 = vld [vmem:[%s9 + $0x40] sm:$0xff]
  %v1787 = vld [vmem:[%s9 + $0x48] sm:$0xff]
  %v1788 = vld [vmem:[%s9 + $0x50] sm:$0xff]
  %v1789 = vld [vmem:[%s9 + $0x58] sm:$0xff]
  %v1790 = vld [vmem:[%s9 + $0x60] sm:$0xff]
  %v1791 = vld [vmem:[%s9 + $0x68] sm:$0xff]
  %v1792 = vld [vmem:[%s9 + $0x70] sm:$0xff]
  %v1793 = vld [vmem:[%s9 + $0x78] sm:$0xff]
  %v1810 = vunpack.c.l.b16 %v1778
  %v1811 = vunpack.c.h.b16 %v1778
  %v1812 = vunpack.c.l.b16 %v1779
  %v1813 = vunpack.c.h.b16 %v1779
  %v1814 = vunpack.c.l.b16 %v1780
  %v1815 = vunpack.c.h.b16 %v1780
  %v1816 = vunpack.c.l.b16 %v1781
  %v1817 = vunpack.c.h.b16 %v1781
  %v1818 = vunpack.c.l.b16 %v1782
  %v1819 = vunpack.c.h.b16 %v1782
  %v1820 = vunpack.c.l.b16 %v1783
  %v1821 = vunpack.c.h.b16 %v1783
  %v1822 = vunpack.c.l.b16 %v1784
  %v1823 = vunpack.c.h.b16 %v1784
  %v1824 = vunpack.c.l.b16 %v1785
  %v1825 = vunpack.c.h.b16 %v1785
  %v1826 = vunpack.c.l.b16 %v1786
  %v1827 = vunpack.c.h.b16 %v1786
  %v1828 = vunpack.c.l.b16 %v1787
  %v1829 = vunpack.c.h.b16 %v1787
  %v1830 = vunpack.c.l.b16 %v1788
  %v1831 = vunpack.c.h.b16 %v1788
  %v1832 = vunpack.c.l.b16 %v1789
  %v1833 = vunpack.c.h.b16 %v1789
  %v1834 = vunpack.c.l.b16 %v1790
  %v1835 = vunpack.c.h.b16 %v1790
  %v1836 = vunpack.c.l.b16 %v1791
  %v1837 = vunpack.c.h.b16 %v1791
  %v1838 = vunpack.c.l.b16 %v1792
  %v1839 = vunpack.c.h.b16 %v1792
  %v1840 = vunpack.c.l.b16 %v1793
  %v1841 = vunpack.c.h.b16 %v1793
  %v1842 = vpack.c.b16 %v1812, %v1810
  %v1843 = vpack.c.b16 %v1813, %v1811
  %v1844 = vpack.c.b16 %v1816, %v1814
  %v1845 = vpack.c.b16 %v1817, %v1815
  %v1846 = vpack.c.b16 %v1820, %v1818
  %v1847 = vpack.c.b16 %v1821, %v1819
  %v1848 = vpack.c.b16 %v1824, %v1822
  %v1849 = vpack.c.b16 %v1825, %v1823
  %v1850 = vpack.c.b16 %v1828, %v1826
  %v1851 = vpack.c.b16 %v1829, %v1827
  %v1852 = vpack.c.b16 %v1832, %v1830
  %v1853 = vpack.c.b16 %v1833, %v1831
  %v1854 = vpack.c.b16 %v1836, %v1834
  %v1855 = vpack.c.b16 %v1837, %v1835
  %v1856 = vpack.c.b16 %v1840, %v1838
  %v1857 = vpack.c.b16 %v1841, %v1839
  %1874 = vmatprep.subr.bf16.mxu0 0
  %1875 = vmatpush1.bf16.msra.mxu0 %v1762
  %1876 = vmatprep.subr.bf16.mxu0 0
  %1877 = vmatpush1.bf16.msra.mxu0 %v1763
  %1878 = vmatprep.subr.bf16.mxu0 0
  %1879 = vmatpush1.bf16.msra.mxu0 %v1764
  %1880 = vmatprep.subr.bf16.mxu0 0
  %1881 = vmatpush1.bf16.msra.mxu0 %v1765
  %1882 = vmatprep.subr.bf16.mxu0 0
  %1883 = vmatpush1.bf16.msra.mxu0 %v1766
  %1884 = vmatprep.subr.bf16.mxu0 0
  %1885 = vmatpush1.bf16.msra.mxu0 %v1767
  %1886 = vmatprep.subr.bf16.mxu0 0
  %1887 = vmatpush1.bf16.msra.mxu0 %v1768
  %1888 = vmatprep.subr.bf16.mxu0 0
  %1889 = vmatpush1.bf16.msra.mxu0 %v1769
  %1890 = vmatprep.subr.bf16.mxu0 0
  %1891 = vmatpush1.bf16.msra.mxu0 %v1770
  %1892 = vmatprep.subr.bf16.mxu0 0
  %1893 = vmatpush1.bf16.msra.mxu0 %v1771
  %1894 = vmatprep.subr.bf16.mxu0 0
  %1895 = vmatpush1.bf16.msra.mxu0 %v1772
  %1896 = vmatprep.subr.bf16.mxu0 0
  %1897 = vmatpush1.bf16.msra.mxu0 %v1773
  %1898 = vmatprep.subr.bf16.mxu0 0
  %1899 = vmatpush1.bf16.msra.mxu0 %v1774
  %1900 = vmatprep.subr.bf16.mxu0 0
  %1901 = vmatpush1.bf16.msra.mxu0 %v1775
  %1902 = vmatprep.subr.bf16.mxu0 0
  %1903 = vmatpush1.bf16.msra.mxu0 %v1776
  %1904 = vmatprep.subr.bf16.mxu0 0
  %1905 = vmatpush1.bf16.msra.mxu0 %v1777
  %1906 = vmatprep.mubr.bf16.mxu0 %v1843
  %1907 = vmatmul.mubr.bf16.gmra.mrb[0].mxu0 %v1842
  %v1908 = vpop.f32.mrb[0].mxu0
  %v1909 = vadd.f32 0.0, %v1908
  %v1910 = vpop.f32.mrb[0].mxu0
  %v1911 = vpop.f32.mrb[0].mxu0
  %v1912 = vadd.f32 0.0, %v1911
  %v1913 = vpop.f32.mrb[0].mxu0
  %1914 = vmatprep.mubr.bf16.mxu0 %v1845
  %1915 = vmatmul.mubr.bf16.gmra.mrb[0].mxu0 %v1844
  %v1916 = vpop.f32.mrb[0].mxu0
  %v1917 = vadd.f32 0.0, %v1916
  %v1918 = vpop.f32.mrb[0].mxu0
  %v1919 = vpop.f32.mrb[0].mxu0
  %v1920 = vadd.f32 0.0, %v1919
  %v1921 = vpop.f32.mrb[0].mxu0
  %1922 = vmatprep.mubr.bf16.mxu0 %v1847
  %1923 = vmatmul.mubr.bf16.gmra.mrb[0].mxu0 %v1846
  %v1924 = vpop.f32.mrb[0].mxu0
  %v1925 = vadd.f32 0.0, %v1924
  %v1926 = vpop.f32.mrb[0].mxu0
  %v1927 = vpop.f32.mrb[0].mxu0
  %v1928 = vadd.f32 0.0, %v1927
  %v1929 = vpop.f32.mrb[0].mxu0
  %1930 = vmatprep.mubr.bf16.mxu0 %v1849
  %1931 = vmatmul.mubr.bf16.gmra.mrb[0].mxu0 %v1848
  %v1932 = vpop.f32.mrb[0].mxu0
  %v1933 = vadd.f32 0.0, %v1932
  %v1934 = vpop.f32.mrb[0].mxu0
  %v1935 = vpop.f32.mrb[0].mxu0
  %v1936 = vadd.f32 0.0, %v1935
  %v1937 = vpop.f32.mrb[0].mxu0
  %1938 = vmatprep.mubr.bf16.mxu0 %v1851
  %1939 = vmatmul.mubr.bf16.gmra.mrb[0].mxu0 %v1850
  %v1940 = vpop.f32.mrb[0].mxu0
  %v1941 = vadd.f32 0.0, %v1940
  %v1942 = vpop.f32.mrb[0].mxu0
  %v1943 = vpop.f32.mrb[0].mxu0
  %v1944 = vadd.f32 0.0, %v1943
  %v1945 = vpop.f32.mrb[0].mxu0
  %1946 = vmatprep.mubr.bf16.mxu0 %v1853
  %1947 = vmatmul.mubr.bf16.gmra.mrb[0].mxu0 %v1852
  %v1948 = vpop.f32.mrb[0].mxu0
  %v1949 = vadd.f32 0.0, %v1948
  %v1950 = vpop.f32.mrb[0].mxu0
  %v1951 = vpop.f32.mrb[0].mxu0
  %v1952 = vadd.f32 0.0, %v1951
  %v1953 = vpop.f32.mrb[0].mxu0
  %1954 = vmatprep.mubr.bf16.mxu0 %v1855
  %1955 = vmatmul.mubr.bf16.gmra.mrb[0].mxu0 %v1854
  %v1956 = vpop.f32.mrb[0].mxu0
  %v1957 = vadd.f32 0.0, %v1956
  %v1958 = vpop.f32.mrb[0].mxu0
  %v1959 = vpop.f32.mrb[0].mxu0
  %v1960 = vadd.f32 0.0, %v1959
  %v1961 = vpop.f32.mrb[0].mxu0
  %1962 = vmatprep.mubr.bf16.mxu0 %v1857
  %1963 = vmatmul.mubr.bf16.gmra.mrb[0].mxu0 %v1856
  %v1964 = vpop.f32.mrb[0].mxu0
  %v1965 = vadd.f32 0.0, %v1964
  %v1966 = vpop.f32.mrb[0].mxu0
  %v1967 = vpop.f32.mrb[0].mxu0
  %v1968 = vadd.f32 0.0, %v1967
  %v1969 = vpop.f32.mrb[0].mxu0
  %1970 = vdwg.mxu0
  %v1971 = vld [vmem:[%s10] sm:$0xff]
  %v1972 = vld [vmem:[%s10 + $0x8] sm:$0xff]
  %v1973 = vld [vmem:[%s10 + $0x10] sm:$0xff]
  %v1974 = vld [vmem:[%s10 + $0x18] sm:$0xff]
  %v1975 = vld [vmem:[%s11] sm:$0xff]
  %v1976 = vld [vmem:[%s11 + $0x8] sm:$0xff]
  %v1977 = vld [vmem:[%s11 + $0x10] sm:$0xff]
  %v1978 = vld [vmem:[%s11 + $0x18] sm:$0xff]
  %v1980 = vsel %vm193, %v1909, 0
  %v1983 = vsel %vm193, %v1912, 0
  %v1986 = vsel %vm193, %v1917, 0
  %v1989 = vsel %vm193, %v1920, 0
  %v1992 = vsel %vm193, %v1925, 0
  %v1995 = vsel %vm193, %v1928, 0
  %v1998 = vsel %vm193, %v1933, 0
  %v2001 = vsel %vm193, %v1936, 0
  %v2004 = vsel %vm193, %v1941, 0
  %v2007 = vsel %vm193, %v1944, 0
  %v2010 = vsel %vm193, %v1949, 0
  %v2013 = vsel %vm193, %v1952, 0
  %v2016 = vsel %vm193, %v1957, 0
  %v2019 = vsel %vm193, %v1960, 0
  %v2022 = vsel %vm193, %v1965, 0
  %v2025 = vsel %vm193, %v1968, 0
  %2027 = vmatprep.subr.mxu0 0.0
  %2028 = vmatpush1.msra.mxu0 %v1975
  %2029 = vmatprep.subr.mxu0 0.0
  %2030 = vmatpush1.msra.mxu0 %v1976
  %2031 = vmatprep.subr.mxu0 0.0
  %2032 = vmatpush1.msra.mxu0 %v1977
  %2033 = vmatprep.subr.mxu0 0.0
  %2034 = vmatpush1.msra.mxu0 %v1978
  %2035 = vmatprep.subr.mxu0 0.0
  %2036 = vmatpush1.msra.mxu0 0.0
  %2037 = vmatprep.subr.mxu0 0.0
  %2038 = vmatpush1.msra.mxu0 0.0
  %2039 = vmatprep.subr.mxu0 0.0
  %2040 = vmatpush1.msra.mxu0 0.0
  %2041 = vmatprep.subr.mxu0 0.0
  %2042 = vmatpush1.msra.mxu0 0.0
  %2043 = vmatprep.subr.mxu0 0.0
  %2044 = vmatpush1.msra.mxu0 0.0
  %2045 = vmatprep.subr.mxu0 0.0
  %2046 = vmatpush1.msra.mxu0 0.0
  %2047 = vmatprep.subr.mxu0 0.0
  %2048 = vmatpush1.msra.mxu0 0.0
  %2049 = vmatprep.subr.mxu0 0.0
  %2050 = vmatpush1.msra.mxu0 0.0
  %2051 = vmatprep.subr.mxu0 0.0
  %2052 = vmatpush1.msra.mxu0 0.0
  %2053 = vmatprep.subr.mxu0 0.0
  %2054 = vmatpush1.msra.mxu0 0.0
  %2055 = vmatprep.subr.mxu0 0.0
  %2056 = vmatpush1.msra.mxu0 0.0
  %2057 = vmatprep.subr.mxu0 0.0
  %2058 = vmatpush1.msra.mxu0 0.0
  %2059 = vmatprep.subr.mxu0 0.0
  %2060 = vmatpush1.msra.mxu0 0.0
  %2061 = vmatprep.subr.mxu0 0.0
  %2062 = vmatpush1.msra.mxu0 0.0
  %2063 = vmatprep.subr.mxu0 0.0
  %2064 = vmatpush1.msra.mxu0 0.0
  %2065 = vmatprep.subr.mxu0 0.0
  %2066 = vmatpush1.msra.mxu0 0.0
  %2067 = vmatprep.subr.mxu0 0.0
  %2068 = vmatpush1.msra.mxu0 0.0
  %2069 = vmatprep.subr.mxu0 0.0
  %2070 = vmatpush1.msra.mxu0 0.0
  %2071 = vmatprep.subr.mxu0 0.0
  %2072 = vmatpush1.msra.mxu0 0.0
  %2073 = vmatprep.subr.mxu0 0.0
  %2074 = vmatpush1.msra.mxu0 0.0
  %2075 = vmatprep.subr.mxu0 0.0
  %2076 = vmatpush1.msra.mxu0 0.0
  %2077 = vmatprep.subr.mxu0 0.0
  %2078 = vmatpush1.msra.mxu0 0.0
  %2079 = vmatprep.subr.mxu0 0.0
  %2080 = vmatpush1.msra.mxu0 0.0
  %2081 = vmatprep.subr.mxu0 0.0
  %2082 = vmatpush1.msra.mxu0 0.0
  %2083 = vmatprep.subr.mxu0 0.0
  %2084 = vmatpush1.msra.mxu0 0.0
  %2085 = vmatprep.subr.mxu0 0.0
  %2086 = vmatpush1.msra.mxu0 0.0
  %2087 = vmatprep.subr.mxu0 0.0
  %2088 = vmatpush1.msra.mxu0 0.0
  %2089 = vmatprep.subr.mxu0 0.0
  %2090 = vmatpush1.msra.mxu0 0.0
  %2091 = vmatprep.mubr.f32.mxu0 0.0
  %2092 = vmatmul.mubr.f32.gmra.mrb[0].mxu0 %v1980
  %v2093 = vpop.f32.mrb[0].mxu0
  %v2094 = vadd.f32 0.0, %v2093
  %v2095 = vpop.f32.mrb[0].mxu0
  %2096 = vmatprep.mubr.f32.mxu0 0.0
  %2097 = vmatmul.mubr.f32.gmra.mrb[0].mxu0 %v1983
  %v2098 = vpop.f32.mrb[0].mxu0
  %v2099 = vadd.f32 0.0, %v2098
  %v2100 = vpop.f32.mrb[0].mxu0
  %2101 = vmatprep.mubr.f32.mxu0 0.0
  %2102 = vmatmul.mubr.f32.gmra.mrb[0].mxu0 %v1986
  %v2103 = vpop.f32.mrb[0].mxu0
  %v2104 = vadd.f32 0.0, %v2103
  %v2105 = vpop.f32.mrb[0].mxu0
  %2106 = vmatprep.mubr.f32.mxu0 0.0
  %2107 = vmatmul.mubr.f32.gmra.mrb[0].mxu0 %v1989
  %v2108 = vpop.f32.mrb[0].mxu0
  %v2109 = vadd.f32 0.0, %v2108
  %v2110 = vpop.f32.mrb[0].mxu0
  %2111 = vmatprep.mubr.f32.mxu0 0.0
  %2112 = vmatmul.mubr.f32.gmra.mrb[0].mxu0 %v1992
  %v2113 = vpop.f32.mrb[0].mxu0
  %v2114 = vadd.f32 0.0, %v2113
  %v2115 = vpop.f32.mrb[0].mxu0
  %2116 = vmatprep.mubr.f32.mxu0 0.0
  %2117 = vmatmul.mubr.f32.gmra.mrb[0].mxu0 %v1995
  %v2118 = vpop.f32.mrb[0].mxu0
  %v2119 = vadd.f32 0.0, %v2118
  %v2120 = vpop.f32.mrb[0].mxu0
  %2121 = vmatprep.mubr.f32.mxu0 0.0
  %2122 = vmatmul.mubr.f32.gmra.mrb[0].mxu0 %v1998
  %v2123 = vpop.f32.mrb[0].mxu0
  %v2124 = vadd.f32 0.0, %v2123
  %v2125 = vpop.f32.mrb[0].mxu0
  %2126 = vmatprep.mubr.f32.mxu0 0.0
  %2127 = vmatmul.mubr.f32.gmra.mrb[0].mxu0 %v2001
  %v2128 = vpop.f32.mrb[0].mxu0
  %v2129 = vadd.f32 0.0, %v2128
  %v2130 = vpop.f32.mrb[0].mxu0
  %2131 = vmatprep.mubr.f32.mxu0 0.0
  %2132 = vmatmul.mubr.f32.gmra.mrb[0].mxu0 %v2004
  %v2133 = vpop.f32.mrb[0].mxu0
  %v2134 = vadd.f32 0.0, %v2133
  %v2135 = vpop.f32.mrb[0].mxu0
  %2136 = vmatprep.mubr.f32.mxu0 0.0
  %2137 = vmatmul.mubr.f32.gmra.mrb[0].mxu0 %v2007
  %v2138 = vpop.f32.mrb[0].mxu0
  %v2139 = vadd.f32 0.0, %v2138
  %v2140 = vpop.f32.mrb[0].mxu0
  %2141 = vmatprep.mubr.f32.mxu0 0.0
  %2142 = vmatmul.mubr.f32.gmra.mrb[0].mxu0 %v2010
  %v2143 = vpop.f32.mrb[0].mxu0
  %v2144 = vadd.f32 0.0, %v2143
  %v2145 = vpop.f32.mrb[0].mxu0
  %2146 = vmatprep.mubr.f32.mxu0 0.0
  %2147 = vmatmul.mubr.f32.gmra.mrb[0].mxu0 %v2013
  %v2148 = vpop.f32.mrb[0].mxu0
  %v2149 = vadd.f32 0.0, %v2148
  %v2150 = vpop.f32.mrb[0].mxu0
  %2151 = vmatprep.mubr.f32.mxu0 0.0
  %2152 = vmatmul.mubr.f32.gmra.mrb[0].mxu0 %v2016
  %v2153 = vpop.f32.mrb[0].mxu0
  %v2154 = vadd.f32 0.0, %v2153
  %v2155 = vpop.f32.mrb[0].mxu0
  %2156 = vmatprep.mubr.f32.mxu0 0.0
  %2157 = vmatmul.mubr.f32.gmra.mrb[0].mxu0 %v2019
  %v2158 = vpop.f32.mrb[0].mxu0
  %v2159 = vadd.f32 0.0, %v2158
  %v2160 = vpop.f32.mrb[0].mxu0
  %2161 = vmatprep.mubr.f32.mxu0 0.0
  %2162 = vmatmul.mubr.f32.gmra.mrb[0].mxu0 %v2022
  %v2163 = vpop.f32.mrb[0].mxu0
  %v2164 = vadd.f32 0.0, %v2163
  %v2165 = vpop.f32.mrb[0].mxu0
  %2166 = vmatprep.mubr.f32.mxu0 0.0
  %2167 = vmatmul.mubr.f32.gmra.mrb[0].mxu0 %v2025
  %v2168 = vpop.f32.mrb[0].mxu0
  %v2169 = vadd.f32 0.0, %v2168
  %v2170 = vpop.f32.mrb[0].mxu0
  %2171 = vdwg.mxu0
  %2172 = vmatprep.subr.mxu0 0.0
  %2173 = vmatpush1.msra.mxu0 %v1971
  %2174 = vmatprep.subr.mxu0 0.0
  %2175 = vmatpush1.msra.mxu0 %v1972
  %2176 = vmatprep.subr.mxu0 0.0
  %2177 = vmatpush1.msra.mxu0 %v1973
  %2178 = vmatprep.subr.mxu0 0.0
  %2179 = vmatpush1.msra.mxu0 %v1974
  %2180 = vmatprep.subr.mxu0 0.0
  %2181 = vmatpush1.msra.mxu0 0.0
  %2182 = vmatprep.subr.mxu0 0.0
  %2183 = vmatpush1.msra.mxu0 0.0
  %2184 = vmatprep.subr.mxu0 0.0
  %2185 = vmatpush1.msra.mxu0 0.0
  %2186 = vmatprep.subr.mxu0 0.0
  %2187 = vmatpush1.msra.mxu0 0.0
  %2188 = vmatprep.subr.mxu0 0.0
  %2189 = vmatpush1.msra.mxu0 0.0
  %2190 = vmatprep.subr.mxu0 0.0
  %2191 = vmatpush1.msra.mxu0 0.0
  %2192 = vmatprep.subr.mxu0 0.0
  %2193 = vmatpush1.msra.mxu0 0.0
  %2194 = vmatprep.subr.mxu0 0.0
  %2195 = vmatpush1.msra.mxu0 0.0
  %2196 = vmatprep.subr.mxu0 0.0
  %2197 = vmatpush1.msra.mxu0 0.0
  %2198 = vmatprep.subr.mxu0 0.0
  %2199 = vmatpush1.msra.mxu0 0.0
  %2200 = vmatprep.subr.mxu0 0.0
  %2201 = vmatpush1.msra.mxu0 0.0
  %2202 = vmatprep.subr.mxu0 0.0
  %2203 = vmatpush1.msra.mxu0 0.0
  %2204 = vmatprep.subr.mxu0 0.0
  %2205 = vmatpush1.msra.mxu0 0.0
  %2206 = vmatprep.subr.mxu0 0.0
  %2207 = vmatpush1.msra.mxu0 0.0
  %2208 = vmatprep.subr.mxu0 0.0
  %2209 = vmatpush1.msra.mxu0 0.0
  %2210 = vmatprep.subr.mxu0 0.0
  %2211 = vmatpush1.msra.mxu0 0.0
  %2212 = vmatprep.subr.mxu0 0.0
  %2213 = vmatpush1.msra.mxu0 0.0
  %2214 = vmatprep.subr.mxu0 0.0
  %2215 = vmatpush1.msra.mxu0 0.0
  %2216 = vmatprep.subr.mxu0 0.0
  %2217 = vmatpush1.msra.mxu0 0.0
  %2218 = vmatprep.subr.mxu0 0.0
  %2219 = vmatpush1.msra.mxu0 0.0
  %2220 = vmatprep.subr.mxu0 0.0
  %2221 = vmatpush1.msra.mxu0 0.0
  %2222 = vmatprep.subr.mxu0 0.0
  %2223 = vmatpush1.msra.mxu0 0.0
  %2224 = vmatprep.subr.mxu0 0.0
  %2225 = vmatpush1.msra.mxu0 0.0
  %2226 = vmatprep.subr.mxu0 0.0
  %2227 = vmatpush1.msra.mxu0 0.0
  %2228 = vmatprep.subr.mxu0 0.0
  %2229 = vmatpush1.msra.mxu0 0.0
  %2230 = vmatprep.subr.mxu0 0.0
  %2231 = vmatpush1.msra.mxu0 0.0
  %2232 = vmatprep.subr.mxu0 0.0
  %2233 = vmatpush1.msra.mxu0 0.0
  %2234 = vmatprep.subr.mxu0 0.0
  %2235 = vmatpush1.msra.mxu0 0.0
  %2236 = vmatprep.mubr.f32.mxu0 0.0
  %2237 = vmatmul.mubr.f32.gmra.mrb[0].mxu0 %v667
  %v2238 = vpop.f32.mrb[0].mxu0
  %v2239 = vadd.f32 %v2094, %v2238
  %v2240 = vpop.f32.mrb[0].mxu0
  %2241 = vmatprep.mubr.f32.mxu0 0.0
  %2242 = vmatmul.mubr.f32.gmra.mrb[0].mxu0 %v670
  %v2243 = vpop.f32.mrb[0].mxu0
  %v2244 = vadd.f32 %v2099, %v2243
  %v2245 = vpop.f32.mrb[0].mxu0
  %2246 = vmatprep.mubr.f32.mxu0 0.0
  %2247 = vmatmul.mubr.f32.gmra.mrb[0].mxu0 %v673
  %v2248 = vpop.f32.mrb[0].mxu0
  %v2249 = vadd.f32 %v2104, %v2248
  %v2250 = vpop.f32.mrb[0].mxu0
  %2251 = vmatprep.mubr.f32.mxu0 0.0
  %2252 = vmatmul.mubr.f32.gmra.mrb[0].mxu0 %v676
  %v2253 = vpop.f32.mrb[0].mxu0
  %v2254 = vadd.f32 %v2109, %v2253
  %v2255 = vpop.f32.mrb[0].mxu0
  %2256 = vmatprep.mubr.f32.mxu0 0.0
  %2257 = vmatmul.mubr.f32.gmra.mrb[0].mxu0 %v679
  %v2258 = vpop.f32.mrb[0].mxu0
  %v2259 = vadd.f32 %v2114, %v2258
  %v2260 = vpop.f32.mrb[0].mxu0
  %2261 = vmatprep.mubr.f32.mxu0 0.0
  %2262 = vmatmul.mubr.f32.gmra.mrb[0].mxu0 %v682
  %v2263 = vpop.f32.mrb[0].mxu0
  %v2264 = vadd.f32 %v2119, %v2263
  %v2265 = vpop.f32.mrb[0].mxu0
  %2266 = vmatprep.mubr.f32.mxu0 0.0
  %2267 = vmatmul.mubr.f32.gmra.mrb[0].mxu0 %v685
  %v2268 = vpop.f32.mrb[0].mxu0
  %v2269 = vadd.f32 %v2124, %v2268
  %v2270 = vpop.f32.mrb[0].mxu0
  %2271 = vmatprep.mubr.f32.mxu0 0.0
  %2272 = vmatmul.mubr.f32.gmra.mrb[0].mxu0 %v688
  %v2273 = vpop.f32.mrb[0].mxu0
  %v2274 = vadd.f32 %v2129, %v2273
  %v2275 = vpop.f32.mrb[0].mxu0
  %2276 = vmatprep.mubr.f32.mxu0 0.0
  %2277 = vmatmul.mubr.f32.gmra.mrb[0].mxu0 %v691
  %v2278 = vpop.f32.mrb[0].mxu0
  %v2279 = vadd.f32 %v2134, %v2278
  %v2280 = vpop.f32.mrb[0].mxu0
  %2281 = vmatprep.mubr.f32.mxu0 0.0
  %2282 = vmatmul.mubr.f32.gmra.mrb[0].mxu0 %v694
  %v2283 = vpop.f32.mrb[0].mxu0
  %v2284 = vadd.f32 %v2139, %v2283
  %v2285 = vpop.f32.mrb[0].mxu0
  %2286 = vmatprep.mubr.f32.mxu0 0.0
  %2287 = vmatmul.mubr.f32.gmra.mrb[0].mxu0 %v697
  %v2288 = vpop.f32.mrb[0].mxu0
  %v2289 = vadd.f32 %v2144, %v2288
  %v2290 = vpop.f32.mrb[0].mxu0
  %2291 = vmatprep.mubr.f32.mxu0 0.0
  %2292 = vmatmul.mubr.f32.gmra.mrb[0].mxu0 %v700
  %v2293 = vpop.f32.mrb[0].mxu0
  %v2294 = vadd.f32 %v2149, %v2293
  %v2295 = vpop.f32.mrb[0].mxu0
  %2296 = vmatprep.mubr.f32.mxu0 0.0
  %2297 = vmatmul.mubr.f32.gmra.mrb[0].mxu0 %v703
  %v2298 = vpop.f32.mrb[0].mxu0
  %v2299 = vadd.f32 %v2154, %v2298
  %v2300 = vpop.f32.mrb[0].mxu0
  %2301 = vmatprep.mubr.f32.mxu0 0.0
  %2302 = vmatmul.mubr.f32.gmra.mrb[0].mxu0 %v706
  %v2303 = vpop.f32.mrb[0].mxu0
  %v2304 = vadd.f32 %v2159, %v2303
  %v2305 = vpop.f32.mrb[0].mxu0
  %2306 = vmatprep.mubr.f32.mxu0 0.0
  %2307 = vmatmul.mubr.f32.gmra.mrb[0].mxu0 %v709
  %v2308 = vpop.f32.mrb[0].mxu0
  %v2309 = vadd.f32 %v2164, %v2308
  %v2310 = vpop.f32.mrb[0].mxu0
  %2311 = vmatprep.mubr.f32.mxu0 0.0
  %2312 = vmatmul.mubr.f32.gmra.mrb[0].mxu0 %v712
  %v2313 = vpop.f32.mrb[0].mxu0
  %v2314 = vadd.f32 %v2169, %v2313
  %v2315 = vpop.f32.mrb[0].mxu0
  %2316 = vdwg.mxu0
  %2317 = vst.msk [vmem:[#allocation2] sm:$0xff] %vm193, %v2239
  %2318 = vst.msk [vmem:[#allocation2 + $0x10] sm:$0xff] %vm193, %v2244
  %2321 = vrot.lane.b32.xlu0 %v2249, 32
  %v2322 = vpop.permute.xlu0 %2321
  %2323 = vrot.lane.b32.xlu0 %v2254, 32
  %v2324 = vpop.permute.xlu0 %2323
  %2327 = vst.msk [vmem:[#allocation2] sm:$0xff] %vm218, %v2322
  %2328 = vst.msk [vmem:[#allocation2 + $0x10] sm:$0xff] %vm218, %v2324
  %2331 = vrot.lane.b32.xlu0 %v2259, 64
  %v2332 = vpop.permute.xlu0 %2331
  %2333 = vrot.lane.b32.xlu0 %v2264, 64
  %v2334 = vpop.permute.xlu0 %2333
  %2337 = vst.msk [vmem:[#allocation2] sm:$0xff] %vm255, %v2332
  %2338 = vst.msk [vmem:[#allocation2 + $0x10] sm:$0xff] %vm255, %v2334
  %2341 = vrot.lane.b32.xlu0 %v2269, 96
  %v2342 = vpop.permute.xlu0 %2341
  %2343 = vrot.lane.b32.xlu0 %v2274, 96
  %v2344 = vpop.permute.xlu0 %2343
  %2347 = vst.msk [vmem:[#allocation2] sm:$0xff] %vm288, %v2342
  %2348 = vst.msk [vmem:[#allocation2 + $0x10] sm:$0xff] %vm288, %v2344
  %2349 = vst.msk [vmem:[#allocation2 + $0x8] sm:$0xff] %vm193, %v2279
  %2350 = vst.msk [vmem:[#allocation2 + $0x18] sm:$0xff] %vm193, %v2284
  %2353 = vrot.lane.b32.xlu0 %v2289, 32
  %v2354 = vpop.permute.xlu0 %2353
  %2355 = vrot.lane.b32.xlu0 %v2294, 32
  %v2356 = vpop.permute.xlu0 %2355
  %2359 = vst.msk [vmem:[#allocation2 + $0x8] sm:$0xff] %vm218, %v2354
  %2360 = vst.msk [vmem:[#allocation2 + $0x18] sm:$0xff] %vm218, %v2356
  %2363 = vrot.lane.b32.xlu0 %v2299, 64
  %v2364 = vpop.permute.xlu0 %2363
  %2365 = vrot.lane.b32.xlu0 %v2304, 64
  %v2366 = vpop.permute.xlu0 %2365
  %2369 = vst.msk [vmem:[#allocation2 + $0x8] sm:$0xff] %vm255, %v2364
  %2370 = vst.msk [vmem:[#allocation2 + $0x18] sm:$0xff] %vm255, %v2366
  %2373 = vrot.lane.b32.xlu0 %v2309, 96
  %v2374 = vpop.permute.xlu0 %2373
  %2375 = vrot.lane.b32.xlu0 %v2314, 96
  %v2376 = vpop.permute.xlu0 %2375
  %2379 = vst.msk [vmem:[#allocation2 + $0x8] sm:$0xff] %vm288, %v2374
  %2380 = vst.msk [vmem:[#allocation2 + $0x18] sm:$0xff] %vm288, %v2376
  %v2381 = vld [vmem:[#allocation2] sm:$0xff]
  %v2382 = vld [vmem:[#allocation2 + $0x8] sm:$0xff]
  %v2383 = vld [vmem:[#allocation2 + $0x10] sm:$0xff]
  %v2384 = vld [vmem:[#allocation2 + $0x18] sm:$0xff]
  %v2385 = vpack.c.bf16 %v2383, %v2381
  %v2386 = vpack.c.bf16 %v2384, %v2382
  %v2387 = vld [vmem:[%s12] sm:$0xf]
  %v2388 = vld [vmem:[%s12 + $0x4] sm:$0xf]
  %v2389 = vld [vmem:[%s12 + $0x8] sm:$0xf]
  %v2390 = vld [vmem:[%s12 + $0xc] sm:$0xf]
  %v2391 = vld [vmem:[%s12 + $0x10] sm:$0xf]
  %v2392 = vld [vmem:[%s12 + $0x14] sm:$0xf]
  %v2393 = vld [vmem:[%s12 + $0x18] sm:$0xf]
  %v2394 = vld [vmem:[%s12 + $0x1c] sm:$0xf]
  %v2395 = vld [vmem:[%s12 + $0x20] sm:$0xf]
  %v2396 = vld [vmem:[%s12 + $0x24] sm:$0xf]
  %v2397 = vld [vmem:[%s12 + $0x28] sm:$0xf]
  %v2398 = vld [vmem:[%s12 + $0x2c] sm:$0xf]
  %v2399 = vld [vmem:[%s12 + $0x30] sm:$0xf]
  %v2400 = vld [vmem:[%s12 + $0x34] sm:$0xf]
  %v2401 = vld [vmem:[%s12 + $0x38] sm:$0xf]
  %v2402 = vld [vmem:[%s12 + $0x3c] sm:$0xf]
  %v2419 = vunpack.c.l.b16 %v2387
  %v2420 = vunpack.c.l.b16 %v2388
  %v2421 = vunpack.c.l.b16 %v2389
  %v2422 = vunpack.c.l.b16 %v2390
  %v2423 = vunpack.c.l.b16 %v2391
  %v2424 = vunpack.c.l.b16 %v2392
  %v2425 = vunpack.c.l.b16 %v2393
  %v2426 = vunpack.c.l.b16 %v2394
  %v2427 = vunpack.c.l.b16 %v2395
  %v2428 = vunpack.c.l.b16 %v2396
  %v2429 = vunpack.c.l.b16 %v2397
  %v2430 = vunpack.c.l.b16 %v2398
  %v2431 = vunpack.c.l.b16 %v2399
  %v2432 = vunpack.c.l.b16 %v2400
  %v2433 = vunpack.c.l.b16 %v2401
  %v2434 = vunpack.c.l.b16 %v2402
  %v2435 = vpack.c.b16 %v2420, %v2419
  %v2436 = vpack.c.b16 %v2422, %v2421
  %v2437 = vpack.c.b16 %v2424, %v2423
  %v2438 = vpack.c.b16 %v2426, %v2425
  %v2439 = vpack.c.b16 %v2428, %v2427
  %v2440 = vpack.c.b16 %v2430, %v2429
  %v2441 = vpack.c.b16 %v2432, %v2431
  %v2442 = vpack.c.b16 %v2434, %v2433
  %vm2443 = vcmask 130048
  %v2445 = vsel %vm2443, %v2435, 0
  %v2448 = vsel %vm2443, %v2436, 0
  %v2451 = vsel %vm2443, %v2437, 0
  %v2454 = vsel %vm2443, %v2438, 0
  %v2457 = vsel %vm2443, %v2439, 0
  %v2460 = vsel %vm2443, %v2440, 0
  %v2463 = vsel %vm2443, %v2441, 0
  %v2466 = vsel %vm2443, %v2442, 0
  %2468 = vmatprep.subr.bf16.mxu0 %v2386
  %2469 = vmatpush1.bf16.msra.mxu0 %v2385
  %2470 = vmatprep.subr.bf16.mxu0 0
  %2471 = vmatpush1.bf16.msra.mxu0 0
  %2472 = vmatprep.subr.bf16.mxu0 0
  %2473 = vmatpush1.bf16.msra.mxu0 0
  %2474 = vmatprep.subr.bf16.mxu0 0
  %2475 = vmatpush1.bf16.msra.mxu0 0
  %2476 = vmatprep.subr.bf16.mxu0 0
  %2477 = vmatpush1.bf16.msra.mxu0 0
  %2478 = vmatprep.subr.bf16.mxu0 0
  %2479 = vmatpush1.bf16.msra.mxu0 0
  %2480 = vmatprep.subr.bf16.mxu0 0
  %2481 = vmatpush1.bf16.msra.mxu0 0
  %2482 = vmatprep.subr.bf16.mxu0 0
  %2483 = vmatpush1.bf16.msra.mxu0 0
  %2484 = vmatprep.subr.bf16.mxu0 0
  %2485 = vmatpush1.bf16.msra.mxu0 0
  %2486 = vmatprep.subr.bf16.mxu0 0
  %2487 = vmatpush1.bf16.msra.mxu0 0
  %2488 = vmatprep.subr.bf16.mxu0 0
  %2489 = vmatpush1.bf16.msra.mxu0 0
  %2490 = vmatprep.subr.bf16.mxu0 0
  %2491 = vmatpush1.bf16.msra.mxu0 0
  %2492 = vmatprep.subr.bf16.mxu0 0
  %2493 = vmatpush1.bf16.msra.mxu0 0
  %2494 = vmatprep.subr.bf16.mxu0 0
  %2495 = vmatpush1.bf16.msra.mxu0 0
  %2496 = vmatprep.subr.bf16.mxu0 0
  %2497 = vmatpush1.bf16.msra.mxu0 0
  %2498 = vmatprep.subr.bf16.mxu0 0
  %2499 = vmatpush1.bf16.msra.mxu0 0
  %2500 = vmatprep.mubr.bf16.mxu0 0
  %2501 = vmatmul.mubr.bf16.gmra.mrb[0].mxu0 %v2445
  %v2502 = vpop.f32.mrb[0].mxu0
  %v2503 = vadd.f32 0.0, %v2502
  %v2504 = vpop.f32.mrb[0].mxu0
  %v2505 = vadd.f32 0.0, %v2504
  %v2506 = vpop.f32.mrb[0].mxu0
  %v2507 = vadd.f32 0.0, %v2506
  %v2508 = vpop.f32.mrb[0].mxu0
  %v2509 = vadd.f32 0.0, %v2508
  %2510 = vmatprep.mubr.bf16.mxu0 0
  %2511 = vmatmul.mubr.bf16.gmra.mrb[0].mxu0 %v2448
  %v2512 = vpop.f32.mrb[0].mxu0
  %v2513 = vadd.f32 0.0, %v2512
  %v2514 = vpop.f32.mrb[0].mxu0
  %v2515 = vadd.f32 0.0, %v2514
  %v2516 = vpop.f32.mrb[0].mxu0
  %v2517 = vadd.f32 0.0, %v2516
  %v2518 = vpop.f32.mrb[0].mxu0
  %v2519 = vadd.f32 0.0, %v2518
  %2520 = vmatprep.mubr.bf16.mxu0 0
  %2521 = vmatmul.mubr.bf16.gmra.mrb[0].mxu0 %v2451
  %v2522 = vpop.f32.mrb[0].mxu0
  %v2523 = vadd.f32 0.0, %v2522
  %v2524 = vpop.f32.mrb[0].mxu0
  %v2525 = vadd.f32 0.0, %v2524
  %v2526 = vpop.f32.mrb[0].mxu0
  %v2527 = vadd.f32 0.0, %v2526
  %v2528 = vpop.f32.mrb[0].mxu0
  %v2529 = vadd.f32 0.0, %v2528
  %2530 = vmatprep.mubr.bf16.mxu0 0
  %2531 = vmatmul.mubr.bf16.gmra.mrb[0].mxu0 %v2454
  %v2532 = vpop.f32.mrb[0].mxu0
  %v2533 = vadd.f32 0.0, %v2532
  %v2534 = vpop.f32.mrb[0].mxu0
  %v2535 = vadd.f32 0.0, %v2534
  %v2536 = vpop.f32.mrb[0].mxu0
  %v2537 = vadd.f32 0.0, %v2536
  %v2538 = vpop.f32.mrb[0].mxu0
  %v2539 = vadd.f32 0.0, %v2538
  %2540 = vmatprep.mubr.bf16.mxu0 0
  %2541 = vmatmul.mubr.bf16.gmra.mrb[0].mxu0 %v2457
  %v2542 = vpop.f32.mrb[0].mxu0
  %v2543 = vadd.f32 0.0, %v2542
  %v2544 = vpop.f32.mrb[0].mxu0
  %v2545 = vadd.f32 0.0, %v2544
  %v2546 = vpop.f32.mrb[0].mxu0
  %v2547 = vadd.f32 0.0, %v2546
  %v2548 = vpop.f32.mrb[0].mxu0
  %v2549 = vadd.f32 0.0, %v2548
  %2550 = vmatprep.mubr.bf16.mxu0 0
  %2551 = vmatmul.mubr.bf16.gmra.mrb[0].mxu0 %v2460
  %v2552 = vpop.f32.mrb[0].mxu0
  %v2553 = vadd.f32 0.0, %v2552
  %v2554 = vpop.f32.mrb[0].mxu0
  %v2555 = vadd.f32 0.0, %v2554
  %v2556 = vpop.f32.mrb[0].mxu0
  %v2557 = vadd.f32 0.0, %v2556
  %v2558 = vpop.f32.mrb[0].mxu0
  %v2559 = vadd.f32 0.0, %v2558
  %2560 = vmatprep.mubr.bf16.mxu0 0
  %2561 = vmatmul.mubr.bf16.gmra.mrb[0].mxu0 %v2463
  %v2562 = vpop.f32.mrb[0].mxu0
  %v2563 = vadd.f32 0.0, %v2562
  %v2564 = vpop.f32.mrb[0].mxu0
  %v2565 = vadd.f32 0.0, %v2564
  %v2566 = vpop.f32.mrb[0].mxu0
  %v2567 = vadd.f32 0.0, %v2566
  %v2568 = vpop.f32.mrb[0].mxu0
  %v2569 = vadd.f32 0.0, %v2568
  %2570 = vmatprep.mubr.bf16.mxu0 0
  %2571 = vmatmul.mubr.bf16.gmra.mrb[0].mxu0 %v2466
  %v2572 = vpop.f32.mrb[0].mxu0
  %v2573 = vadd.f32 0.0, %v2572
  %v2574 = vpop.f32.mrb[0].mxu0
  %v2575 = vadd.f32 0.0, %v2574
  %v2576 = vpop.f32.mrb[0].mxu0
  %v2577 = vadd.f32 0.0, %v2576
  %v2578 = vpop.f32.mrb[0].mxu0
  %v2579 = vadd.f32 0.0, %v2578
  %2580 = vdwg.mxu0
  %v2581 = vxor.u32 %v2503, 2147483648
  %v2582 = vxor.u32 %v2505, 2147483648
  %v2583 = vxor.u32 %v2507, 2147483648
  %v2584 = vxor.u32 %v2509, 2147483648
  %v2585 = vxor.u32 %v2513, 2147483648
  %v2586 = vxor.u32 %v2515, 2147483648
  %v2587 = vxor.u32 %v2517, 2147483648
  %v2588 = vxor.u32 %v2519, 2147483648
  %v2589 = vxor.u32 %v2523, 2147483648
  %v2590 = vxor.u32 %v2525, 2147483648
  %v2591 = vxor.u32 %v2527, 2147483648
  %v2592 = vxor.u32 %v2529, 2147483648
  %v2593 = vxor.u32 %v2533, 2147483648
  %v2594 = vxor.u32 %v2535, 2147483648
  %v2595 = vxor.u32 %v2537, 2147483648
  %v2596 = vxor.u32 %v2539, 2147483648
  %v2597 = vxor.u32 %v2543, 2147483648
  %v2598 = vxor.u32 %v2545, 2147483648
  %v2599 = vxor.u32 %v2547, 2147483648
  %v2600 = vxor.u32 %v2549, 2147483648
  %v2601 = vxor.u32 %v2553, 2147483648
  %v2602 = vxor.u32 %v2555, 2147483648
  %v2603 = vxor.u32 %v2557, 2147483648
  %v2604 = vxor.u32 %v2559, 2147483648
  %v2605 = vxor.u32 %v2563, 2147483648
  %v2606 = vxor.u32 %v2565, 2147483648
  %v2607 = vxor.u32 %v2567, 2147483648
  %v2608 = vxor.u32 %v2569, 2147483648
  %v2609 = vxor.u32 %v2573, 2147483648
  %v2610 = vxor.u32 %v2575, 2147483648
  %v2611 = vxor.u32 %v2577, 2147483648
  %v2612 = vxor.u32 %v2579, 2147483648
  %v2613 = vmul.f32 %v2581, 1.442695
  %v2614 = vpow.pop %v2613
  %v2615 = vmul.f32 %v2582, 1.442695
  %v2616 = vpow.pop %v2615
  %v2617 = vmul.f32 %v2583, 1.442695
  %v2618 = vpow.pop %v2617
  %v2619 = vmul.f32 %v2584, 1.442695
  %v2620 = vpow.pop %v2619
  %v2621 = vmul.f32 %v2585, 1.442695
  %v2622 = vpow.pop %v2621
  %v2623 = vmul.f32 %v2586, 1.442695
  %v2624 = vpow.pop %v2623
  %v2625 = vmul.f32 %v2587, 1.442695
  %v2626 = vpow.pop %v2625
  %v2627 = vmul.f32 %v2588, 1.442695
  %v2628 = vpow.pop %v2627
  %v2629 = vmul.f32 %v2589, 1.442695
  %v2630 = vpow.pop %v2629
  %v2631 = vmul.f32 %v2590, 1.442695
  %v2632 = vpow.pop %v2631
  %v2633 = vmul.f32 %v2591, 1.442695
  %v2634 = vpow.pop %v2633
  %v2635 = vmul.f32 %v2592, 1.442695
  %v2636 = vpow.pop %v2635
  %v2637 = vmul.f32 %v2593, 1.442695
  %v2638 = vpow.pop %v2637
  %v2639 = vmul.f32 %v2594, 1.442695
  %v2640 = vpow.pop %v2639
  %v2641 = vmul.f32 %v2595, 1.442695
  %v2642 = vpow.pop %v2641
  %v2643 = vmul.f32 %v2596, 1.442695
  %v2644 = vpow.pop %v2643
  %v2645 = vmul.f32 %v2597, 1.442695
  %v2646 = vpow.pop %v2645
  %v2647 = vmul.f32 %v2598, 1.442695
  %v2648 = vpow.pop %v2647
  %v2649 = vmul.f32 %v2599, 1.442695
  %v2650 = vpow.pop %v2649
  %v2651 = vmul.f32 %v2600, 1.442695
  %v2652 = vpow.pop %v2651
  %v2653 = vmul.f32 %v2601, 1.442695
  %v2654 = vpow.pop %v2653
  %v2655 = vmul.f32 %v2602, 1.442695
  %v2656 = vpow.pop %v2655
  %v2657 = vmul.f32 %v2603, 1.442695
  %v2658 = vpow.pop %v2657
  %v2659 = vmul.f32 %v2604, 1.442695
  %v2660 = vpow.pop %v2659
  %v2661 = vmul.f32 %v2605, 1.442695
  %v2662 = vpow.pop %v2661
  %v2663 = vmul.f32 %v2606, 1.442695
  %v2664 = vpow.pop %v2663
  %v2665 = vmul.f32 %v2607, 1.442695
  %v2666 = vpow.pop %v2665
  %v2667 = vmul.f32 %v2608, 1.442695
  %v2668 = vpow.pop %v2667
  %v2669 = vmul.f32 %v2609, 1.442695
  %v2670 = vpow.pop %v2669
  %v2671 = vmul.f32 %v2610, 1.442695
  %v2672 = vpow.pop %v2671
  %v2673 = vmul.f32 %v2611, 1.442695
  %v2674 = vpow.pop %v2673
  %v2675 = vmul.f32 %v2612, 1.442695
  %v2676 = vpow.pop %v2675
  %v2677 = vadd.f32 %v2614, 1.0
  %v2678 = vadd.f32 %v2616, 1.0
  %v2679 = vadd.f32 %v2618, 1.0
  %v2680 = vadd.f32 %v2620, 1.0
  %v2681 = vadd.f32 %v2622, 1.0
  %v2682 = vadd.f32 %v2624, 1.0
  %v2683 = vadd.f32 %v2626, 1.0
  %v2684 = vadd.f32 %v2628, 1.0
  %v2685 = vadd.f32 %v2630, 1.0
  %v2686 = vadd.f32 %v2632, 1.0
  %v2687 = vadd.f32 %v2634, 1.0
  %v2688 = vadd.f32 %v2636, 1.0
  %v2689 = vadd.f32 %v2638, 1.0
  %v2690 = vadd.f32 %v2640, 1.0
  %v2691 = vadd.f32 %v2642, 1.0
  %v2692 = vadd.f32 %v2644, 1.0
  %v2693 = vadd.f32 %v2646, 1.0
  %v2694 = vadd.f32 %v2648, 1.0
  %v2695 = vadd.f32 %v2650, 1.0
  %v2696 = vadd.f32 %v2652, 1.0
  %v2697 = vadd.f32 %v2654, 1.0
  %v2698 = vadd.f32 %v2656, 1.0
  %v2699 = vadd.f32 %v2658, 1.0
  %v2700 = vadd.f32 %v2660, 1.0
  %v2701 = vadd.f32 %v2662, 1.0
  %v2702 = vadd.f32 %v2664, 1.0
  %v2703 = vadd.f32 %v2666, 1.0
  %v2704 = vadd.f32 %v2668, 1.0
  %v2705 = vadd.f32 %v2670, 1.0
  %v2706 = vadd.f32 %v2672, 1.0
  %v2707 = vadd.f32 %v2674, 1.0
  %v2708 = vadd.f32 %v2676, 1.0
  %v2709 = vrcp.pop %v2677
  %v2710 = vmul.f32 1.0, %v2709
  %v2711 = vrcp.pop %v2678
  %v2712 = vmul.f32 1.0, %v2711
  %v2713 = vrcp.pop %v2679
  %v2714 = vmul.f32 1.0, %v2713
  %v2715 = vrcp.pop %v2680
  %v2716 = vmul.f32 1.0, %v2715
  %v2717 = vrcp.pop %v2681
  %v2718 = vmul.f32 1.0, %v2717
  %v2719 = vrcp.pop %v2682
  %v2720 = vmul.f32 1.0, %v2719
  %v2721 = vrcp.pop %v2683
  %v2722 = vmul.f32 1.0, %v2721
  %v2723 = vrcp.pop %v2684
  %v2724 = vmul.f32 1.0, %v2723
  %v2725 = vrcp.pop %v2685
  %v2726 = vmul.f32 1.0, %v2725
  %v2727 = vrcp.pop %v2686
  %v2728 = vmul.f32 1.0, %v2727
  %v2729 = vrcp.pop %v2687
  %v2730 = vmul.f32 1.0, %v2729
  %v2731 = vrcp.pop %v2688
  %v2732 = vmul.f32 1.0, %v2731
  %v2733 = vrcp.pop %v2689
  %v2734 = vmul.f32 1.0, %v2733
  %v2735 = vrcp.pop %v2690
  %v2736 = vmul.f32 1.0, %v2735
  %v2737 = vrcp.pop %v2691
  %v2738 = vmul.f32 1.0, %v2737
  %v2739 = vrcp.pop %v2692
  %v2740 = vmul.f32 1.0, %v2739
  %v2741 = vrcp.pop %v2693
  %v2742 = vmul.f32 1.0, %v2741
  %v2743 = vrcp.pop %v2694
  %v2744 = vmul.f32 1.0, %v2743
  %v2745 = vrcp.pop %v2695
  %v2746 = vmul.f32 1.0, %v2745
  %v2747 = vrcp.pop %v2696
  %v2748 = vmul.f32 1.0, %v2747
  %v2749 = vrcp.pop %v2697
  %v2750 = vmul.f32 1.0, %v2749
  %v2751 = vrcp.pop %v2698
  %v2752 = vmul.f32 1.0, %v2751
  %v2753 = vrcp.pop %v2699
  %v2754 = vmul.f32 1.0, %v2753
  %v2755 = vrcp.pop %v2700
  %v2756 = vmul.f32 1.0, %v2755
  %v2757 = vrcp.pop %v2701
  %v2758 = vmul.f32 1.0, %v2757
  %v2759 = vrcp.pop %v2702
  %v2760 = vmul.f32 1.0, %v2759
  %v2761 = vrcp.pop %v2703
  %v2762 = vmul.f32 1.0, %v2761
  %v2763 = vrcp.pop %v2704
  %v2764 = vmul.f32 1.0, %v2763
  %v2765 = vrcp.pop %v2705
  %v2766 = vmul.f32 1.0, %v2765
  %v2767 = vrcp.pop %v2706
  %v2768 = vmul.f32 1.0, %v2767
  %v2769 = vrcp.pop %v2707
  %v2770 = vmul.f32 1.0, %v2769
  %v2771 = vrcp.pop %v2708
  %v2772 = vmul.f32 1.0, %v2771
  %v2773 = vmul.f32 %v2503, %v2710
  %v2774 = vmul.f32 %v2505, %v2712
  %v2775 = vmul.f32 %v2507, %v2714
  %v2776 = vmul.f32 %v2509, %v2716
  %v2777 = vmul.f32 %v2513, %v2718
  %v2778 = vmul.f32 %v2515, %v2720
  %v2779 = vmul.f32 %v2517, %v2722
  %v2780 = vmul.f32 %v2519, %v2724
  %v2781 = vmul.f32 %v2523, %v2726
  %v2782 = vmul.f32 %v2525, %v2728
  %v2783 = vmul.f32 %v2527, %v2730
  %v2784 = vmul.f32 %v2529, %v2732
  %v2785 = vmul.f32 %v2533, %v2734
  %v2786 = vmul.f32 %v2535, %v2736
  %v2787 = vmul.f32 %v2537, %v2738
  %v2788 = vmul.f32 %v2539, %v2740
  %v2789 = vmul.f32 %v2543, %v2742
  %v2790 = vmul.f32 %v2545, %v2744
  %v2791 = vmul.f32 %v2547, %v2746
  %v2792 = vmul.f32 %v2549, %v2748
  %v2793 = vmul.f32 %v2553, %v2750
  %v2794 = vmul.f32 %v2555, %v2752
  %v2795 = vmul.f32 %v2557, %v2754
  %v2796 = vmul.f32 %v2559, %v2756
  %v2797 = vmul.f32 %v2563, %v2758
  %v2798 = vmul.f32 %v2565, %v2760
  %v2799 = vmul.f32 %v2567, %v2762
  %v2800 = vmul.f32 %v2569, %v2764
  %v2801 = vmul.f32 %v2573, %v2766
  %v2802 = vmul.f32 %v2575, %v2768
  %v2803 = vmul.f32 %v2577, %v2770
  %v2804 = vmul.f32 %v2579, %v2772
  %v2805 = vpack.c.bf16 %v2775, %v2773
  %v2806 = vpack.c.bf16 %v2776, %v2774
  %v2807 = vpack.c.bf16 %v2779, %v2777
  %v2808 = vpack.c.bf16 %v2780, %v2778
  %v2809 = vpack.c.bf16 %v2783, %v2781
  %v2810 = vpack.c.bf16 %v2784, %v2782
  %v2811 = vpack.c.bf16 %v2787, %v2785
  %v2812 = vpack.c.bf16 %v2788, %v2786
  %v2813 = vpack.c.bf16 %v2791, %v2789
  %v2814 = vpack.c.bf16 %v2792, %v2790
  %v2815 = vpack.c.bf16 %v2795, %v2793
  %v2816 = vpack.c.bf16 %v2796, %v2794
  %v2817 = vpack.c.bf16 %v2799, %v2797
  %v2818 = vpack.c.bf16 %v2800, %v2798
  %v2819 = vpack.c.bf16 %v2803, %v2801
  %v2820 = vpack.c.bf16 %v2804, %v2802
  %v2821 = vld [vmem:[#allocation3] sm:$0xff]
  %v2822 = vld [vmem:[#allocation3 + $0x8] sm:$0xff]
  %v2823 = vld [vmem:[#allocation3 + $0x10] sm:$0xff]
  %v2824 = vld [vmem:[#allocation3 + $0x18] sm:$0xff]
  %v2825 = vld [vmem:[#allocation3 + $0x20] sm:$0xff]
  %v2826 = vld [vmem:[#allocation3 + $0x28] sm:$0xff]
  %v2827 = vld [vmem:[#allocation3 + $0x30] sm:$0xff]
  %v2828 = vld [vmem:[#allocation3 + $0x38] sm:$0xff]
  %v2829 = vld [vmem:[#allocation3 + $0x40] sm:$0xff]
  %v2830 = vld [vmem:[#allocation3 + $0x48] sm:$0xff]
  %v2831 = vld [vmem:[#allocation3 + $0x50] sm:$0xff]
  %v2832 = vld [vmem:[#allocation3 + $0x58] sm:$0xff]
  %v2833 = vld [vmem:[#allocation3 + $0x60] sm:$0xff]
  %v2834 = vld [vmem:[#allocation3 + $0x68] sm:$0xff]
  %v2835 = vld [vmem:[#allocation3 + $0x70] sm:$0xff]
  %v2836 = vld [vmem:[#allocation3 + $0x78] sm:$0xff]
  %v2837 = vld [vmem:[#allocation3 + $0x80] sm:$0xff]
  %v2838 = vld [vmem:[#allocation3 + $0x88] sm:$0xff]
  %v2839 = vld [vmem:[#allocation3 + $0x90] sm:$0xff]
  %v2840 = vld [vmem:[#allocation3 + $0x98] sm:$0xff]
  %v2841 = vld [vmem:[#allocation3 + $0xa0] sm:$0xff]
  %v2842 = vld [vmem:[#allocation3 + $0xa8] sm:$0xff]
  %v2843 = vld [vmem:[#allocation3 + $0xb0] sm:$0xff]
  %v2844 = vld [vmem:[#allocation3 + $0xb8] sm:$0xff]
  %v2845 = vld [vmem:[#allocation3 + $0xc0] sm:$0xff]
  %v2846 = vld [vmem:[#allocation3 + $0xc8] sm:$0xff]
  %v2847 = vld [vmem:[#allocation3 + $0xd0] sm:$0xff]
  %v2848 = vld [vmem:[#allocation3 + $0xd8] sm:$0xff]
  %v2849 = vld [vmem:[#allocation3 + $0xe0] sm:$0xff]
  %v2850 = vld [vmem:[#allocation3 + $0xe8] sm:$0xff]
  %v2851 = vld [vmem:[#allocation3 + $0xf0] sm:$0xff]
  %v2852 = vld [vmem:[#allocation3 + $0xf8] sm:$0xff]
  %v2853 = vld [vmem:[#allocation3 + $0x100] sm:$0xff]
  %v2854 = vld [vmem:[#allocation3 + $0x108] sm:$0xff]
  %v2855 = vld [vmem:[#allocation3 + $0x110] sm:$0xff]
  %v2856 = vld [vmem:[#allocation3 + $0x118] sm:$0xff]
  %v2857 = vld [vmem:[#allocation3 + $0x120] sm:$0xff]
  %v2858 = vld [vmem:[#allocation3 + $0x128] sm:$0xff]
  %v2859 = vld [vmem:[#allocation3 + $0x130] sm:$0xff]
  %v2860 = vld [vmem:[#allocation3 + $0x138] sm:$0xff]
  %v2861 = vld [vmem:[#allocation3 + $0x140] sm:$0xff]
  %v2862 = vld [vmem:[#allocation3 + $0x148] sm:$0xff]
  %v2863 = vld [vmem:[#allocation3 + $0x150] sm:$0xff]
  %v2864 = vld [vmem:[#allocation3 + $0x158] sm:$0xff]
  %v2865 = vld [vmem:[#allocation3 + $0x160] sm:$0xff]
  %v2866 = vld [vmem:[#allocation3 + $0x168] sm:$0xff]
  %v2867 = vld [vmem:[#allocation3 + $0x170] sm:$0xff]
  %v2868 = vld [vmem:[#allocation3 + $0x178] sm:$0xff]
  %v2869 = vld [vmem:[#allocation3 + $0x180] sm:$0xff]
  %v2870 = vld [vmem:[#allocation3 + $0x188] sm:$0xff]
  %v2871 = vld [vmem:[#allocation3 + $0x190] sm:$0xff]
  %v2872 = vld [vmem:[#allocation3 + $0x198] sm:$0xff]
  %v2873 = vld [vmem:[#allocation3 + $0x1a0] sm:$0xff]
  %v2874 = vld [vmem:[#allocation3 + $0x1a8] sm:$0xff]
  %v2875 = vld [vmem:[#allocation3 + $0x1b0] sm:$0xff]
  %v2876 = vld [vmem:[#allocation3 + $0x1b8] sm:$0xff]
  %v2877 = vld [vmem:[#allocation3 + $0x1c0] sm:$0xff]
  %v2878 = vld [vmem:[#allocation3 + $0x1c8] sm:$0xff]
  %v2879 = vld [vmem:[#allocation3 + $0x1d0] sm:$0xff]
  %v2880 = vld [vmem:[#allocation3 + $0x1d8] sm:$0xff]
  %v2881 = vld [vmem:[#allocation3 + $0x1e0] sm:$0xff]
  %v2882 = vld [vmem:[#allocation3 + $0x1e8] sm:$0xff]
  %v2883 = vld [vmem:[#allocation3 + $0x1f0] sm:$0xff]
  %v2884 = vld [vmem:[#allocation3 + $0x1f8] sm:$0xff]
  %v2885 = vpack.c.bf16 %v2823, %v2821
  %v2886 = vpack.c.bf16 %v2824, %v2822
  %v2887 = vpack.c.bf16 %v2827, %v2825
  %v2888 = vpack.c.bf16 %v2828, %v2826
  %v2889 = vpack.c.bf16 %v2831, %v2829
  %v2890 = vpack.c.bf16 %v2832, %v2830
  %v2891 = vpack.c.bf16 %v2835, %v2833
  %v2892 = vpack.c.bf16 %v2836, %v2834
  %v2893 = vpack.c.bf16 %v2839, %v2837
  %v2894 = vpack.c.bf16 %v2840, %v2838
  %v2895 = vpack.c.bf16 %v2843, %v2841
  %v2896 = vpack.c.bf16 %v2844, %v2842
  %v2897 = vpack.c.bf16 %v2847, %v2845
  %v2898 = vpack.c.bf16 %v2848, %v2846
  %v2899 = vpack.c.bf16 %v2851, %v2849
  %v2900 = vpack.c.bf16 %v2852, %v2850
  %v2901 = vpack.c.bf16 %v2855, %v2853
  %v2902 = vpack.c.bf16 %v2856, %v2854
  %v2903 = vpack.c.bf16 %v2859, %v2857
  %v2904 = vpack.c.bf16 %v2860, %v2858
  %v2905 = vpack.c.bf16 %v2863, %v2861
  %v2906 = vpack.c.bf16 %v2864, %v2862
  %v2907 = vpack.c.bf16 %v2867, %v2865
  %v2908 = vpack.c.bf16 %v2868, %v2866
  %v2909 = vpack.c.bf16 %v2871, %v2869
  %v2910 = vpack.c.bf16 %v2872, %v2870
  %v2911 = vpack.c.bf16 %v2875, %v2873
  %v2912 = vpack.c.bf16 %v2876, %v2874
  %v2913 = vpack.c.bf16 %v2879, %v2877
  %v2914 = vpack.c.bf16 %v2880, %v2878
  %v2915 = vpack.c.bf16 %v2883, %v2881
  %v2916 = vpack.c.bf16 %v2884, %v2882
  %2917 = vmatprep.subr.bf16.mxu0 %v2886
  %2918 = vmatpush1.bf16.msra.mxu0 %v2885
  %2919 = vmatprep.subr.bf16.mxu0 %v2888
  %2920 = vmatpush1.bf16.msra.mxu0 %v2887
  %2921 = vmatprep.subr.bf16.mxu0 %v2890
  %2922 = vmatpush1.bf16.msra.mxu0 %v2889
  %2923 = vmatprep.subr.bf16.mxu0 %v2892
  %2924 = vmatpush1.bf16.msra.mxu0 %v2891
  %2925 = vmatprep.subr.bf16.mxu0 %v2894
  %2926 = vmatpush1.bf16.msra.mxu0 %v2893
  %2927 = vmatprep.subr.bf16.mxu0 %v2896
  %2928 = vmatpush1.bf16.msra.mxu0 %v2895
  %2929 = vmatprep.subr.bf16.mxu0 %v2898
  %2930 = vmatpush1.bf16.msra.mxu0 %v2897
  %2931 = vmatprep.subr.bf16.mxu0 %v2900
  %2932 = vmatpush1.bf16.msra.mxu0 %v2899
  %2933 = vmatprep.subr.bf16.mxu0 %v2902
  %2934 = vmatpush1.bf16.msra.mxu0 %v2901
  %2935 = vmatprep.subr.bf16.mxu0 %v2904
  %2936 = vmatpush1.bf16.msra.mxu0 %v2903
  %2937 = vmatprep.subr.bf16.mxu0 %v2906
  %2938 = vmatpush1.bf16.msra.mxu0 %v2905
  %2939 = vmatprep.subr.bf16.mxu0 %v2908
  %2940 = vmatpush1.bf16.msra.mxu0 %v2907
  %2941 = vmatprep.subr.bf16.mxu0 %v2910
  %2942 = vmatpush1.bf16.msra.mxu0 %v2909
  %2943 = vmatprep.subr.bf16.mxu0 %v2912
  %2944 = vmatpush1.bf16.msra.mxu0 %v2911
  %2945 = vmatprep.subr.bf16.mxu0 %v2914
  %2946 = vmatpush1.bf16.msra.mxu0 %v2913
  %2947 = vmatprep.subr.bf16.mxu0 %v2916
  %2948 = vmatpush1.bf16.msra.mxu0 %v2915
  %2949 = vmatprep.mubr.bf16.mxu0 %v2806
  %2950 = vmatmul.mubr.bf16.gmra.mrb[0].mxu0 %v2805
  %v2951 = vpop.f32.mrb[0].mxu0
  %v2952 = vadd.f32 0.0, %v2951
  %v2953 = vpop.f32.mrb[0].mxu0
  %v2954 = vadd.f32 0.0, %v2953
  %v2955 = vpop.f32.mrb[0].mxu0
  %v2956 = vadd.f32 0.0, %v2955
  %v2957 = vpop.f32.mrb[0].mxu0
  %v2958 = vadd.f32 0.0, %v2957
  %2959 = vmatprep.mubr.bf16.mxu0 %v2808
  %2960 = vmatmul.mubr.bf16.gmra.mrb[0].mxu0 %v2807
  %v2961 = vpop.f32.mrb[0].mxu0
  %v2962 = vadd.f32 0.0, %v2961
  %v2963 = vpop.f32.mrb[0].mxu0
  %v2964 = vadd.f32 0.0, %v2963
  %v2965 = vpop.f32.mrb[0].mxu0
  %v2966 = vadd.f32 0.0, %v2965
  %v2967 = vpop.f32.mrb[0].mxu0
  %v2968 = vadd.f32 0.0, %v2967
  %2969 = vmatprep.mubr.bf16.mxu0 %v2810
  %2970 = vmatmul.mubr.bf16.gmra.mrb[0].mxu0 %v2809
  %v2971 = vpop.f32.mrb[0].mxu0
  %v2972 = vadd.f32 0.0, %v2971
  %v2973 = vpop.f32.mrb[0].mxu0
  %v2974 = vadd.f32 0.0, %v2973
  %v2975 = vpop.f32.mrb[0].mxu0
  %v2976 = vadd.f32 0.0, %v2975
  %v2977 = vpop.f32.mrb[0].mxu0
  %v2978 = vadd.f32 0.0, %v2977
  %2979 = vmatprep.mubr.bf16.mxu0 %v2812
  %2980 = vmatmul.mubr.bf16.gmra.mrb[0].mxu0 %v2811
  %v2981 = vpop.f32.mrb[0].mxu0
  %v2982 = vadd.f32 0.0, %v2981
  %v2983 = vpop.f32.mrb[0].mxu0
  %v2984 = vadd.f32 0.0, %v2983
  %v2985 = vpop.f32.mrb[0].mxu0
  %v2986 = vadd.f32 0.0, %v2985
  %v2987 = vpop.f32.mrb[0].mxu0
  %v2988 = vadd.f32 0.0, %v2987
  %2989 = vmatprep.mubr.bf16.mxu0 %v2814
  %2990 = vmatmul.mubr.bf16.gmra.mrb[0].mxu0 %v2813
  %v2991 = vpop.f32.mrb[0].mxu0
  %v2992 = vadd.f32 0.0, %v2991
  %v2993 = vpop.f32.mrb[0].mxu0
  %v2994 = vadd.f32 0.0, %v2993
  %v2995 = vpop.f32.mrb[0].mxu0
  %v2996 = vadd.f32 0.0, %v2995
  %v2997 = vpop.f32.mrb[0].mxu0
  %v2998 = vadd.f32 0.0, %v2997
  %2999 = vmatprep.mubr.bf16.mxu0 %v2816
  %3000 = vmatmul.mubr.bf16.gmra.mrb[0].mxu0 %v2815
  %v3001 = vpop.f32.mrb[0].mxu0
  %v3002 = vadd.f32 0.0, %v3001
  %v3003 = vpop.f32.mrb[0].mxu0
  %v3004 = vadd.f32 0.0, %v3003
  %v3005 = vpop.f32.mrb[0].mxu0
  %v3006 = vadd.f32 0.0, %v3005
  %v3007 = vpop.f32.mrb[0].mxu0
  %v3008 = vadd.f32 0.0, %v3007
  %3009 = vmatprep.mubr.bf16.mxu0 %v2818
  %3010 = vmatmul.mubr.bf16.gmra.mrb[0].mxu0 %v2817
  %v3011 = vpop.f32.mrb[0].mxu0
  %v3012 = vadd.f32 0.0, %v3011
  %v3013 = vpop.f32.mrb[0].mxu0
  %v3014 = vadd.f32 0.0, %v3013
  %v3015 = vpop.f32.mrb[0].mxu0
  %v3016 = vadd.f32 0.0, %v3015
  %v3017 = vpop.f32.mrb[0].mxu0
  %v3018 = vadd.f32 0.0, %v3017
  %3019 = vmatprep.mubr.bf16.mxu0 %v2820
  %3020 = vmatmul.mubr.bf16.gmra.mrb[0].mxu0 %v2819
  %v3021 = vpop.f32.mrb[0].mxu0
  %v3022 = vadd.f32 0.0, %v3021
  %v3023 = vpop.f32.mrb[0].mxu0
  %v3024 = vadd.f32 0.0, %v3023
  %v3025 = vpop.f32.mrb[0].mxu0
  %v3026 = vadd.f32 0.0, %v3025
  %v3027 = vpop.f32.mrb[0].mxu0
  %v3028 = vadd.f32 0.0, %v3027
  %3029 = vdwg.mxu0
  %v3030 = vxor.u32 %v2952, 2147483648
  %v3031 = vxor.u32 %v2954, 2147483648
  %v3032 = vxor.u32 %v2956, 2147483648
  %v3033 = vxor.u32 %v2958, 2147483648
  %v3034 = vxor.u32 %v2962, 2147483648
  %v3035 = vxor.u32 %v2964, 2147483648
  %v3036 = vxor.u32 %v2966, 2147483648
  %v3037 = vxor.u32 %v2968, 2147483648
  %v3038 = vxor.u32 %v2972, 2147483648
  %v3039 = vxor.u32 %v2974, 2147483648
  %v3040 = vxor.u32 %v2976, 2147483648
  %v3041 = vxor.u32 %v2978, 2147483648
  %v3042 = vxor.u32 %v2982, 2147483648
  %v3043 = vxor.u32 %v2984, 2147483648
  %v3044 = vxor.u32 %v2986, 2147483648
  %v3045 = vxor.u32 %v2988, 2147483648
  %v3046 = vxor.u32 %v2992, 2147483648
  %v3047 = vxor.u32 %v2994, 2147483648
  %v3048 = vxor.u32 %v2996, 2147483648
  %v3049 = vxor.u32 %v2998, 2147483648
  %v3050 = vxor.u32 %v3002, 2147483648
  %v3051 = vxor.u32 %v3004, 2147483648
  %v3052 = vxor.u32 %v3006, 2147483648
  %v3053 = vxor.u32 %v3008, 2147483648
  %v3054 = vxor.u32 %v3012, 2147483648
  %v3055 = vxor.u32 %v3014, 2147483648
  %v3056 = vxor.u32 %v3016, 2147483648
  %v3057 = vxor.u32 %v3018, 2147483648
  %v3058 = vxor.u32 %v3022, 2147483648
  %v3059 = vxor.u32 %v3024, 2147483648
  %v3060 = vxor.u32 %v3026, 2147483648
  %v3061 = vxor.u32 %v3028, 2147483648
  %v3062 = vmul.f32 %v3030, 1.442695
  %v3063 = vpow.pop %v3062
  %v3064 = vmul.f32 %v3031, 1.442695
  %v3065 = vpow.pop %v3064
  %v3066 = vmul.f32 %v3032, 1.442695
  %v3067 = vpow.pop %v3066
  %v3068 = vmul.f32 %v3033, 1.442695
  %v3069 = vpow.pop %v3068
  %v3070 = vmul.f32 %v3034, 1.442695
  %v3071 = vpow.pop %v3070
  %v3072 = vmul.f32 %v3035, 1.442695
  %v3073 = vpow.pop %v3072
  %v3074 = vmul.f32 %v3036, 1.442695
  %v3075 = vpow.pop %v3074
  %v3076 = vmul.f32 %v3037, 1.442695
  %v3077 = vpow.pop %v3076
  %v3078 = vmul.f32 %v3038, 1.442695
  %v3079 = vpow.pop %v3078
  %v3080 = vmul.f32 %v3039, 1.442695
  %v3081 = vpow.pop %v3080
  %v3082 = vmul.f32 %v3040, 1.442695
  %v3083 = vpow.pop %v3082
  %v3084 = vmul.f32 %v3041, 1.442695
  %v3085 = vpow.pop %v3084
  %v3086 = vmul.f32 %v3042, 1.442695
  %v3087 = vpow.pop %v3086
  %v3088 = vmul.f32 %v3043, 1.442695
  %v3089 = vpow.pop %v3088
  %v3090 = vmul.f32 %v3044, 1.442695
  %v3091 = vpow.pop %v3090
  %v3092 = vmul.f32 %v3045, 1.442695
  %v3093 = vpow.pop %v3092
  %v3094 = vmul.f32 %v3046, 1.442695
  %v3095 = vpow.pop %v3094
  %v3096 = vmul.f32 %v3047, 1.442695
  %v3097 = vpow.pop %v3096
  %v3098 = vmul.f32 %v3048, 1.442695
  %v3099 = vpow.pop %v3098
  %v3100 = vmul.f32 %v3049, 1.442695
  %v3101 = vpow.pop %v3100
  %v3102 = vmul.f32 %v3050, 1.442695
  %v3103 = vpow.pop %v3102
  %v3104 = vmul.f32 %v3051, 1.442695
  %v3105 = vpow.pop %v3104
  %v3106 = vmul.f32 %v3052, 1.442695
  %v3107 = vpow.pop %v3106
  %v3108 = vmul.f32 %v3053, 1.442695
  %v3109 = vpow.pop %v3108
  %v3110 = vmul.f32 %v3054, 1.442695
  %v3111 = vpow.pop %v3110
  %v3112 = vmul.f32 %v3055, 1.442695
  %v3113 = vpow.pop %v3112
  %v3114 = vmul.f32 %v3056, 1.442695
  %v3115 = vpow.pop %v3114
  %v3116 = vmul.f32 %v3057, 1.442695
  %v3117 = vpow.pop %v3116
  %v3118 = vmul.f32 %v3058, 1.442695
  %v3119 = vpow.pop %v3118
  %v3120 = vmul.f32 %v3059, 1.442695
  %v3121 = vpow.pop %v3120
  %v3122 = vmul.f32 %v3060, 1.442695
  %v3123 = vpow.pop %v3122
  %v3124 = vmul.f32 %v3061, 1.442695
  %v3125 = vpow.pop %v3124
  %v3126 = vadd.f32 %v3063, 1.0
  %v3127 = vadd.f32 %v3065, 1.0
  %v3128 = vadd.f32 %v3067, 1.0
  %v3129 = vadd.f32 %v3069, 1.0
  %v3130 = vadd.f32 %v3071, 1.0
  %v3131 = vadd.f32 %v3073, 1.0
  %v3132 = vadd.f32 %v3075, 1.0
  %v3133 = vadd.f32 %v3077, 1.0
  %v3134 = vadd.f32 %v3079, 1.0
  %v3135 = vadd.f32 %v3081, 1.0
  %v3136 = vadd.f32 %v3083, 1.0
  %v3137 = vadd.f32 %v3085, 1.0
  %v3138 = vadd.f32 %v3087, 1.0
  %v3139 = vadd.f32 %v3089, 1.0
  %v3140 = vadd.f32 %v3091, 1.0
  %v3141 = vadd.f32 %v3093, 1.0
  %v3142 = vadd.f32 %v3095, 1.0
  %v3143 = vadd.f32 %v3097, 1.0
  %v3144 = vadd.f32 %v3099, 1.0
  %v3145 = vadd.f32 %v3101, 1.0
  %v3146 = vadd.f32 %v3103, 1.0
  %v3147 = vadd.f32 %v3105, 1.0
  %v3148 = vadd.f32 %v3107, 1.0
  %v3149 = vadd.f32 %v3109, 1.0
  %v3150 = vadd.f32 %v3111, 1.0
  %v3151 = vadd.f32 %v3113, 1.0
  %v3152 = vadd.f32 %v3115, 1.0
  %v3153 = vadd.f32 %v3117, 1.0
  %v3154 = vadd.f32 %v3119, 1.0
  %v3155 = vadd.f32 %v3121, 1.0
  %v3156 = vadd.f32 %v3123, 1.0
  %v3157 = vadd.f32 %v3125, 1.0
  %v3158 = vrcp.pop %v3126
  %v3159 = vmul.f32 1.0, %v3158
  %v3160 = vrcp.pop %v3127
  %v3161 = vmul.f32 1.0, %v3160
  %v3162 = vrcp.pop %v3128
  %v3163 = vmul.f32 1.0, %v3162
  %v3164 = vrcp.pop %v3129
  %v3165 = vmul.f32 1.0, %v3164
  %v3166 = vrcp.pop %v3130
  %v3167 = vmul.f32 1.0, %v3166
  %v3168 = vrcp.pop %v3131
  %v3169 = vmul.f32 1.0, %v3168
  %v3170 = vrcp.pop %v3132
  %v3171 = vmul.f32 1.0, %v3170
  %v3172 = vrcp.pop %v3133
  %v3173 = vmul.f32 1.0, %v3172
  %v3174 = vrcp.pop %v3134
  %v3175 = vmul.f32 1.0, %v3174
  %v3176 = vrcp.pop %v3135
  %v3177 = vmul.f32 1.0, %v3176
  %v3178 = vrcp.pop %v3136
  %v3179 = vmul.f32 1.0, %v3178
  %v3180 = vrcp.pop %v3137
  %v3181 = vmul.f32 1.0, %v3180
  %v3182 = vrcp.pop %v3138
  %v3183 = vmul.f32 1.0, %v3182
  %v3184 = vrcp.pop %v3139
  %v3185 = vmul.f32 1.0, %v3184
  %v3186 = vrcp.pop %v3140
  %v3187 = vmul.f32 1.0, %v3186
  %v3188 = vrcp.pop %v3141
  %v3189 = vmul.f32 1.0, %v3188
  %v3190 = vrcp.pop %v3142
  %v3191 = vmul.f32 1.0, %v3190
  %v3192 = vrcp.pop %v3143
  %v3193 = vmul.f32 1.0, %v3192
  %v3194 = vrcp.pop %v3144
  %v3195 = vmul.f32 1.0, %v3194
  %v3196 = vrcp.pop %v3145
  %v3197 = vmul.f32 1.0, %v3196
  %v3198 = vrcp.pop %v3146
  %v3199 = vmul.f32 1.0, %v3198
  %v3200 = vrcp.pop %v3147
  %v3201 = vmul.f32 1.0, %v3200
  %v3202 = vrcp.pop %v3148
  %v3203 = vmul.f32 1.0, %v3202
  %v3204 = vrcp.pop %v3149
  %v3205 = vmul.f32 1.0, %v3204
  %v3206 = vrcp.pop %v3150
  %v3207 = vmul.f32 1.0, %v3206
  %v3208 = vrcp.pop %v3151
  %v3209 = vmul.f32 1.0, %v3208
  %v3210 = vrcp.pop %v3152
  %v3211 = vmul.f32 1.0, %v3210
  %v3212 = vrcp.pop %v3153
  %v3213 = vmul.f32 1.0, %v3212
  %v3214 = vrcp.pop %v3154
  %v3215 = vmul.f32 1.0, %v3214
  %v3216 = vrcp.pop %v3155
  %v3217 = vmul.f32 1.0, %v3216
  %v3218 = vrcp.pop %v3156
  %v3219 = vmul.f32 1.0, %v3218
  %v3220 = vrcp.pop %v3157
  %v3221 = vmul.f32 1.0, %v3220
  %v3222 = vmul.f32 %v2952, %v3159
  %v3223 = vmul.f32 %v2954, %v3161
  %v3224 = vmul.f32 %v2956, %v3163
  %v3225 = vmul.f32 %v2958, %v3165
  %v3226 = vmul.f32 %v2962, %v3167
  %v3227 = vmul.f32 %v2964, %v3169
  %v3228 = vmul.f32 %v2966, %v3171
  %v3229 = vmul.f32 %v2968, %v3173
  %v3230 = vmul.f32 %v2972, %v3175
  %v3231 = vmul.f32 %v2974, %v3177
  %v3232 = vmul.f32 %v2976, %v3179
  %v3233 = vmul.f32 %v2978, %v3181
  %v3234 = vmul.f32 %v2982, %v3183
  %v3235 = vmul.f32 %v2984, %v3185
  %v3236 = vmul.f32 %v2986, %v3187
  %v3237 = vmul.f32 %v2988, %v3189
  %v3238 = vmul.f32 %v2992, %v3191
  %v3239 = vmul.f32 %v2994, %v3193
  %v3240 = vmul.f32 %v2996, %v3195
  %v3241 = vmul.f32 %v2998, %v3197
  %v3242 = vmul.f32 %v3002, %v3199
  %v3243 = vmul.f32 %v3004, %v3201
  %v3244 = vmul.f32 %v3006, %v3203
  %v3245 = vmul.f32 %v3008, %v3205
  %v3246 = vmul.f32 %v3012, %v3207
  %v3247 = vmul.f32 %v3014, %v3209
  %v3248 = vmul.f32 %v3016, %v3211
  %v3249 = vmul.f32 %v3018, %v3213
  %v3250 = vmul.f32 %v3022, %v3215
  %v3251 = vmul.f32 %v3024, %v3217
  %v3252 = vmul.f32 %v3026, %v3219
  %v3253 = vmul.f32 %v3028, %v3221
  %v3254 = vld [vmem:[%s13] sm:$0xf]
  %v3255 = vld [vmem:[%s13 + $0x4] sm:$0xf]
  %v3256 = vpack.c.bf16 %v3224, %v3222
  %v3257 = vpack.c.bf16 %v3225, %v3223
  %v3258 = vpack.c.bf16 %v3228, %v3226
  %v3259 = vpack.c.bf16 %v3229, %v3227
  %v3260 = vpack.c.bf16 %v3232, %v3230
  %v3261 = vpack.c.bf16 %v3233, %v3231
  %v3262 = vpack.c.bf16 %v3236, %v3234
  %v3263 = vpack.c.bf16 %v3237, %v3235
  %v3264 = vpack.c.bf16 %v3240, %v3238
  %v3265 = vpack.c.bf16 %v3241, %v3239
  %v3266 = vpack.c.bf16 %v3244, %v3242
  %v3267 = vpack.c.bf16 %v3245, %v3243
  %v3268 = vpack.c.bf16 %v3248, %v3246
  %v3269 = vpack.c.bf16 %v3249, %v3247
  %v3270 = vpack.c.bf16 %v3252, %v3250
  %v3271 = vpack.c.bf16 %v3253, %v3251
  %v3274 = vunpack.c.l.b16 %v3254
  %v3275 = vunpack.c.l.b16 %v3255
  %v3276 = vpack.c.b16 %v3275, %v3274
  %3278 = vmatprep.subr.bf16.mxu0 %v3257
  %3279 = vmatpush1.bf16.msra.mxu0 %v3256
  %3280 = vmatprep.subr.bf16.mxu0 %v3259
  %3281 = vmatpush1.bf16.msra.mxu0 %v3258
  %3282 = vmatprep.subr.bf16.mxu0 %v3261
  %3283 = vmatpush1.bf16.msra.mxu0 %v3260
  %3284 = vmatprep.subr.bf16.mxu0 %v3263
  %3285 = vmatpush1.bf16.msra.mxu0 %v3262
  %3286 = vmatprep.subr.bf16.mxu0 %v3265
  %3287 = vmatpush1.bf16.msra.mxu0 %v3264
  %3288 = vmatprep.subr.bf16.mxu0 %v3267
  %3289 = vmatpush1.bf16.msra.mxu0 %v3266
  %3290 = vmatprep.subr.bf16.mxu0 %v3269
  %3291 = vmatpush1.bf16.msra.mxu0 %v3268
  %3292 = vmatprep.subr.bf16.mxu0 %v3271
  %3293 = vmatpush1.bf16.msra.mxu0 %v3270
  %3294 = vmatprep.subr.bf16.mxu0 0
  %3295 = vmatpush1.bf16.msra.mxu0 0
  %3296 = vmatprep.subr.bf16.mxu0 0
  %3297 = vmatpush1.bf16.msra.mxu0 0
  %3298 = vmatprep.subr.bf16.mxu0 0
  %3299 = vmatpush1.bf16.msra.mxu0 0
  %3300 = vmatprep.subr.bf16.mxu0 0
  %3301 = vmatpush1.bf16.msra.mxu0 0
  %3302 = vmatprep.subr.bf16.mxu0 0
  %3303 = vmatpush1.bf16.msra.mxu0 0
  %3304 = vmatprep.subr.bf16.mxu0 0
  %3305 = vmatpush1.bf16.msra.mxu0 0
  %3306 = vmatprep.subr.bf16.mxu0 0
  %3307 = vmatpush1.bf16.msra.mxu0 0
  %3308 = vmatprep.subr.bf16.mxu0 0
  %3309 = vmatpush1.bf16.msra.mxu0 0
  %3310 = vmatprep.mubr.bf16.mxu0 0
  %3311 = vmatmul.mubr.bf16.gmra.mrb[0].mxu0 %v3276
  %v3312 = vpop.f32.mrb[0].mxu0
  %v3313 = vadd.f32 0.0, %v3312
  %v3314 = vpop.f32.mrb[0].mxu0
  %v3315 = vadd.f32 0.0, %v3314
  %v3316 = vpop.f32.mrb[0].mxu0
  %v3317 = vadd.f32 0.0, %v3316
  %v3318 = vpop.f32.mrb[0].mxu0
  %v3319 = vadd.f32 0.0, %v3318
  %3320 = vdwg.mxu0
  %v3321 = vpack.c.bf16 %v3317, %v3313
  %v3322 = vpack.c.bf16 %v3319, %v3315
  %v3323 = vld [vmem:[#allocation4] sm:$0xff]
  %v3324 = vld [vmem:[#allocation4 + $0x8] sm:$0xff]
  %v3325 = vld [vmem:[#allocation4 + $0x10] sm:$0xff]
  %v3326 = vld [vmem:[#allocation4 + $0x18] sm:$0xff]
  %v3327 = vld [vmem:[#allocation4 + $0x20] sm:$0xff]
  %v3328 = vld [vmem:[#allocation4 + $0x28] sm:$0xff]
  %v3329 = vld [vmem:[#allocation4 + $0x30] sm:$0xff]
  %v3330 = vld [vmem:[#allocation4 + $0x38] sm:$0xff]
  %v3331 = vld [vmem:[#allocation4 + $0x40] sm:$0xff]
  %v3332 = vld [vmem:[#allocation4 + $0x48] sm:$0xff]
  %v3333 = vld [vmem:[#allocation4 + $0x50] sm:$0xff]
  %v3334 = vld [vmem:[#allocation4 + $0x58] sm:$0xff]
  %v3335 = vld [vmem:[#allocation4 + $0x60] sm:$0xff]
  %v3336 = vld [vmem:[#allocation4 + $0x68] sm:$0xff]
  %v3337 = vld [vmem:[#allocation4 + $0x70] sm:$0xff]
  %v3338 = vld [vmem:[#allocation4 + $0x78] sm:$0xff]
  %v3339 = vld [vmem:[#allocation4 + $0x80] sm:$0xff]
  %v3340 = vld [vmem:[#allocation4 + $0x88] sm:$0xff]
  %v3341 = vld [vmem:[#allocation4 + $0x90] sm:$0xff]
  %v3342 = vld [vmem:[#allocation4 + $0x98] sm:$0xff]
  %v3343 = vld [vmem:[#allocation4 + $0xa0] sm:$0xff]
  %v3344 = vld [vmem:[#allocation4 + $0xa8] sm:$0xff]
  %v3345 = vld [vmem:[#allocation4 + $0xb0] sm:$0xff]
  %v3346 = vld [vmem:[#allocation4 + $0xb8] sm:$0xff]
  %v3347 = vld [vmem:[#allocation4 + $0xc0] sm:$0xff]
  %v3348 = vld [vmem:[#allocation4 + $0xc8] sm:$0xff]
  %v3349 = vld [vmem:[#allocation4 + $0xd0] sm:$0xff]
  %v3350 = vld [vmem:[#allocation4 + $0xd8] sm:$0xff]
  %v3351 = vld [vmem:[#allocation4 + $0xe0] sm:$0xff]
  %v3352 = vld [vmem:[#allocation4 + $0xe8] sm:$0xff]
  %v3353 = vld [vmem:[#allocation4 + $0xf0] sm:$0xff]
  %v3354 = vld [vmem:[#allocation4 + $0xf8] sm:$0xff]
  %v3355 = vld [vmem:[#allocation4 + $0x100] sm:$0xff]
  %v3356 = vld [vmem:[#allocation4 + $0x108] sm:$0xff]
  %v3357 = vld [vmem:[#allocation4 + $0x110] sm:$0xff]
  %v3358 = vld [vmem:[#allocation4 + $0x118] sm:$0xff]
  %v3359 = vld [vmem:[#allocation4 + $0x120] sm:$0xff]
  %v3360 = vld [vmem:[#allocation4 + $0x128] sm:$0xff]
  %v3361 = vld [vmem:[#allocation4 + $0x130] sm:$0xff]
  %v3362 = vld [vmem:[#allocation4 + $0x138] sm:$0xff]
  %v3363 = vld [vmem:[#allocation4 + $0x140] sm:$0xff]
  %v3364 = vld [vmem:[#allocation4 + $0x148] sm:$0xff]
  %v3365 = vld [vmem:[#allocation4 + $0x150] sm:$0xff]
  %v3366 = vld [vmem:[#allocation4 + $0x158] sm:$0xff]
  %v3367 = vld [vmem:[#allocation4 + $0x160] sm:$0xff]
  %v3368 = vld [vmem:[#allocation4 + $0x168] sm:$0xff]
  %v3369 = vld [vmem:[#allocation4 + $0x170] sm:$0xff]
  %v3370 = vld [vmem:[#allocation4 + $0x178] sm:$0xff]
  %v3371 = vld [vmem:[#allocation4 + $0x180] sm:$0xff]
  %v3372 = vld [vmem:[#allocation4 + $0x188] sm:$0xff]
  %v3373 = vld [vmem:[#allocation4 + $0x190] sm:$0xff]
  %v3374 = vld [vmem:[#allocation4 + $0x198] sm:$0xff]
  %v3375 = vld [vmem:[#allocation4 + $0x1a0] sm:$0xff]
  %v3376 = vld [vmem:[#allocation4 + $0x1a8] sm:$0xff]
  %v3377 = vld [vmem:[#allocation4 + $0x1b0] sm:$0xff]
  %v3378 = vld [vmem:[#allocation4 + $0x1b8] sm:$0xff]
  %v3379 = vld [vmem:[#allocation4 + $0x1c0] sm:$0xff]
  %v3380 = vld [vmem:[#allocation4 + $0x1c8] sm:$0xff]
  %v3381 = vld [vmem:[#allocation4 + $0x1d0] sm:$0xff]
  %v3382 = vld [vmem:[#allocation4 + $0x1d8] sm:$0xff]
  %v3383 = vld [vmem:[#allocation4 + $0x1e0] sm:$0xff]
  %v3384 = vld [vmem:[#allocation4 + $0x1e8] sm:$0xff]
  %v3385 = vld [vmem:[#allocation4 + $0x1f0] sm:$0xff]
  %v3386 = vld [vmem:[#allocation4 + $0x1f8] sm:$0xff]
  %v3387 = vpack.c.bf16 %v3325, %v3323
  %v3388 = vpack.c.bf16 %v3326, %v3324
  %v3389 = vpack.c.bf16 %v3329, %v3327
  %v3390 = vpack.c.bf16 %v3330, %v3328
  %v3391 = vpack.c.bf16 %v3333, %v3331
  %v3392 = vpack.c.bf16 %v3334, %v3332
  %v3393 = vpack.c.bf16 %v3337, %v3335
  %v3394 = vpack.c.bf16 %v3338, %v3336
  %v3395 = vpack.c.bf16 %v3341, %v3339
  %v3396 = vpack.c.bf16 %v3342, %v3340
  %v3397 = vpack.c.bf16 %v3345, %v3343
  %v3398 = vpack.c.bf16 %v3346, %v3344
  %v3399 = vpack.c.bf16 %v3349, %v3347
  %v3400 = vpack.c.bf16 %v3350, %v3348
  %v3401 = vpack.c.bf16 %v3353, %v3351
  %v3402 = vpack.c.bf16 %v3354, %v3352
  %v3403 = vpack.c.bf16 %v3357, %v3355
  %v3404 = vpack.c.bf16 %v3358, %v3356
  %v3405 = vpack.c.bf16 %v3361, %v3359
  %v3406 = vpack.c.bf16 %v3362, %v3360
  %v3407 = vpack.c.bf16 %v3365, %v3363
  %v3408 = vpack.c.bf16 %v3366, %v3364
  %v3409 = vpack.c.bf16 %v3369, %v3367
  %v3410 = vpack.c.bf16 %v3370, %v3368
  %v3411 = vpack.c.bf16 %v3373, %v3371
  %v3412 = vpack.c.bf16 %v3374, %v3372
  %v3413 = vpack.c.bf16 %v3377, %v3375
  %v3414 = vpack.c.bf16 %v3378, %v3376
  %v3415 = vpack.c.bf16 %v3381, %v3379
  %v3416 = vpack.c.bf16 %v3382, %v3380
  %v3417 = vpack.c.bf16 %v3385, %v3383
  %v3418 = vpack.c.bf16 %v3386, %v3384
  %v3419 = vld [vmem:[%s16] sm:$0xff]
  %v3420 = vld [vmem:[%s16 + $0x8] sm:$0xff]
  %v3421 = vld [vmem:[%s16 + $0x10] sm:$0xff]
  %v3422 = vld [vmem:[%s16 + $0x18] sm:$0xff]
  %3423 = vmatprep.subr.bf16.mxu0 %v3388
  %3424 = vmatpush1.bf16.msra.mxu0 %v3387
  %3425 = vmatprep.subr.bf16.mxu0 %v3390
  %3426 = vmatpush1.bf16.msra.mxu0 %v3389
  %3427 = vmatprep.subr.bf16.mxu0 %v3392
  %3428 = vmatpush1.bf16.msra.mxu0 %v3391
  %3429 = vmatprep.subr.bf16.mxu0 %v3394
  %3430 = vmatpush1.bf16.msra.mxu0 %v3393
  %3431 = vmatprep.subr.bf16.mxu0 %v3396
  %3432 = vmatpush1.bf16.msra.mxu0 %v3395
  %3433 = vmatprep.subr.bf16.mxu0 %v3398
  %3434 = vmatpush1.bf16.msra.mxu0 %v3397
  %3435 = vmatprep.subr.bf16.mxu0 %v3400
  %3436 = vmatpush1.bf16.msra.mxu0 %v3399
  %3437 = vmatprep.subr.bf16.mxu0 %v3402
  %3438 = vmatpush1.bf16.msra.mxu0 %v3401
  %3439 = vmatprep.subr.bf16.mxu0 %v3404
  %3440 = vmatpush1.bf16.msra.mxu0 %v3403
  %3441 = vmatprep.subr.bf16.mxu0 %v3406
  %3442 = vmatpush1.bf16.msra.mxu0 %v3405
  %3443 = vmatprep.subr.bf16.mxu0 %v3408
  %3444 = vmatpush1.bf16.msra.mxu0 %v3407
  %3445 = vmatprep.subr.bf16.mxu0 %v3410
  %3446 = vmatpush1.bf16.msra.mxu0 %v3409
  %3447 = vmatprep.subr.bf16.mxu0 %v3412
  %3448 = vmatpush1.bf16.msra.mxu0 %v3411
  %3449 = vmatprep.subr.bf16.mxu0 %v3414
  %3450 = vmatpush1.bf16.msra.mxu0 %v3413
  %3451 = vmatprep.subr.bf16.mxu0 %v3416
  %3452 = vmatpush1.bf16.msra.mxu0 %v3415
  %3453 = vmatprep.subr.bf16.mxu0 %v3418
  %3454 = vmatpush1.bf16.msra.mxu0 %v3417
  %3455 = vmatprep.mubr.bf16.mxu0 %v3322
  %3456 = vmatmul.mubr.bf16.gmra.mrb[0].mxu0 %v3321
  %v3457 = vpop.f32.mrb[0].mxu0
  %v3458 = vadd.f32 %v3419, %v3457
  %v3459 = vpop.f32.mrb[0].mxu0
  %v3460 = vadd.f32 %v3420, %v3459
  %v3461 = vpop.f32.mrb[0].mxu0
  %v3462 = vadd.f32 %v3421, %v3461
  %v3463 = vpop.f32.mrb[0].mxu0
  %v3464 = vadd.f32 %v3422, %v3463
  %3465 = vdwg.mxu0
  %3466 = vst [vmem:[%s17] sm:$0xff] %v3458
  %3467 = vst [vmem:[%s17 + $0x8] sm:$0xff] %v3460
  %3468 = vst [vmem:[%s17 + $0x10] sm:$0xff] %v3462
  %3469 = vst [vmem:[%s17 + $0x18] sm:$0xff] %v3464
  // Predicated region
  $region70: #{pairnet_layer_forward.1} parent=0 // pred_check
    _
  $region71: #{pairnet_layer_forward.1} parent=0 // pred_check_branch
    %3471 = sbr.rel (0) target = $region73
  $region72: #{pairnet_layer_forward.1} parent=0 // pred_region
    _
  $region73: #{pairnet_layer_forward.1} parent=0 // pred_fallthru
    _
  // Predicated region
  $region74: #{pairnet_layer_forward.1} parent=0 // pred_check
    _
  $region75: #{pairnet_layer_forward.1} parent=0 // pred_check_branch
    %3473 = sbr.rel (0) target = $region77
  $region76: #{pairnet_layer_forward.1} parent=0 // pred_region
    _
  $region77: #{pairnet_layer_forward.1} parent=0 // pred_fallthru
    _

</llo_original>
